<compile_context>
chip_gen: v5e
topology: v5e:2x2
jax: 0.10.0
libtpu: 0.0.40
codegen_flags: <defaults>
</compile_context>

<pallas_src>
import functools

import jax
import jax.numpy as jnp
from jax import lax
from jax.experimental import pallas as pl
from jax.experimental.pallas import tpu as pltpu


# ----------------------------------------------------------------------------
# In-kernel 3x3 "same" convolution: 9 shifted matmuls over a padded VMEM scratch.
#   pad_ref : (H+2, W+2, Cin) VMEM scratch, zero halo, interior = current input
#   w_ref   : (9, Cin, Cout) or (num_blocks, 9, Cin, Cout) weights (block index b)
# Returns a (H*W, Cout) float32 value.
# ----------------------------------------------------------------------------
def _conv3x3_accum(pad_ref, w_ref, b, H, W, precision):
    if b is None:
        Cin, Cout = w_ref.shape[1], w_ref.shape[2]
    else:
        Cin, Cout = w_ref.shape[2], w_ref.shape[3]
    acc = jnp.zeros((H * W, Cout), jnp.float32)
    for k in range(9):
        dy, dx = k // 3, k % 3
        patch = pad_ref[dy:dy + H, dx:dx + W, :].reshape(H * W, Cin)
        wk = w_ref[k] if b is None else w_ref[b, k]
        acc = acc + jnp.dot(patch, wk,
                            preferred_element_type=jnp.float32,
                            precision=precision)
    return acc


# ----------------------------------------------------------------------------
# Fused whole-network forward kernel (one grid step per batch element).
# ----------------------------------------------------------------------------
def dfbnet_kernel(scalars_ref, xref_ref, xin_or_u_ref, w_in_ref, w_in_t_ref,
                  wc_ref, wt_ref, out_ref, u_out_ref, pad_c, pad_f,
                  *, num_blocks, u_provided, precision):
    _, H, W, C = out_ref.shape
    F = u_out_ref.shape[3]
    HW = H * W
    lam = scalars_ref[num_blocks]          # scalars = [gamma_0..gamma_{B-1}, lam]

    # Zero the padded scratches once per grid step; only interiors are rewritten below,
    # so the 1-pixel halo stays zero (replaces the old HBM-side jnp.pad per conv).
    pad_c[...] = jnp.zeros_like(pad_c)
    pad_f[...] = jnp.zeros_like(pad_f)

    xref = xref_ref[0].reshape(HW, C).astype(jnp.float32)

    if u_provided:
        u = xin_or_u_ref[0].reshape(HW, F).astype(jnp.float32)
    else:
        # u = in_conv(xin)
        pad_c[1:H + 1, 1:W + 1, :] = xin_or_u_ref[0].astype(jnp.float32)
        u = _conv3x3_accum(pad_c, w_in_ref, None, H, W, precision)

    for b in range(num_blocks):
        gamma = scalars_ref[b]
        # tmp = x_ref - conv_t(u)
        pad_f[1:H + 1, 1:W + 1, :] = u.reshape(H, W, F)
        tmp = xref - _conv3x3_accum(pad_f, wt_ref, b, H, W, precision)
        # g1 = u + gamma * conv(tmp)
        pad_c[1:H + 1, 1:W + 1, :] = tmp.reshape(H, W, C)
        g1 = u + gamma * _conv3x3_accum(pad_c, wc_ref, b, H, W, precision)
        # p1 = g1 - gamma*SoftShk(g1/gamma, lam/gamma) == clip(g1, -lam, lam)  (gamma > 0)
        u = jnp.clip(g1, -lam, lam)

    # out = clamp(x_ref - out_conv(u), 0, 1)
    pad_f[1:H + 1, 1:W + 1, :] = u.reshape(H, W, F)
    out = jnp.clip(
        xref - _conv3x3_accum(pad_f, w_in_t_ref, None, H, W, precision), 0.0, 1.0)

    out_ref[0] = out.reshape(H, W, C).astype(out_ref.dtype)
    u_out_ref[0] = u.reshape(H, W, F).astype(u_out_ref.dtype)


@functools.partial(jax.jit, static_argnames=("num_blocks", "u_provided", "precision"))
def _dfbnet_call(xref, xin_or_u, w9_in, w9t_in, wc_all, wt_all, scalars,
                 *, num_blocks, u_provided, precision):
    N, H, W, C = xref.shape
    F = w9_in.shape[2]
    Cx = F if u_provided else C
    nb = wc_all.shape[0]
    kernel = functools.partial(dfbnet_kernel, num_blocks=num_blocks,
                               u_provided=u_provided, precision=precision)
    return pl.pallas_call(
        kernel,
        out_shape=(jax.ShapeDtypeStruct((N, H, W, C), xref.dtype),
                   jax.ShapeDtypeStruct((N, H, W, F), xref.dtype)),
        grid=(N,),
        in_specs=[
            pl.BlockSpec(memory_space=pltpu.MemorySpace.SMEM),        # gammas + lam
            pl.BlockSpec((1, H, W, C), lambda n: (n, 0, 0, 0)),       # xref
            pl.BlockSpec((1, H, W, Cx), lambda n: (n, 0, 0, 0)),      # xin (or initial u)
            pl.BlockSpec((9, C, F), lambda n: (0, 0, 0)),             # in_conv taps
            pl.BlockSpec((9, F, C), lambda n: (0, 0, 0)),             # out_conv taps (flipped)
            pl.BlockSpec((nb, 9, C, F), lambda n: (0, 0, 0, 0)),      # block conv taps
            pl.BlockSpec((nb, 9, F, C), lambda n: (0, 0, 0, 0)),      # block conv_t taps
        ],
        out_specs=(
            pl.BlockSpec((1, H, W, C), lambda n: (n, 0, 0, 0)),
            pl.BlockSpec((1, H, W, F), lambda n: (n, 0, 0, 0)),
        ),
        scratch_shapes=[
            pltpu.VMEM((H + 2, W + 2, C), jnp.float32),               # padded tmp / xin
            pltpu.VMEM((H + 2, W + 2, F), jnp.float32),               # padded u
        ],
        compiler_params=pltpu.CompilerParams(dimension_semantics=("parallel",)),
    )(scalars, xref, xin_or_u, w9_in, w9t_in, wc_all, wt_all)


# ----------------------------------------------------------------------------
# Weight re-arrangement (PyTorch Conv2d weight (F, C, 3, 3)).
# ----------------------------------------------------------------------------
def to_w9_conv(w):
    # cross-correlation, C -> F:  w9[dy*3+dx, c, f] = w[f, c, dy, dx]
    F, C = w.shape[0], w.shape[1]
    return jnp.transpose(w, (2, 3, 1, 0)).reshape(9, C, F)


def to_w9_convt(w):
    # conv_transpose (stride 1, pad 1, F -> C) == correlation with flipped kernel:
    # w9[dy*3+dx, f, c] = w[f, c, 2-dy, 2-dx]
    F, C = w.shape[0], w.shape[1]
    return jnp.transpose(w[:, :, ::-1, ::-1], (2, 3, 0, 1)).reshape(9, F, C)


# ----------------------------------------------------------------------------
# Fused conv -> conv_t kernel for the op_norm2 power iteration (device-side).
# ----------------------------------------------------------------------------
def normal_op_kernel(x_ref, wc_ref, wt_ref, y_ref, pad_c, pad_f, *, precision):
    _, H, W, C = x_ref.shape
    F = wc_ref.shape[2]
    pad_c[...] = jnp.zeros_like(pad_c)
    pad_f[...] = jnp.zeros_like(pad_f)
    pad_c[1:H + 1, 1:W + 1, :] = x_ref[0].astype(jnp.float32)
    u = _conv3x3_accum(pad_c, wc_ref, None, H, W, precision)          # (H*W, F)
    pad_f[1:H + 1, 1:W + 1, :] = u.reshape(H, W, F)
    y = _conv3x3_accum(pad_f, wt_ref, None, H, W, precision)          # (H*W, C)
    y_ref[0] = y.reshape(H, W, C).astype(y_ref.dtype)


@functools.partial(jax.jit, static_argnames=("precision",))
def _normal_op(x, w9c, w9t, *, precision=None):
    N, H, W, C = x.shape
    F = w9c.shape[2]
    kernel = functools.partial(normal_op_kernel, precision=precision)
    return pl.pallas_call(
        kernel,
        out_shape=jax.ShapeDtypeStruct((N, H, W, C), x.dtype),
        grid=(N,),
        in_specs=[
            pl.BlockSpec((1, H, W, C), lambda n: (n, 0, 0, 0)),
            pl.BlockSpec((9, C, F), lambda n: (0, 0, 0)),
            pl.BlockSpec((9, F, C), lambda n: (0, 0, 0)),
        ],
        out_specs=pl.BlockSpec((1, H, W, C), lambda n: (n, 0, 0, 0)),
        scratch_shapes=[pltpu.VMEM((H + 2, W + 2, C), jnp.float32),
                        pltpu.VMEM((H + 2, W + 2, F), jnp.float32)],
        compiler_params=pltpu.CompilerParams(dimension_semantics=("parallel",)),
    )(x, w9c, w9t)


@functools.partial(jax.jit, static_argnames=("tol", "max_iter", "precision"))
def op_norm2(w9c, w9t, x0, *, tol=1e-4, max_iter=300, precision=None):
    """Power iteration for ||conv_t o conv||, entirely on device (no host syncs)."""
    x0 = x0 / jnp.linalg.norm(x0.reshape(-1))

    def body(state):
        k, x, val, _ = state
        y = _normal_op(x, w9c, w9t, precision=precision)
        new_val = jnp.linalg.norm(y.reshape(-1))
        return (k + 1, y / new_val, new_val, val)

    def cond(state):
        k, _, val, old_val = state
        rel = jnp.abs(val - old_val) / old_val
        return jnp.logical_and(k < max_iter, jnp.logical_or(k == 0, rel >= tol))

    _, _, val, _ = lax.while_loop(
        cond, body, (jnp.int32(0), x0, jnp.float32(1.0), jnp.float32(1.0)))
    return val


def compute_gammas(params, H, W, key=None, precision=None):
    # TODO(synk): torch uses an unseeded torch.randn init in op_norm2; we use a fixed JAX
    # key — the power iteration converges to the same operator norm regardless of init.
    base = jax.random.PRNGKey(100) if key is None else key
    gammas = []
    for i, bw in enumerate(params["blocks"]):
        C = bw.shape[1]
        x0 = jax.random.normal(jax.random.fold_in(base, i), (1, H, W, C), jnp.float32)
        lip2 = op_norm2(to_w9_conv(bw), to_w9_convt(bw), x0, precision=precision)
        gammas.append(1.8 / lip2)
    return jnp.stack(gammas) if gammas else jnp.zeros((0,), jnp.float32)


# ----------------------------------------------------------------------------
# DFBNetconst.forward  (single fused pallas_call)
# ----------------------------------------------------------------------------
def dfbnet_forward(params, gammas, xref, xin, lam, u=None, precision=None):
    in_w = params["in_conv"]                  # (F, C, 3, 3), shared in_conv / out_conv
    N, H, W, C = xref.shape
    F = in_w.shape[0]
    w9_in = to_w9_conv(in_w)
    w9t_in = to_w9_convt(in_w)
    blocks = params["blocks"]
    num_blocks = len(blocks)
    if num_blocks:
        wc_all = jnp.stack([to_w9_conv(w) for w in blocks])      # (B, 9, C, F)
        wt_all = jnp.stack([to_w9_convt(w) for w in blocks])     # (B, 9, F, C)
        g = jnp.asarray(gammas, jnp.float32).reshape(num_blocks)
    else:
        wc_all = jnp.zeros((1, 9, C, F), jnp.float32)
        wt_all = jnp.zeros((1, 9, F, C), jnp.float32)
        g = jnp.zeros((0,), jnp.float32)
    scalars = jnp.concatenate([g, jnp.asarray(lam, jnp.float32).reshape(1)])
    xin_or_u = xin if u is None else u
    return _dfbnet_call(xref, xin_or_u, w9_in, w9t_in, wc_all, wt_all, scalars,
                        num_blocks=num_blocks, u_provided=u is not None,
                        precision=precision)


# ----------------------------------------------------------------------------
# Pure-JAX reference (lax.conv, literal SoftShk form) for a correctness check.
# ----------------------------------------------------------------------------
def _ref_conv(x, w, precision=None):
    w_hwio = jnp.transpose(w, (2, 3, 1, 0))
    return lax.conv_general_dilated(
        x, w_hwio, (1, 1), "SAME",
        dimension_numbers=("NHWC", "HWIO", "NHWC"), precision=precision)


def _ref_conv_t(u, w, precision=None):
    w_t_hwio = jnp.transpose(w[:, :, ::-1, ::-1], (2, 3, 0, 1))
    return lax.conv_general_dilated(
        u, w_t_hwio, (1, 1), "SAME",
        dimension_numbers=("NHWC", "HWIO", "NHWC"), precision=precision)


def ref_forward(params, gammas, xref, xin, lam, precision=None):
    in_w = params["in_conv"]
    u = _ref_conv(xin, in_w, precision)
    lam = jnp.asarray(lam, jnp.float32)
    for bw, gamma in zip(params["blocks"], list(gammas)):
        tmp = xref - _ref_conv_t(u, bw, precision)
        g1 = u + gamma * _ref_conv(tmp, bw, precision)
        t = g1 / gamma
        lt = lam / gamma
        soft = jnp.maximum(t - lt, 0.0) - jnp.maximum(-t - lt, 0.0)
        u = g1 - gamma * soft
    out = jnp.clip(xref - _ref_conv_t(u, in_w, precision), 0.0, 1.0)
    return out, u


# ----------------------------------------------------------------------------
if __name__ == "__main__":
    key = jax.random.PRNGKey(0)
    N, C, F, H, W = 2, 3, 32, 16, 16
    num_of_layers = 4  # -> 2 DFBBlocks (small demo; module default is 17)

    k_in, k_b, k_x1, k_x2 = jax.random.split(key, 4)
    bound = 1.0 / (C * 9) ** 0.5  # PyTorch Conv2d default init scale
    in_w = jax.random.uniform(k_in, (F, C, 3, 3), jnp.float32, -bound, bound)
    bkeys = jax.random.split(k_b, num_of_layers - 2)
    block_ws = [
        jax.random.uniform(bk, (F, C, 3, 3), jnp.float32, -bound, bound)
        for bk in bkeys
    ]
    params = {"in_conv": in_w, "blocks": block_ws}

    xref = jax.random.uniform(k_x1, (N, H, W, C), jnp.float32)        # NHWC
    xin = jnp.clip(xref + 0.05 * jax.random.normal(k_x2, (N, H, W, C), jnp.float32),
                   0.0, 1.0)
    lam = jnp.array(0.05, jnp.float32)

    gammas = compute_gammas(params, H, W)                             # device array (B,)

    out, u = dfbnet_forward(params, gammas, xref, xin, lam)
    out = jax.block_until_ready(out)
    u = jax.block_until_ready(u)

    # Reference uses the same (default) matmul precision as the kernel; the tolerance
    # reflects single-pass (bf16-product) MXU matmuls on both sides.
    out_r, u_r = ref_forward(params, gammas, xref, xin, lam)
    assert out.shape == (N, H, W, C) and u.shape == (N, H, W, F)
    err_out = float(jnp.max(jnp.abs(out - out_r)))
    err_u = float(jnp.max(jnp.abs(u - u_r)))
    assert err_out < 2e-2 and err_u < 2e-2, (err_out, err_u)

    print("KERNEL_OK")
</pallas_src>

<mosaic_0001>
module attributes {stable_mosaic.version = 11 : i64} {
  func.func @normal_op_kernel(%arg0: i32, %arg1: memref<1x16x16x3xf32, #tpu.memory_space<vmem>>, %arg2: memref<9x3x32xf32, #tpu.memory_space<vmem>>, %arg3: memref<9x32x3xf32, #tpu.memory_space<vmem>>, %arg4: memref<1x16x16x3xf32, #tpu.memory_space<vmem>>, %arg5: memref<18x18x3xf32, #tpu.memory_space<vmem>>, %arg6: memref<18x18x32xf32, #tpu.memory_space<vmem>>) attributes {dimension_semantics = [#tpu.dimension_semantics<parallel>], iteration_bounds = array<i64: 1>, scalar_prefetch = 0 : i64, scratch_operands = 2 : i64, tpu.core_type = #tpu.core_type<tc>, window_params = [{transform_indices = @transform_0, window_bounds = array<i64: 1, 16, 16, 3>}, {pipeline_mode = #tpu.pipeline_mode<synchronous>, transform_indices = @transform_1, window_bounds = array<i64: 9, 3, 32>}, {pipeline_mode = #tpu.pipeline_mode<synchronous>, transform_indices = @transform_2, window_bounds = array<i64: 9, 32, 3>}, {transform_indices = @transform_3, window_bounds = array<i64: 1, 16, 16, 3>}]} {
    %cst = arith.constant 0.000000e+00 : f32
    %0 = vector.broadcast %cst : f32 to vector<18x18x3xf32>
    %c0 = arith.constant 0 : index
    %c0_0 = arith.constant 0 : index
    %c0_1 = arith.constant 0 : index
    %1 = vector.load %arg5[%c0, %c0_0, %c0_1] : memref<18x18x3xf32, #tpu.memory_space<vmem>>, vector<18x18x3xf32>
    tpu.vector_store %arg5[%c0, %c0_0, %c0_1], %0 {strides = array<i32>} : memref<18x18x3xf32, #tpu.memory_space<vmem>>, vector<18x18x3xf32>,
    %cst_2 = arith.constant 0.000000e+00 : f32
    %2 = vector.broadcast %cst_2 : f32 to vector<18x18x32xf32>
    %c0_3 = arith.constant 0 : index
    %c0_4 = arith.constant 0 : index
    %c0_5 = arith.constant 0 : index
    %3 = vector.load %arg6[%c0_3, %c0_4, %c0_5] : memref<18x18x32xf32, #tpu.memory_space<vmem>>, vector<18x18x32xf32>
    tpu.vector_store %arg6[%c0_3, %c0_4, %c0_5], %2 {strides = array<i32>} : memref<18x18x32xf32, #tpu.memory_space<vmem>>, vector<18x18x32xf32>,
    %c0_6 = arith.constant 0 : index
    %c0_7 = arith.constant 0 : index
    %c0_8 = arith.constant 0 : index
    %c0_9 = arith.constant 0 : index
    %4 = vector.load %arg1[%c0_6, %c0_7, %c0_8, %c0_9] : memref<1x16x16x3xf32, #tpu.memory_space<vmem>>, vector<1x16x16x3xf32>
    %5 = vector.shape_cast %4 : vector<1x16x16x3xf32> to vector<16x16x3xf32>
    %c1 = arith.constant 1 : index
    %c1_10 = arith.constant 1 : index
    %c0_11 = arith.constant 0 : index
    %6 = vector.load %arg5[%c1, %c1_10, %c0_11] : memref<18x18x3xf32, #tpu.memory_space<vmem>>, vector<16x16x3xf32>
    tpu.vector_store %arg5[%c1, %c1_10, %c0_11], %5 {strides = array<i32>} : memref<18x18x3xf32, #tpu.memory_space<vmem>>, vector<16x16x3xf32>,
    %cst_12 = arith.constant 0.000000e+00 : f32
    %7 = vector.broadcast %cst_12 : f32 to vector<256x32xf32>
    %c0_13 = arith.constant 0 : index
    %c0_14 = arith.constant 0 : index
    %c0_15 = arith.constant 0 : index
    %8 = vector.load %arg5[%c0_13, %c0_14, %c0_15] : memref<18x18x3xf32, #tpu.memory_space<vmem>>, vector<16x16x3xf32>
    %9 = vector.shape_cast %8 : vector<16x16x3xf32> to vector<256x3xf32>
    %c0_16 = arith.constant 0 : index
    %c0_17 = arith.constant 0 : index
    %c0_18 = arith.constant 0 : index
    %10 = vector.load %arg2[%c0_16, %c0_17, %c0_18] : memref<9x3x32xf32, #tpu.memory_space<vmem>>, vector<1x3x32xf32>
    %11 = vector.shape_cast %10 : vector<1x3x32xf32> to vector<3x32xf32>
    %cst_19 = arith.constant dense<0.000000e+00> : vector<256x32xf32>
    %12 = tpu.matmul %9, %11, %cst_19 {dimension_numbers = #tpu.dot_dimension_numbers<[1], [0], [0], [1], [0, 0, 1, 1], [], []>} : vector<256x3xf32>, vector<3x32xf32>, vector<256x32xf32> -> vector<256x32xf32>
    %13 = arith.addf %7, %12 : vector<256x32xf32>
    %c0_20 = arith.constant 0 : index
    %c1_21 = arith.constant 1 : index
    %c0_22 = arith.constant 0 : index
    %14 = vector.load %arg5[%c0_20, %c1_21, %c0_22] : memref<18x18x3xf32, #tpu.memory_space<vmem>>, vector<16x16x3xf32>
    %15 = vector.shape_cast %14 : vector<16x16x3xf32> to vector<256x3xf32>
    %c1_23 = arith.constant 1 : index
    %c0_24 = arith.constant 0 : index
    %c0_25 = arith.constant 0 : index
    %16 = vector.load %arg2[%c1_23, %c0_24, %c0_25] : memref<9x3x32xf32, #tpu.memory_space<vmem>>, vector<1x3x32xf32>
    %17 = vector.shape_cast %16 : vector<1x3x32xf32> to vector<3x32xf32>
    %cst_26 = arith.constant dense<0.000000e+00> : vector<256x32xf32>
    %18 = tpu.matmul %15, %17, %cst_26 {dimension_numbers = #tpu.dot_dimension_numbers<[1], [0], [0], [1], [0, 0, 1, 1], [], []>} : vector<256x3xf32>, vector<3x32xf32>, vector<256x32xf32> -> vector<256x32xf32>
    %19 = arith.addf %13, %18 : vector<256x32xf32>
    %c0_27 = arith.constant 0 : index
    %c2 = arith.constant 2 : index
    %c0_28 = arith.constant 0 : index
    %20 = vector.load %arg5[%c0_27, %c2, %c0_28] : memref<18x18x3xf32, #tpu.memory_space<vmem>>, vector<16x16x3xf32>
    %21 = vector.shape_cast %20 : vector<16x16x3xf32> to vector<256x3xf32>
    %c2_29 = arith.constant 2 : index
    %c0_30 = arith.constant 0 : index
    %c0_31 = arith.constant 0 : index
    %22 = vector.load %arg2[%c2_29, %c0_30, %c0_31] : memref<9x3x32xf32, #tpu.memory_space<vmem>>, vector<1x3x32xf32>
    %23 = vector.shape_cast %22 : vector<1x3x32xf32> to vector<3x32xf32>
    %cst_32 = arith.constant dense<0.000000e+00> : vector<256x32xf32>
    %24 = tpu.matmul %21, %23, %cst_32 {dimension_numbers = #tpu.dot_dimension_numbers<[1], [0], [0], [1], [0, 0, 1, 1], [], []>} : vector<256x3xf32>, vector<3x32xf32>, vector<256x32xf32> -> vector<256x32xf32>
    %25 = arith.addf %19, %24 : vector<256x32xf32>
    %c1_33 = arith.constant 1 : index
    %c0_34 = arith.constant 0 : index
    %c0_35 = arith.constant 0 : index
    %26 = vector.load %arg5[%c1_33, %c0_34, %c0_35] : memref<18x18x3xf32, #tpu.memory_space<vmem>>, vector<16x16x3xf32>
    %27 = vector.shape_cast %26 : vector<16x16x3xf32> to vector<256x3xf32>
    %c3 = arith.constant 3 : index
    %c0_36 = arith.constant 0 : index
    %c0_37 = arith.constant 0 : index
    %28 = vector.load %arg2[%c3, %c0_36, %c0_37] : memref<9x3x32xf32, #tpu.memory_space<vmem>>, vector<1x3x32xf32>
    %29 = vector.shape_cast %28 : vector<1x3x32xf32> to vector<3x32xf32>
    %cst_38 = arith.constant dense<0.000000e+00> : vector<256x32xf32>
    %30 = tpu.matmul %27, %29, %cst_38 {dimension_numbers = #tpu.dot_dimension_numbers<[1], [0], [0], [1], [0, 0, 1, 1], [], []>} : vector<256x3xf32>, vector<3x32xf32>, vector<256x32xf32> -> vector<256x32xf32>
    %31 = arith.addf %25, %30 : vector<256x32xf32>
    %c1_39 = arith.constant 1 : index
    %c1_40 = arith.constant 1 : index
    %c0_41 = arith.constant 0 : index
    %32 = vector.load %arg5[%c1_39, %c1_40, %c0_41] : memref<18x18x3xf32, #tpu.memory_space<vmem>>, vector<16x16x3xf32>
    %33 = vector.shape_cast %32 : vector<16x16x3xf32> to vector<256x3xf32>
    %c4 = arith.constant 4 : index
    %c0_42 = arith.constant 0 : index
    %c0_43 = arith.constant 0 : index
    %34 = vector.load %arg2[%c4, %c0_42, %c0_43] : memref<9x3x32xf32, #tpu.memory_space<vmem>>, vector<1x3x32xf32>
    %35 = vector.shape_cast %34 : vector<1x3x32xf32> to vector<3x32xf32>
    %cst_44 = arith.constant dense<0.000000e+00> : vector<256x32xf32>
    %36 = tpu.matmul %33, %35, %cst_44 {dimension_numbers = #tpu.dot_dimension_numbers<[1], [0], [0], [1], [0, 0, 1, 1], [], []>} : vector<256x3xf32>, vector<3x32xf32>, vector<256x32xf32> -> vector<256x32xf32>
    %37 = arith.addf %31, %36 : vector<256x32xf32>
    %c1_45 = arith.constant 1 : index
    %c2_46 = arith.constant 2 : index
    %c0_47 = arith.constant 0 : index
    %38 = vector.load %arg5[%c1_45, %c2_46, %c0_47] : memref<18x18x3xf32, #tpu.memory_space<vmem>>, vector<16x16x3xf32>
    %39 = vector.shape_cast %38 : vector<16x16x3xf32> to vector<256x3xf32>
    %c5 = arith.constant 5 : index
    %c0_48 = arith.constant 0 : index
    %c0_49 = arith.constant 0 : index
    %40 = vector.load %arg2[%c5, %c0_48, %c0_49] : memref<9x3x32xf32, #tpu.memory_space<vmem>>, vector<1x3x32xf32>
    %41 = vector.shape_cast %40 : vector<1x3x32xf32> to vector<3x32xf32>
    %cst_50 = arith.constant dense<0.000000e+00> : vector<256x32xf32>
    %42 = tpu.matmul %39, %41, %cst_50 {dimension_numbers = #tpu.dot_dimension_numbers<[1], [0], [0], [1], [0, 0, 1, 1], [], []>} : vector<256x3xf32>, vector<3x32xf32>, vector<256x32xf32> -> vector<256x32xf32>
    %43 = arith.addf %37, %42 : vector<256x32xf32>
    %c2_51 = arith.constant 2 : index
    %c0_52 = arith.constant 0 : index
    %c0_53 = arith.constant 0 : index
    %44 = vector.load %arg5[%c2_51, %c0_52, %c0_53] : memref<18x18x3xf32, #tpu.memory_space<vmem>>, vector<16x16x3xf32>
    %45 = vector.shape_cast %44 : vector<16x16x3xf32> to vector<256x3xf32>
    %c6 = arith.constant 6 : index
    %c0_54 = arith.constant 0 : index
    %c0_55 = arith.constant 0 : index
    %46 = vector.load %arg2[%c6, %c0_54, %c0_55] : memref<9x3x32xf32, #tpu.memory_space<vmem>>, vector<1x3x32xf32>
    %47 = vector.shape_cast %46 : vector<1x3x32xf32> to vector<3x32xf32>
    %cst_56 = arith.constant dense<0.000000e+00> : vector<256x32xf32>
    %48 = tpu.matmul %45, %47, %cst_56 {dimension_numbers = #tpu.dot_dimension_numbers<[1], [0], [0], [1], [0, 0, 1, 1], [], []>} : vector<256x3xf32>, vector<3x32xf32>, vector<256x32xf32> -> vector<256x32xf32>
    %49 = arith.addf %43, %48 : vector<256x32xf32>
    %c2_57 = arith.constant 2 : index
    %c1_58 = arith.constant 1 : index
    %c0_59 = arith.constant 0 : index
    %50 = vector.load %arg5[%c2_57, %c1_58, %c0_59] : memref<18x18x3xf32, #tpu.memory_space<vmem>>, vector<16x16x3xf32>
    %51 = vector.shape_cast %50 : vector<16x16x3xf32> to vector<256x3xf32>
    %c7 = arith.constant 7 : index
    %c0_60 = arith.constant 0 : index
    %c0_61 = arith.constant 0 : index
    %52 = vector.load %arg2[%c7, %c0_60, %c0_61] : memref<9x3x32xf32, #tpu.memory_space<vmem>>, vector<1x3x32xf32>
    %53 = vector.shape_cast %52 : vector<1x3x32xf32> to vector<3x32xf32>
    %cst_62 = arith.constant dense<0.000000e+00> : vector<256x32xf32>
    %54 = tpu.matmul %51, %53, %cst_62 {dimension_numbers = #tpu.dot_dimension_numbers<[1], [0], [0], [1], [0, 0, 1, 1], [], []>} : vector<256x3xf32>, vector<3x32xf32>, vector<256x32xf32> -> vector<256x32xf32>
    %55 = arith.addf %49, %54 : vector<256x32xf32>
    %c2_63 = arith.constant 2 : index
    %c2_64 = arith.constant 2 : index
    %c0_65 = arith.constant 0 : index
    %56 = vector.load %arg5[%c2_63, %c2_64, %c0_65] : memref<18x18x3xf32, #tpu.memory_space<vmem>>, vector<16x16x3xf32>
    %57 = vector.shape_cast %56 : vector<16x16x3xf32> to vector<256x3xf32>
    %c8 = arith.constant 8 : index
    %c0_66 = arith.constant 0 : index
    %c0_67 = arith.constant 0 : index
    %58 = vector.load %arg2[%c8, %c0_66, %c0_67] : memref<9x3x32xf32, #tpu.memory_space<vmem>>, vector<1x3x32xf32>
    %59 = vector.shape_cast %58 : vector<1x3x32xf32> to vector<3x32xf32>
    %cst_68 = arith.constant dense<0.000000e+00> : vector<256x32xf32>
    %60 = tpu.matmul %57, %59, %cst_68 {dimension_numbers = #tpu.dot_dimension_numbers<[1], [0], [0], [1], [0, 0, 1, 1], [], []>} : vector<256x3xf32>, vector<3x32xf32>, vector<256x32xf32> -> vector<256x32xf32>
    %61 = arith.addf %55, %60 : vector<256x32xf32>
    %62 = vector.shape_cast %61 : vector<256x32xf32> to vector<16x16x32xf32>
    %c1_69 = arith.constant 1 : index
    %c1_70 = arith.constant 1 : index
    %c0_71 = arith.constant 0 : index
    %63 = vector.load %arg6[%c1_69, %c1_70, %c0_71] : memref<18x18x32xf32, #tpu.memory_space<vmem>>, vector<16x16x32xf32>
    tpu.vector_store %arg6[%c1_69, %c1_70, %c0_71], %62 {strides = array<i32>} : memref<18x18x32xf32, #tpu.memory_space<vmem>>, vector<16x16x32xf32>,
    %cst_72 = arith.constant 0.000000e+00 : f32
    %64 = vector.broadcast %cst_72 : f32 to vector<256x3xf32>
    %c0_73 = arith.constant 0 : index
    %c0_74 = arith.constant 0 : index
    %c0_75 = arith.constant 0 : index
    %65 = vector.load %arg6[%c0_73, %c0_74, %c0_75] : memref<18x18x32xf32, #tpu.memory_space<vmem>>, vector<16x16x32xf32>
    %66 = vector.shape_cast %65 : vector<16x16x32xf32> to vector<256x32xf32>
    %c0_76 = arith.constant 0 : index
    %c0_77 = arith.constant 0 : index
    %c0_78 = arith.constant 0 : index
    %67 = vector.load %arg3[%c0_76, %c0_77, %c0_78] : memref<9x32x3xf32, #tpu.memory_space<vmem>>, vector<1x32x3xf32>
    %68 = vector.shape_cast %67 : vector<1x32x3xf32> to vector<32x3xf32>
    %cst_79 = arith.constant dense<0.000000e+00> : vector<256x3xf32>
    %69 = tpu.matmul %66, %68, %cst_79 {dimension_numbers = #tpu.dot_dimension_numbers<[1], [0], [0], [1], [0, 0, 1, 1], [], []>} : vector<256x32xf32>, vector<32x3xf32>, vector<256x3xf32> -> vector<256x3xf32>
    %70 = arith.addf %64, %69 : vector<256x3xf32>
    %c0_80 = arith.constant 0 : index
    %c1_81 = arith.constant 1 : index
    %c0_82 = arith.constant 0 : index
    %71 = vector.load %arg6[%c0_80, %c1_81, %c0_82] : memref<18x18x32xf32, #tpu.memory_space<vmem>>, vector<16x16x32xf32>
    %72 = vector.shape_cast %71 : vector<16x16x32xf32> to vector<256x32xf32>
    %c1_83 = arith.constant 1 : index
    %c0_84 = arith.constant 0 : index
    %c0_85 = arith.constant 0 : index
    %73 = vector.load %arg3[%c1_83, %c0_84, %c0_85] : memref<9x32x3xf32, #tpu.memory_space<vmem>>, vector<1x32x3xf32>
    %74 = vector.shape_cast %73 : vector<1x32x3xf32> to vector<32x3xf32>
    %cst_86 = arith.constant dense<0.000000e+00> : vector<256x3xf32>
    %75 = tpu.matmul %72, %74, %cst_86 {dimension_numbers = #tpu.dot_dimension_numbers<[1], [0], [0], [1], [0, 0, 1, 1], [], []>} : vector<256x32xf32>, vector<32x3xf32>, vector<256x3xf32> -> vector<256x3xf32>
    %76 = arith.addf %70, %75 : vector<256x3xf32>
    %c0_87 = arith.constant 0 : index
    %c2_88 = arith.constant 2 : index
    %c0_89 = arith.constant 0 : index
    %77 = vector.load %arg6[%c0_87, %c2_88, %c0_89] : memref<18x18x32xf32, #tpu.memory_space<vmem>>, vector<16x16x32xf32>
    %78 = vector.shape_cast %77 : vector<16x16x32xf32> to vector<256x32xf32>
    %c2_90 = arith.constant 2 : index
    %c0_91 = arith.constant 0 : index
    %c0_92 = arith.constant 0 : index
    %79 = vector.load %arg3[%c2_90, %c0_91, %c0_92] : memref<9x32x3xf32, #tpu.memory_space<vmem>>, vector<1x32x3xf32>
    %80 = vector.shape_cast %79 : vector<1x32x3xf32> to vector<32x3xf32>
    %cst_93 = arith.constant dense<0.000000e+00> : vector<256x3xf32>
    %81 = tpu.matmul %78, %80, %cst_93 {dimension_numbers = #tpu.dot_dimension_numbers<[1], [0], [0], [1], [0, 0, 1, 1], [], []>} : vector<256x32xf32>, vector<32x3xf32>, vector<256x3xf32> -> vector<256x3xf32>
    %82 = arith.addf %76, %81 : vector<256x3xf32>
    %c1_94 = arith.constant 1 : index
    %c0_95 = arith.constant 0 : index
    %c0_96 = arith.constant 0 : index
    %83 = vector.load %arg6[%c1_94, %c0_95, %c0_96] : memref<18x18x32xf32, #tpu.memory_space<vmem>>, vector<16x16x32xf32>
    %84 = vector.shape_cast %83 : vector<16x16x32xf32> to vector<256x32xf32>
    %c3_97 = arith.constant 3 : index
    %c0_98 = arith.constant 0 : index
    %c0_99 = arith.constant 0 : index
    %85 = vector.load %arg3[%c3_97, %c0_98, %c0_99] : memref<9x32x3xf32, #tpu.memory_space<vmem>>, vector<1x32x3xf32>
    %86 = vector.shape_cast %85 : vector<1x32x3xf32> to vector<32x3xf32>
    %cst_100 = arith.constant dense<0.000000e+00> : vector<256x3xf32>
    %87 = tpu.matmul %84, %86, %cst_100 {dimension_numbers = #tpu.dot_dimension_numbers<[1], [0], [0], [1], [0, 0, 1, 1], [], []>} : vector<256x32xf32>, vector<32x3xf32>, vector<256x3xf32> -> vector<256x3xf32>
    %88 = arith.addf %82, %87 : vector<256x3xf32>
    %c1_101 = arith.constant 1 : index
    %c1_102 = arith.constant 1 : index
    %c0_103 = arith.constant 0 : index
    %89 = vector.load %arg6[%c1_101, %c1_102, %c0_103] : memref<18x18x32xf32, #tpu.memory_space<vmem>>, vector<16x16x32xf32>
    %90 = vector.shape_cast %89 : vector<16x16x32xf32> to vector<256x32xf32>
    %c4_104 = arith.constant 4 : index
    %c0_105 = arith.constant 0 : index
    %c0_106 = arith.constant 0 : index
    %91 = vector.load %arg3[%c4_104, %c0_105, %c0_106] : memref<9x32x3xf32, #tpu.memory_space<vmem>>, vector<1x32x3xf32>
    %92 = vector.shape_cast %91 : vector<1x32x3xf32> to vector<32x3xf32>
    %cst_107 = arith.constant dense<0.000000e+00> : vector<256x3xf32>
    %93 = tpu.matmul %90, %92, %cst_107 {dimension_numbers = #tpu.dot_dimension_numbers<[1], [0], [0], [1], [0, 0, 1, 1], [], []>} : vector<256x32xf32>, vector<32x3xf32>, vector<256x3xf32> -> vector<256x3xf32>
    %94 = arith.addf %88, %93 : vector<256x3xf32>
    %c1_108 = arith.constant 1 : index
    %c2_109 = arith.constant 2 : index
    %c0_110 = arith.constant 0 : index
    %95 = vector.load %arg6[%c1_108, %c2_109, %c0_110] : memref<18x18x32xf32, #tpu.memory_space<vmem>>, vector<16x16x32xf32>
    %96 = vector.shape_cast %95 : vector<16x16x32xf32> to vector<256x32xf32>
    %c5_111 = arith.constant 5 : index
    %c0_112 = arith.constant 0 : index
    %c0_113 = arith.constant 0 : index
    %97 = vector.load %arg3[%c5_111, %c0_112, %c0_113] : memref<9x32x3xf32, #tpu.memory_space<vmem>>, vector<1x32x3xf32>
    %98 = vector.shape_cast %97 : vector<1x32x3xf32> to vector<32x3xf32>
    %cst_114 = arith.constant dense<0.000000e+00> : vector<256x3xf32>
    %99 = tpu.matmul %96, %98, %cst_114 {dimension_numbers = #tpu.dot_dimension_numbers<[1], [0], [0], [1], [0, 0, 1, 1], [], []>} : vector<256x32xf32>, vector<32x3xf32>, vector<256x3xf32> -> vector<256x3xf32>
    %100 = arith.addf %94, %99 : vector<256x3xf32>
    %c2_115 = arith.constant 2 : index
    %c0_116 = arith.constant 0 : index
    %c0_117 = arith.constant 0 : index
    %101 = vector.load %arg6[%c2_115, %c0_116, %c0_117] : memref<18x18x32xf32, #tpu.memory_space<vmem>>, vector<16x16x32xf32>
    %102 = vector.shape_cast %101 : vector<16x16x32xf32> to vector<256x32xf32>
    %c6_118 = arith.constant 6 : index
    %c0_119 = arith.constant 0 : index
    %c0_120 = arith.constant 0 : index
    %103 = vector.load %arg3[%c6_118, %c0_119, %c0_120] : memref<9x32x3xf32, #tpu.memory_space<vmem>>, vector<1x32x3xf32>
    %104 = vector.shape_cast %103 : vector<1x32x3xf32> to vector<32x3xf32>
    %cst_121 = arith.constant dense<0.000000e+00> : vector<256x3xf32>
    %105 = tpu.matmul %102, %104, %cst_121 {dimension_numbers = #tpu.dot_dimension_numbers<[1], [0], [0], [1], [0, 0, 1, 1], [], []>} : vector<256x32xf32>, vector<32x3xf32>, vector<256x3xf32> -> vector<256x3xf32>
    %106 = arith.addf %100, %105 : vector<256x3xf32>
    %c2_122 = arith.constant 2 : index
    %c1_123 = arith.constant 1 : index
    %c0_124 = arith.constant 0 : index
    %107 = vector.load %arg6[%c2_122, %c1_123, %c0_124] : memref<18x18x32xf32, #tpu.memory_space<vmem>>, vector<16x16x32xf32>
    %108 = vector.shape_cast %107 : vector<16x16x32xf32> to vector<256x32xf32>
    %c7_125 = arith.constant 7 : index
    %c0_126 = arith.constant 0 : index
    %c0_127 = arith.constant 0 : index
    %109 = vector.load %arg3[%c7_125, %c0_126, %c0_127] : memref<9x32x3xf32, #tpu.memory_space<vmem>>, vector<1x32x3xf32>
    %110 = vector.shape_cast %109 : vector<1x32x3xf32> to vector<32x3xf32>
    %cst_128 = arith.constant dense<0.000000e+00> : vector<256x3xf32>
    %111 = tpu.matmul %108, %110, %cst_128 {dimension_numbers = #tpu.dot_dimension_numbers<[1], [0], [0], [1], [0, 0, 1, 1], [], []>} : vector<256x32xf32>, vector<32x3xf32>, vector<256x3xf32> -> vector<256x3xf32>
    %112 = arith.addf %106, %111 : vector<256x3xf32>
    %c2_129 = arith.constant 2 : index
    %c2_130 = arith.constant 2 : index
    %c0_131 = arith.constant 0 : index
    %113 = vector.load %arg6[%c2_129, %c2_130, %c0_131] : memref<18x18x32xf32, #tpu.memory_space<vmem>>, vector<16x16x32xf32>
    %114 = vector.shape_cast %113 : vector<16x16x32xf32> to vector<256x32xf32>
    %c8_132 = arith.constant 8 : index
    %c0_133 = arith.constant 0 : index
    %c0_134 = arith.constant 0 : index
    %115 = vector.load %arg3[%c8_132, %c0_133, %c0_134] : memref<9x32x3xf32, #tpu.memory_space<vmem>>, vector<1x32x3xf32>
    %116 = vector.shape_cast %115 : vector<1x32x3xf32> to vector<32x3xf32>
    %cst_135 = arith.constant dense<0.000000e+00> : vector<256x3xf32>
    %117 = tpu.matmul %114, %116, %cst_135 {dimension_numbers = #tpu.dot_dimension_numbers<[1], [0], [0], [1], [0, 0, 1, 1], [], []>} : vector<256x32xf32>, vector<32x3xf32>, vector<256x3xf32> -> vector<256x3xf32>
    %118 = arith.addf %112, %117 : vector<256x3xf32>
    %119 = vector.shape_cast %118 : vector<256x3xf32> to vector<16x16x3xf32>
    %c0_136 = arith.constant 0 : index
    %c0_137 = arith.constant 0 : index
    %c0_138 = arith.constant 0 : index
    %c0_139 = arith.constant 0 : index
    %120 = vector.load %arg4[%c0_136, %c0_137, %c0_138, %c0_139] : memref<1x16x16x3xf32, #tpu.memory_space<vmem>>, vector<1x16x16x3xf32>
    %121 = vector.shape_cast %120 : vector<1x16x16x3xf32> to vector<16x16x3xf32>
    %122 = vector.shape_cast %119 : vector<16x16x3xf32> to vector<1x16x16x3xf32>
    tpu.vector_store %arg4[%c0_136, %c0_137, %c0_138, %c0_139], %122 {strides = array<i32>} : memref<1x16x16x3xf32, #tpu.memory_space<vmem>>, vector<1x16x16x3xf32>,
    return
  }
  func.func @transform_0(%arg0: i32) -> (i32, i32, i32, i32) {
    %c0_i32 = arith.constant 0 : i32
    %c0_i32_0 = arith.constant 0 : i32
    %c0_i32_1 = arith.constant 0 : i32
    %c0_i32_2 = arith.constant 0 : i32
    return %arg0, %c0_i32, %c0_i32_0, %c0_i32_1 : i32, i32, i32, i32
  }
  func.func @transform_1(%arg0: i32) -> (i32, i32, i32) {
    %c0_i32 = arith.constant 0 : i32
    %c0_i32_0 = arith.constant 0 : i32
    %c0_i32_1 = arith.constant 0 : i32
    %c0_i32_2 = arith.constant 0 : i32
    return %c0_i32, %c0_i32_0, %c0_i32_1 : i32, i32, i32
  }
  func.func @transform_2(%arg0: i32) -> (i32, i32, i32) {
    %c0_i32 = arith.constant 0 : i32
    %c0_i32_0 = arith.constant 0 : i32
    %c0_i32_1 = arith.constant 0 : i32
    %c0_i32_2 = arith.constant 0 : i32
    return %c0_i32, %c0_i32_0, %c0_i32_1 : i32, i32, i32
  }
  func.func @transform_3(%arg0: i32) -> (i32, i32, i32, i32) {
    %c0_i32 = arith.constant 0 : i32
    %c0_i32_0 = arith.constant 0 : i32
    %c0_i32_1 = arith.constant 0 : i32
    %c0_i32_2 = arith.constant 0 : i32
    return %arg0, %c0_i32, %c0_i32_0, %c0_i32_1 : i32, i32, i32, i32
  }
}

</mosaic_0001>

<llo_original>
// kernel: _normal_op.1
$region0: #{_normal_op.1}
  #allocation0 [shape = 'u32[]', space=smem, size = 0x4, offset = 0x4, fixed_abs, tag = 'smem constant byte address 0x4 - core index']
  #allocation1 [shape = 'u32[72,128]{1,0:T(1,128)}', space=vmem, size = 0x9000, scoped, tag = 'internal scratch']
  #allocation2 [shape = 'f32[18,18,3]{2,1,0:T(8,128)}', space=vmem, size = 0x36000, scoped, tag = 'scratch operand']
  #allocation3 [shape = 'f32[18,18,32]{2,1,0:T(8,128)}', space=vmem, size = 0x36000, scoped, tag = 'scratch operand']
  %s0 = inlined_call_operand.vmem [shape: f32[1,16,16,3], index: 0, kind: input, shape index: {}]
  %s1 = inlined_call_operand.vmem [shape: f32[9,3,32], index: 1, kind: input, shape index: {}]
  %s2 = inlined_call_operand.vmem [shape: f32[9,32,3], index: 2, kind: input, shape index: {}]
  %s3 = inlined_call_operand.vmem [shape: f32[1,16,16,3], index: 3, kind: output, shape index: {}]
  %s4 = sld [smem:[#allocation0]]
  $region22: #{_normal_op.1} parent=0
    _
  %s6 = ssub.s32 1, %s4
  %s7 = scalar_select 0, %s6, %s4
  // Predicated region
  $region2: #{_normal_op.1} parent=0 // pred_check
    _
  $region3: #{_normal_op.1} parent=0 // pred_check_branch
    %9 = sbr.rel (0) target = $region5
  $region4: #{_normal_op.1} parent=0 // pred_region
    _
  $region5: #{_normal_op.1} parent=0 // pred_fallthru
    _
  // Predicated region
  $region6: #{_normal_op.1} parent=0 // pred_check
    _
  $region7: #{_normal_op.1} parent=0 // pred_check_branch
    %11 = sbr.rel (0) target = $region9
  $region8: #{_normal_op.1} parent=0 // pred_region
    _
  $region9: #{_normal_op.1} parent=0 // pred_fallthru
    _
  // Predicated region
  $region10: #{_normal_op.1} parent=0 // pred_check
    _
  $region11: #{_normal_op.1} parent=0 // pred_check_branch
    %13 = sbr.rel (0) target = $region13
  $region12: #{_normal_op.1} parent=0 // pred_region
    _
  $region13: #{_normal_op.1} parent=0 // pred_fallthru
    _
  %vm14 = vcmask 23552
  %15 = vst.msk [vmem:[#allocation2] sm:$0xff] %vm14, 0.0
  %16 = vst.msk [vmem:[#allocation2 + $0x8] sm:$0xff] %vm14, 0.0
  %vm17 = vcmask 17408
  %18 = vst.msk [vmem:[#allocation2 + $0x10] sm:$0x3] %vm17, 0.0
  %19 = vst.msk [vmem:[#allocation2 + $0x18] sm:$0xff] %vm14, 0.0
  %20 = vst.msk [vmem:[#allocation2 + $0x20] sm:$0xff] %vm14, 0.0
  %21 = vst.msk [vmem:[#allocation2 + $0x28] sm:$0x3] %vm17, 0.0
  %22 = vst.msk [vmem:[#allocation2 + $0x30] sm:$0xff] %vm14, 0.0
  %23 = vst.msk [vmem:[#allocation2 + $0x38] sm:$0xff] %vm14, 0.0
  %24 = vst.msk [vmem:[#allocation2 + $0x40] sm:$0x3] %vm17, 0.0
  %25 = vst.msk [vmem:[#allocation2 + $0x48] sm:$0xff] %vm14, 0.0
  %26 = vst.msk [vmem:[#allocation2 + $0x50] sm:$0xff] %vm14, 0.0
  %27 = vst.msk [vmem:[#allocation2 + $0x58] sm:$0x3] %vm17, 0.0
  %28 = vst.msk [vmem:[#allocation2 + $0x60] sm:$0xff] %vm14, 0.0
  %29 = vst.msk [vmem:[#allocation2 + $0x68] sm:$0xff] %vm14, 0.0
  %30 = vst.msk [vmem:[#allocation2 + $0x70] sm:$0x3] %vm17, 0.0
  %31 = vst.msk [vmem:[#allocation2 + $0x78] sm:$0xff] %vm14, 0.0
  %32 = vst.msk [vmem:[#allocation2 + $0x80] sm:$0xff] %vm14, 0.0
  %33 = vst.msk [vmem:[#allocation2 + $0x88] sm:$0x3] %vm17, 0.0
  %34 = vst.msk [vmem:[#allocation2 + $0x90] sm:$0xff] %vm14, 0.0
  %35 = vst.msk [vmem:[#allocation2 + $0x98] sm:$0xff] %vm14, 0.0
  %36 = vst.msk [vmem:[#allocation2 + $0xa0] sm:$0x3] %vm17, 0.0
  %37 = vst.msk [vmem:[#allocation2 + $0xa8] sm:$0xff] %vm14, 0.0
  %38 = vst.msk [vmem:[#allocation2 + $0xb0] sm:$0xff] %vm14, 0.0
  %39 = vst.msk [vmem:[#allocation2 + $0xb8] sm:$0x3] %vm17, 0.0
  %40 = vst.msk [vmem:[#allocation2 + $0xc0] sm:$0xff] %vm14, 0.0
  %41 = vst.msk [vmem:[#allocation2 + $0xc8] sm:$0xff] %vm14, 0.0
  %42 = vst.msk [vmem:[#allocation2 + $0xd0] sm:$0x3] %vm17, 0.0
  %43 = vst.msk [vmem:[#allocation2 + $0xd8] sm:$0xff] %vm14, 0.0
  %44 = vst.msk [vmem:[#allocation2 + $0xe0] sm:$0xff] %vm14, 0.0
  %45 = vst.msk [vmem:[#allocation2 + $0xe8] sm:$0x3] %vm17, 0.0
  %46 = vst.msk [vmem:[#allocation2 + $0xf0] sm:$0xff] %vm14, 0.0
  %47 = vst.msk [vmem:[#allocation2 + $0xf8] sm:$0xff] %vm14, 0.0
  %48 = vst.msk [vmem:[#allocation2 + $0x100] sm:$0x3] %vm17, 0.0
  %49 = vst.msk [vmem:[#allocation2 + $0x108] sm:$0xff] %vm14, 0.0
  %50 = vst.msk [vmem:[#allocation2 + $0x110] sm:$0xff] %vm14, 0.0
  %51 = vst.msk [vmem:[#allocation2 + $0x118] sm:$0x3] %vm17, 0.0
  %52 = vst.msk [vmem:[#allocation2 + $0x120] sm:$0xff] %vm14, 0.0
  %53 = vst.msk [vmem:[#allocation2 + $0x128] sm:$0xff] %vm14, 0.0
  %54 = vst.msk [vmem:[#allocation2 + $0x130] sm:$0x3] %vm17, 0.0
  %55 = vst.msk [vmem:[#allocation2 + $0x138] sm:$0xff] %vm14, 0.0
  %56 = vst.msk [vmem:[#allocation2 + $0x140] sm:$0xff] %vm14, 0.0
  %57 = vst.msk [vmem:[#allocation2 + $0x148] sm:$0x3] %vm17, 0.0
  %58 = vst.msk [vmem:[#allocation2 + $0x150] sm:$0xff] %vm14, 0.0
  %59 = vst.msk [vmem:[#allocation2 + $0x158] sm:$0xff] %vm14, 0.0
  %60 = vst.msk [vmem:[#allocation2 + $0x160] sm:$0x3] %vm17, 0.0
  %61 = vst.msk [vmem:[#allocation2 + $0x168] sm:$0xff] %vm14, 0.0
  %62 = vst.msk [vmem:[#allocation2 + $0x170] sm:$0xff] %vm14, 0.0
  %63 = vst.msk [vmem:[#allocation2 + $0x178] sm:$0x3] %vm17, 0.0
  %64 = vst.msk [vmem:[#allocation2 + $0x180] sm:$0xff] %vm14, 0.0
  %65 = vst.msk [vmem:[#allocation2 + $0x188] sm:$0xff] %vm14, 0.0
  %66 = vst.msk [vmem:[#allocation2 + $0x190] sm:$0x3] %vm17, 0.0
  %67 = vst.msk [vmem:[#allocation2 + $0x198] sm:$0xff] %vm14, 0.0
  %68 = vst.msk [vmem:[#allocation2 + $0x1a0] sm:$0xff] %vm14, 0.0
  %69 = vst.msk [vmem:[#allocation2 + $0x1a8] sm:$0x3] %vm17, 0.0
  %vm70 = vcmask 261120
  %71 = vst.msk [vmem:[#allocation3] sm:$0xff] %vm70, 0.0
  %72 = vst.msk [vmem:[#allocation3 + $0x8] sm:$0xff] %vm70, 0.0
  %vm73 = vcmask 254976
  %74 = vst.msk [vmem:[#allocation3 + $0x10] sm:$0x3] %vm73, 0.0
  %75 = vst.msk [vmem:[#allocation3 + $0x18] sm:$0xff] %vm70, 0.0
  %76 = vst.msk [vmem:[#allocation3 + $0x20] sm:$0xff] %vm70, 0.0
  %77 = vst.msk [vmem:[#allocation3 + $0x28] sm:$0x3] %vm73, 0.0
  %78 = vst.msk [vmem:[#allocation3 + $0x30] sm:$0xff] %vm70, 0.0
  %79 = vst.msk [vmem:[#allocation3 + $0x38] sm:$0xff] %vm70, 0.0
  %80 = vst.msk [vmem:[#allocation3 + $0x40] sm:$0x3] %vm73, 0.0
  %81 = vst.msk [vmem:[#allocation3 + $0x48] sm:$0xff] %vm70, 0.0
  %82 = vst.msk [vmem:[#allocation3 + $0x50] sm:$0xff] %vm70, 0.0
  %83 = vst.msk [vmem:[#allocation3 + $0x58] sm:$0x3] %vm73, 0.0
  %84 = vst.msk [vmem:[#allocation3 + $0x60] sm:$0xff] %vm70, 0.0
  %85 = vst.msk [vmem:[#allocation3 + $0x68] sm:$0xff] %vm70, 0.0
  %86 = vst.msk [vmem:[#allocation3 + $0x70] sm:$0x3] %vm73, 0.0
  %87 = vst.msk [vmem:[#allocation3 + $0x78] sm:$0xff] %vm70, 0.0
  %88 = vst.msk [vmem:[#allocation3 + $0x80] sm:$0xff] %vm70, 0.0
  %89 = vst.msk [vmem:[#allocation3 + $0x88] sm:$0x3] %vm73, 0.0
  %90 = vst.msk [vmem:[#allocation3 + $0x90] sm:$0xff] %vm70, 0.0
  %91 = vst.msk [vmem:[#allocation3 + $0x98] sm:$0xff] %vm70, 0.0
  %92 = vst.msk [vmem:[#allocation3 + $0xa0] sm:$0x3] %vm73, 0.0
  %93 = vst.msk [vmem:[#allocation3 + $0xa8] sm:$0xff] %vm70, 0.0
  %94 = vst.msk [vmem:[#allocation3 + $0xb0] sm:$0xff] %vm70, 0.0
  %95 = vst.msk [vmem:[#allocation3 + $0xb8] sm:$0x3] %vm73, 0.0
  %96 = vst.msk [vmem:[#allocation3 + $0xc0] sm:$0xff] %vm70, 0.0
  %97 = vst.msk [vmem:[#allocation3 + $0xc8] sm:$0xff] %vm70, 0.0
  %98 = vst.msk [vmem:[#allocation3 + $0xd0] sm:$0x3] %vm73, 0.0
  %99 = vst.msk [vmem:[#allocation3 + $0xd8] sm:$0xff] %vm70, 0.0
  %100 = vst.msk [vmem:[#allocation3 + $0xe0] sm:$0xff] %vm70, 0.0
  %101 = vst.msk [vmem:[#allocation3 + $0xe8] sm:$0x3] %vm73, 0.0
  %102 = vst.msk [vmem:[#allocation3 + $0xf0] sm:$0xff] %vm70, 0.0
  %103 = vst.msk [vmem:[#allocation3 + $0xf8] sm:$0xff] %vm70, 0.0
  %104 = vst.msk [vmem:[#allocation3 + $0x100] sm:$0x3] %vm73, 0.0
  %105 = vst.msk [vmem:[#allocation3 + $0x108] sm:$0xff] %vm70, 0.0
  %106 = vst.msk [vmem:[#allocation3 + $0x110] sm:$0xff] %vm70, 0.0
  %107 = vst.msk [vmem:[#allocation3 + $0x118] sm:$0x3] %vm73, 0.0
  %108 = vst.msk [vmem:[#allocation3 + $0x120] sm:$0xff] %vm70, 0.0
  %109 = vst.msk [vmem:[#allocation3 + $0x128] sm:$0xff] %vm70, 0.0
  %110 = vst.msk [vmem:[#allocation3 + $0x130] sm:$0x3] %vm73, 0.0
  %111 = vst.msk [vmem:[#allocation3 + $0x138] sm:$0xff] %vm70, 0.0
  %112 = vst.msk [vmem:[#allocation3 + $0x140] sm:$0xff] %vm70, 0.0
  %113 = vst.msk [vmem:[#allocation3 + $0x148] sm:$0x3] %vm73, 0.0
  %114 = vst.msk [vmem:[#allocation3 + $0x150] sm:$0xff] %vm70, 0.0
  %115 = vst.msk [vmem:[#allocation3 + $0x158] sm:$0xff] %vm70, 0.0
  %116 = vst.msk [vmem:[#allocation3 + $0x160] sm:$0x3] %vm73, 0.0
  %117 = vst.msk [vmem:[#allocation3 + $0x168] sm:$0xff] %vm70, 0.0
  %118 = vst.msk [vmem:[#allocation3 + $0x170] sm:$0xff] %vm70, 0.0
  %119 = vst.msk [vmem:[#allocation3 + $0x178] sm:$0x3] %vm73, 0.0
  %120 = vst.msk [vmem:[#allocation3 + $0x180] sm:$0xff] %vm70, 0.0
  %121 = vst.msk [vmem:[#allocation3 + $0x188] sm:$0xff] %vm70, 0.0
  %122 = vst.msk [vmem:[#allocation3 + $0x190] sm:$0x3] %vm73, 0.0
  %123 = vst.msk [vmem:[#allocation3 + $0x198] sm:$0xff] %vm70, 0.0
  %124 = vst.msk [vmem:[#allocation3 + $0x1a0] sm:$0xff] %vm70, 0.0
  %125 = vst.msk [vmem:[#allocation3 + $0x1a8] sm:$0x3] %vm73, 0.0
  %v126 = vld [vmem:[%s0] sm:$0xff]
  %v127 = vld [vmem:[%s0 + $0x8] sm:$0xff]
  %v128 = vld [vmem:[%s0 + $0x10] sm:$0xff]
  %v129 = vld [vmem:[%s0 + $0x18] sm:$0xff]
  %v130 = vld [vmem:[%s0 + $0x20] sm:$0xff]
  %v131 = vld [vmem:[%s0 + $0x28] sm:$0xff]
  %v132 = vld [vmem:[%s0 + $0x30] sm:$0xff]
  %v133 = vld [vmem:[%s0 + $0x38] sm:$0xff]
  %v134 = vld [vmem:[%s0 + $0x40] sm:$0xff]
  %v135 = vld [vmem:[%s0 + $0x48] sm:$0xff]
  %v136 = vld [vmem:[%s0 + $0x50] sm:$0xff]
  %v137 = vld [vmem:[%s0 + $0x58] sm:$0xff]
  %v138 = vld [vmem:[%s0 + $0x60] sm:$0xff]
  %v139 = vld [vmem:[%s0 + $0x68] sm:$0xff]
  %v140 = vld [vmem:[%s0 + $0x70] sm:$0xff]
  %v141 = vld [vmem:[%s0 + $0x78] sm:$0xff]
  %v142 = vld [vmem:[%s0 + $0x80] sm:$0xff]
  %v143 = vld [vmem:[%s0 + $0x88] sm:$0xff]
  %v144 = vld [vmem:[%s0 + $0x90] sm:$0xff]
  %v145 = vld [vmem:[%s0 + $0x98] sm:$0xff]
  %v146 = vld [vmem:[%s0 + $0xa0] sm:$0xff]
  %v147 = vld [vmem:[%s0 + $0xa8] sm:$0xff]
  %v148 = vld [vmem:[%s0 + $0xb0] sm:$0xff]
  %v149 = vld [vmem:[%s0 + $0xb8] sm:$0xff]
  %v150 = vld [vmem:[%s0 + $0xc0] sm:$0xff]
  %v151 = vld [vmem:[%s0 + $0xc8] sm:$0xff]
  %v152 = vld [vmem:[%s0 + $0xd0] sm:$0xff]
  %v153 = vld [vmem:[%s0 + $0xd8] sm:$0xff]
  %v154 = vld [vmem:[%s0 + $0xe0] sm:$0xff]
  %v155 = vld [vmem:[%s0 + $0xe8] sm:$0xff]
  %v156 = vld [vmem:[%s0 + $0xf0] sm:$0xff]
  %v157 = vld [vmem:[%s0 + $0xf8] sm:$0xff]
  %s158 = scalar_lea.vmem [#allocation2], 24
  %159 = vst.msk [vmem:[%s158 + $0x1] sm:$0xff] %vm14, %v126
  %160 = vst.msk [vmem:[%s158 + $0x9] sm:$0xff] %vm14, %v127
  %161 = vst.msk [vmem:[%s158 + $0x19] sm:$0xff] %vm14, %v128
  %162 = vst.msk [vmem:[%s158 + $0x21] sm:$0xff] %vm14, %v129
  %163 = vst.msk [vmem:[%s158 + $0x31] sm:$0xff] %vm14, %v130
  %164 = vst.msk [vmem:[%s158 + $0x39] sm:$0xff] %vm14, %v131
  %165 = vst.msk [vmem:[%s158 + $0x49] sm:$0xff] %vm14, %v132
  %166 = vst.msk [vmem:[%s158 + $0x51] sm:$0xff] %vm14, %v133
  %167 = vst.msk [vmem:[%s158 + $0x61] sm:$0xff] %vm14, %v134
  %168 = vst.msk [vmem:[%s158 + $0x69] sm:$0xff] %vm14, %v135
  %169 = vst.msk [vmem:[%s158 + $0x79] sm:$0xff] %vm14, %v136
  %170 = vst.msk [vmem:[%s158 + $0x81] sm:$0xff] %vm14, %v137
  %171 = vst.msk [vmem:[%s158 + $0x91] sm:$0xff] %vm14, %v138
  %172 = vst.msk [vmem:[%s158 + $0x99] sm:$0xff] %vm14, %v139
  %173 = vst.msk [vmem:[%s158 + $0xa9] sm:$0xff] %vm14, %v140
  %174 = vst.msk [vmem:[%s158 + $0xb1] sm:$0xff] %vm14, %v141
  %175 = vst.msk [vmem:[%s158 + $0xc1] sm:$0xff] %vm14, %v142
  %176 = vst.msk [vmem:[%s158 + $0xc9] sm:$0xff] %vm14, %v143
  %177 = vst.msk [vmem:[%s158 + $0xd9] sm:$0xff] %vm14, %v144
  %178 = vst.msk [vmem:[%s158 + $0xe1] sm:$0xff] %vm14, %v145
  %179 = vst.msk [vmem:[%s158 + $0xf1] sm:$0xff] %vm14, %v146
  %180 = vst.msk [vmem:[%s158 + $0xf9] sm:$0xff] %vm14, %v147
  %181 = vst.msk [vmem:[%s158 + $0x109] sm:$0xff] %vm14, %v148
  %182 = vst.msk [vmem:[%s158 + $0x111] sm:$0xff] %vm14, %v149
  %183 = vst.msk [vmem:[%s158 + $0x121] sm:$0xff] %vm14, %v150
  %184 = vst.msk [vmem:[%s158 + $0x129] sm:$0xff] %vm14, %v151
  %185 = vst.msk [vmem:[%s158 + $0x139] sm:$0xff] %vm14, %v152
  %186 = vst.msk [vmem:[%s158 + $0x141] sm:$0xff] %vm14, %v153
  %187 = vst.msk [vmem:[%s158 + $0x151] sm:$0xff] %vm14, %v154
  %188 = vst.msk [vmem:[%s158 + $0x159] sm:$0xff] %vm14, %v155
  %189 = vst.msk [vmem:[%s158 + $0x169] sm:$0xff] %vm14, %v156
  %190 = vst.msk [vmem:[%s158 + $0x171] sm:$0xff] %vm14, %v157
  %v191 = vld [vmem:[#allocation2] sm:$0xff]
  %v192 = vld [vmem:[#allocation2 + $0x8] sm:$0xff]
  %v193 = vld [vmem:[#allocation2 + $0x18] sm:$0xff]
  %v194 = vld [vmem:[#allocation2 + $0x20] sm:$0xff]
  %v195 = vld [vmem:[#allocation2 + $0x30] sm:$0xff]
  %v196 = vld [vmem:[#allocation2 + $0x38] sm:$0xff]
  %v197 = vld [vmem:[#allocation2 + $0x48] sm:$0xff]
  %v198 = vld [vmem:[#allocation2 + $0x50] sm:$0xff]
  %v199 = vld [vmem:[#allocation2 + $0x60] sm:$0xff]
  %v200 = vld [vmem:[#allocation2 + $0x68] sm:$0xff]
  %v201 = vld [vmem:[#allocation2 + $0x78] sm:$0xff]
  %v202 = vld [vmem:[#allocation2 + $0x80] sm:$0xff]
  %v203 = vld [vmem:[#allocation2 + $0x90] sm:$0xff]
  %v204 = vld [vmem:[#allocation2 + $0x98] sm:$0xff]
  %v205 = vld [vmem:[#allocation2 + $0xa8] sm:$0xff]
  %v206 = vld [vmem:[#allocation2 + $0xb0] sm:$0xff]
  %v207 = vld [vmem:[#allocation2 + $0xc0] sm:$0xff]
  %v208 = vld [vmem:[#allocation2 + $0xc8] sm:$0xff]
  %v209 = vld [vmem:[#allocation2 + $0xd8] sm:$0xff]
  %v210 = vld [vmem:[#allocation2 + $0xe0] sm:$0xff]
  %v211 = vld [vmem:[#allocation2 + $0xf0] sm:$0xff]
  %v212 = vld [vmem:[#allocation2 + $0xf8] sm:$0xff]
  %v213 = vld [vmem:[#allocation2 + $0x108] sm:$0xff]
  %v214 = vld [vmem:[#allocation2 + $0x110] sm:$0xff]
  %v215 = vld [vmem:[#allocation2 + $0x120] sm:$0xff]
  %v216 = vld [vmem:[#allocation2 + $0x128] sm:$0xff]
  %v217 = vld [vmem:[#allocation2 + $0x138] sm:$0xff]
  %v218 = vld [vmem:[#allocation2 + $0x140] sm:$0xff]
  %v219 = vld [vmem:[#allocation2 + $0x150] sm:$0xff]
  %v220 = vld [vmem:[#allocation2 + $0x158] sm:$0xff]
  %v221 = vld [vmem:[#allocation2 + $0x168] sm:$0xff]
  %v222 = vld [vmem:[#allocation2 + $0x170] sm:$0xff]
  %v223 = vld [vmem:[%s1] sm:$0x7]
  %v224 = vld [vmem:[#allocation2 + $0x1] sm:$0xff]
  %v225 = vld [vmem:[#allocation2 + $0x9] sm:$0xff]
  %v226 = vld [vmem:[#allocation2 + $0x19] sm:$0xff]
  %v227 = vld [vmem:[#allocation2 + $0x21] sm:$0xff]
  %v228 = vld [vmem:[#allocation2 + $0x31] sm:$0xff]
  %v229 = vld [vmem:[#allocation2 + $0x39] sm:$0xff]
  %v230 = vld [vmem:[#allocation2 + $0x49] sm:$0xff]
  %v231 = vld [vmem:[#allocation2 + $0x51] sm:$0xff]
  %v232 = vld [vmem:[#allocation2 + $0x61] sm:$0xff]
  %v233 = vld [vmem:[#allocation2 + $0x69] sm:$0xff]
  %v234 = vld [vmem:[#allocation2 + $0x79] sm:$0xff]
  %v235 = vld [vmem:[#allocation2 + $0x81] sm:$0xff]
  %v236 = vld [vmem:[#allocation2 + $0x91] sm:$0xff]
  %v237 = vld [vmem:[#allocation2 + $0x99] sm:$0xff]
  %v238 = vld [vmem:[#allocation2 + $0xa9] sm:$0xff]
  %v239 = vld [vmem:[#allocation2 + $0xb1] sm:$0xff]
  %v240 = vld [vmem:[#allocation2 + $0xc1] sm:$0xff]
  %v241 = vld [vmem:[#allocation2 + $0xc9] sm:$0xff]
  %v242 = vld [vmem:[#allocation2 + $0xd9] sm:$0xff]
  %v243 = vld [vmem:[#allocation2 + $0xe1] sm:$0xff]
  %v244 = vld [vmem:[#allocation2 + $0xf1] sm:$0xff]
  %v245 = vld [vmem:[#allocation2 + $0xf9] sm:$0xff]
  %v246 = vld [vmem:[#allocation2 + $0x109] sm:$0xff]
  %v247 = vld [vmem:[#allocation2 + $0x111] sm:$0xff]
  %v248 = vld [vmem:[#allocation2 + $0x121] sm:$0xff]
  %v249 = vld [vmem:[#allocation2 + $0x129] sm:$0xff]
  %v250 = vld [vmem:[#allocation2 + $0x139] sm:$0xff]
  %v251 = vld [vmem:[#allocation2 + $0x141] sm:$0xff]
  %v252 = vld [vmem:[#allocation2 + $0x151] sm:$0xff]
  %v253 = vld [vmem:[#allocation2 + $0x159] sm:$0xff]
  %v254 = vld [vmem:[#allocation2 + $0x169] sm:$0xff]
  %v255 = vld [vmem:[#allocation2 + $0x171] sm:$0xff]
  %s256 = scalar_lea.vmem %s1, 4
  %v257 = vld [vmem:[%s256] sm:$0x7]
  %v259 = vsel %vm14, %v224, 0
  %v262 = vsel %vm14, %v225, 0
  %v265 = vsel %vm14, %v226, 0
  %v268 = vsel %vm14, %v227, 0
  %v271 = vsel %vm14, %v228, 0
  %v274 = vsel %vm14, %v229, 0
  %v277 = vsel %vm14, %v230, 0
  %v280 = vsel %vm14, %v231, 0
  %v283 = vsel %vm14, %v232, 0
  %v286 = vsel %vm14, %v233, 0
  %v289 = vsel %vm14, %v234, 0
  %v292 = vsel %vm14, %v235, 0
  %v295 = vsel %vm14, %v236, 0
  %v298 = vsel %vm14, %v237, 0
  %v301 = vsel %vm14, %v238, 0
  %v304 = vsel %vm14, %v239, 0
  %v307 = vsel %vm14, %v240, 0
  %v310 = vsel %vm14, %v241, 0
  %v313 = vsel %vm14, %v242, 0
  %v316 = vsel %vm14, %v243, 0
  %v319 = vsel %vm14, %v244, 0
  %v322 = vsel %vm14, %v245, 0
  %v325 = vsel %vm14, %v246, 0
  %v328 = vsel %vm14, %v247, 0
  %v331 = vsel %vm14, %v248, 0
  %v334 = vsel %vm14, %v249, 0
  %v337 = vsel %vm14, %v250, 0
  %v340 = vsel %vm14, %v251, 0
  %v343 = vsel %vm14, %v252, 0
  %v346 = vsel %vm14, %v253, 0
  %v349 = vsel %vm14, %v254, 0
  %v352 = vsel %vm14, %v255, 0
  %vm354 = vcmask 1042432
  %v356 = vsel %vm354, %v257, 0
  %358 = vmatpush.msra.mxu0 0.0
  %359 = vmatpush.msra.mxu0 0.0
  %360 = vmatpush.msra.mxu0 0.0
  %361 = vmatpush.msra.mxu0 0.0
  %362 = vmatpush.msra.mxu0 0.0
  %363 = vmatpush.msra.mxu0 0.0
  %364 = vmatpush.msra.mxu0 0.0
  %365 = vmatpush.msra.mxu0 0.0
  %366 = vmatpush.msra.mxu0 0.0
  %367 = vmatpush.msra.mxu0 0.0
  %368 = vmatpush.msra.mxu0 0.0
  %369 = vmatpush.msra.mxu0 0.0
  %370 = vmatpush.msra.mxu0 0.0
  %371 = vmatpush.msra.mxu0 0.0
  %372 = vmatpush.msra.mxu0 0.0
  %373 = vmatpush.msra.mxu0 %v356
  %374 = vmatmul.f32.gmra.mxu0 %v259
  %v375 = vpop.f32.mrf.mxu0
  %v376 = vadd.f32 0.0, %v375
  %377 = vmatmul.f32.gmra.mxu0 %v262
  %v378 = vpop.f32.mrf.mxu0
  %v379 = vadd.f32 0.0, %v378
  %380 = vmatmul.f32.gmra.mxu0 %v265
  %v381 = vpop.f32.mrf.mxu0
  %v382 = vadd.f32 0.0, %v381
  %383 = vmatmul.f32.gmra.mxu0 %v268
  %v384 = vpop.f32.mrf.mxu0
  %v385 = vadd.f32 0.0, %v384
  %386 = vmatmul.f32.gmra.mxu0 %v271
  %v387 = vpop.f32.mrf.mxu0
  %v388 = vadd.f32 0.0, %v387
  %389 = vmatmul.f32.gmra.mxu0 %v274
  %v390 = vpop.f32.mrf.mxu0
  %v391 = vadd.f32 0.0, %v390
  %392 = vmatmul.f32.gmra.mxu0 %v277
  %v393 = vpop.f32.mrf.mxu0
  %v394 = vadd.f32 0.0, %v393
  %395 = vmatmul.f32.gmra.mxu0 %v280
  %v396 = vpop.f32.mrf.mxu0
  %v397 = vadd.f32 0.0, %v396
  %398 = vmatmul.f32.gmra.mxu0 %v283
  %v399 = vpop.f32.mrf.mxu0
  %v400 = vadd.f32 0.0, %v399
  %401 = vmatmul.f32.gmra.mxu0 %v286
  %v402 = vpop.f32.mrf.mxu0
  %v403 = vadd.f32 0.0, %v402
  %404 = vmatmul.f32.gmra.mxu0 %v289
  %v405 = vpop.f32.mrf.mxu0
  %v406 = vadd.f32 0.0, %v405
  %407 = vmatmul.f32.gmra.mxu0 %v292
  %v408 = vpop.f32.mrf.mxu0
  %v409 = vadd.f32 0.0, %v408
  %410 = vmatmul.f32.gmra.mxu0 %v295
  %v411 = vpop.f32.mrf.mxu0
  %v412 = vadd.f32 0.0, %v411
  %413 = vmatmul.f32.gmra.mxu0 %v298
  %v414 = vpop.f32.mrf.mxu0
  %v415 = vadd.f32 0.0, %v414
  %416 = vmatmul.f32.gmra.mxu0 %v301
  %v417 = vpop.f32.mrf.mxu0
  %v418 = vadd.f32 0.0, %v417
  %419 = vmatmul.f32.gmra.mxu0 %v304
  %v420 = vpop.f32.mrf.mxu0
  %v421 = vadd.f32 0.0, %v420
  %422 = vmatmul.f32.gmra.mxu0 %v307
  %v423 = vpop.f32.mrf.mxu0
  %v424 = vadd.f32 0.0, %v423
  %425 = vmatmul.f32.gmra.mxu0 %v310
  %v426 = vpop.f32.mrf.mxu0
  %v427 = vadd.f32 0.0, %v426
  %428 = vmatmul.f32.gmra.mxu0 %v313
  %v429 = vpop.f32.mrf.mxu0
  %v430 = vadd.f32 0.0, %v429
  %431 = vmatmul.f32.gmra.mxu0 %v316
  %v432 = vpop.f32.mrf.mxu0
  %v433 = vadd.f32 0.0, %v432
  %434 = vmatmul.f32.gmra.mxu0 %v319
  %v435 = vpop.f32.mrf.mxu0
  %v436 = vadd.f32 0.0, %v435
  %437 = vmatmul.f32.gmra.mxu0 %v322
  %v438 = vpop.f32.mrf.mxu0
  %v439 = vadd.f32 0.0, %v438
  %440 = vmatmul.f32.gmra.mxu0 %v325
  %v441 = vpop.f32.mrf.mxu0
  %v442 = vadd.f32 0.0, %v441
  %443 = vmatmul.f32.gmra.mxu0 %v328
  %v444 = vpop.f32.mrf.mxu0
  %v445 = vadd.f32 0.0, %v444
  %446 = vmatmul.f32.gmra.mxu0 %v331
  %v447 = vpop.f32.mrf.mxu0
  %v448 = vadd.f32 0.0, %v447
  %449 = vmatmul.f32.gmra.mxu0 %v334
  %v450 = vpop.f32.mrf.mxu0
  %v451 = vadd.f32 0.0, %v450
  %452 = vmatmul.f32.gmra.mxu0 %v337
  %v453 = vpop.f32.mrf.mxu0
  %v454 = vadd.f32 0.0, %v453
  %455 = vmatmul.f32.gmra.mxu0 %v340
  %v456 = vpop.f32.mrf.mxu0
  %v457 = vadd.f32 0.0, %v456
  %458 = vmatmul.f32.gmra.mxu0 %v343
  %v459 = vpop.f32.mrf.mxu0
  %v460 = vadd.f32 0.0, %v459
  %461 = vmatmul.f32.gmra.mxu0 %v346
  %v462 = vpop.f32.mrf.mxu0
  %v463 = vadd.f32 0.0, %v462
  %464 = vmatmul.f32.gmra.mxu0 %v349
  %v465 = vpop.f32.mrf.mxu0
  %v466 = vadd.f32 0.0, %v465
  %467 = vmatmul.f32.gmra.mxu0 %v352
  %v468 = vpop.f32.mrf.mxu0
  %v469 = vadd.f32 0.0, %v468
  %470 = vdwg.mxu0
  %v472 = vsel %vm14, %v191, 0
  %v475 = vsel %vm14, %v192, 0
  %v478 = vsel %vm14, %v193, 0
  %v481 = vsel %vm14, %v194, 0
  %v484 = vsel %vm14, %v195, 0
  %v487 = vsel %vm14, %v196, 0
  %v490 = vsel %vm14, %v197, 0
  %v493 = vsel %vm14, %v198, 0
  %v496 = vsel %vm14, %v199, 0
  %v499 = vsel %vm14, %v200, 0
  %v502 = vsel %vm14, %v201, 0
  %v505 = vsel %vm14, %v202, 0
  %v508 = vsel %vm14, %v203, 0
  %v511 = vsel %vm14, %v204, 0
  %v514 = vsel %vm14, %v205, 0
  %v517 = vsel %vm14, %v206, 0
  %v520 = vsel %vm14, %v207, 0
  %v523 = vsel %vm14, %v208, 0
  %v526 = vsel %vm14, %v209, 0
  %v529 = vsel %vm14, %v210, 0
  %v532 = vsel %vm14, %v211, 0
  %v535 = vsel %vm14, %v212, 0
  %v538 = vsel %vm14, %v213, 0
  %v541 = vsel %vm14, %v214, 0
  %v544 = vsel %vm14, %v215, 0
  %v547 = vsel %vm14, %v216, 0
  %v550 = vsel %vm14, %v217, 0
  %v553 = vsel %vm14, %v218, 0
  %v556 = vsel %vm14, %v219, 0
  %v559 = vsel %vm14, %v220, 0
  %v562 = vsel %vm14, %v221, 0
  %v565 = vsel %vm14, %v222, 0
  %v568 = vsel %vm354, %v223, 0
  %570 = vmatpush.msra.mxu0 0.0
  %571 = vmatpush.msra.mxu0 0.0
  %572 = vmatpush.msra.mxu0 0.0
  %573 = vmatpush.msra.mxu0 0.0
  %574 = vmatpush.msra.mxu0 0.0
  %575 = vmatpush.msra.mxu0 0.0
  %576 = vmatpush.msra.mxu0 0.0
  %577 = vmatpush.msra.mxu0 0.0
  %578 = vmatpush.msra.mxu0 0.0
  %579 = vmatpush.msra.mxu0 0.0
  %580 = vmatpush.msra.mxu0 0.0
  %581 = vmatpush.msra.mxu0 0.0
  %582 = vmatpush.msra.mxu0 0.0
  %583 = vmatpush.msra.mxu0 0.0
  %584 = vmatpush.msra.mxu0 0.0
  %585 = vmatpush.msra.mxu0 %v568
  %586 = vmatmul.f32.gmra.mxu0 %v472
  %v587 = vpop.f32.mrf.mxu0
  %v588 = vadd.f32 %v376, %v587
  %589 = vmatmul.f32.gmra.mxu0 %v475
  %v590 = vpop.f32.mrf.mxu0
  %v591 = vadd.f32 %v379, %v590
  %592 = vmatmul.f32.gmra.mxu0 %v478
  %v593 = vpop.f32.mrf.mxu0
  %v594 = vadd.f32 %v382, %v593
  %595 = vmatmul.f32.gmra.mxu0 %v481
  %v596 = vpop.f32.mrf.mxu0
  %v597 = vadd.f32 %v385, %v596
  %598 = vmatmul.f32.gmra.mxu0 %v484
  %v599 = vpop.f32.mrf.mxu0
  %v600 = vadd.f32 %v388, %v599
  %601 = vmatmul.f32.gmra.mxu0 %v487
  %v602 = vpop.f32.mrf.mxu0
  %v603 = vadd.f32 %v391, %v602
  %604 = vmatmul.f32.gmra.mxu0 %v490
  %v605 = vpop.f32.mrf.mxu0
  %v606 = vadd.f32 %v394, %v605
  %607 = vmatmul.f32.gmra.mxu0 %v493
  %v608 = vpop.f32.mrf.mxu0
  %v609 = vadd.f32 %v397, %v608
  %610 = vmatmul.f32.gmra.mxu0 %v496
  %v611 = vpop.f32.mrf.mxu0
  %v612 = vadd.f32 %v400, %v611
  %613 = vmatmul.f32.gmra.mxu0 %v499
  %v614 = vpop.f32.mrf.mxu0
  %v615 = vadd.f32 %v403, %v614
  %616 = vmatmul.f32.gmra.mxu0 %v502
  %v617 = vpop.f32.mrf.mxu0
  %v618 = vadd.f32 %v406, %v617
  %619 = vmatmul.f32.gmra.mxu0 %v505
  %v620 = vpop.f32.mrf.mxu0
  %v621 = vadd.f32 %v409, %v620
  %622 = vmatmul.f32.gmra.mxu0 %v508
  %v623 = vpop.f32.mrf.mxu0
  %v624 = vadd.f32 %v412, %v623
  %625 = vmatmul.f32.gmra.mxu0 %v511
  %v626 = vpop.f32.mrf.mxu0
  %v627 = vadd.f32 %v415, %v626
  %628 = vmatmul.f32.gmra.mxu0 %v514
  %v629 = vpop.f32.mrf.mxu0
  %v630 = vadd.f32 %v418, %v629
  %631 = vmatmul.f32.gmra.mxu0 %v517
  %v632 = vpop.f32.mrf.mxu0
  %v633 = vadd.f32 %v421, %v632
  %634 = vmatmul.f32.gmra.mxu0 %v520
  %v635 = vpop.f32.mrf.mxu0
  %v636 = vadd.f32 %v424, %v635
  %637 = vmatmul.f32.gmra.mxu0 %v523
  %v638 = vpop.f32.mrf.mxu0
  %v639 = vadd.f32 %v427, %v638
  %640 = vmatmul.f32.gmra.mxu0 %v526
  %v641 = vpop.f32.mrf.mxu0
  %v642 = vadd.f32 %v430, %v641
  %643 = vmatmul.f32.gmra.mxu0 %v529
  %v644 = vpop.f32.mrf.mxu0
  %v645 = vadd.f32 %v433, %v644
  %646 = vmatmul.f32.gmra.mxu0 %v532
  %v647 = vpop.f32.mrf.mxu0
  %v648 = vadd.f32 %v436, %v647
  %649 = vmatmul.f32.gmra.mxu0 %v535
  %v650 = vpop.f32.mrf.mxu0
  %v651 = vadd.f32 %v439, %v650
  %652 = vmatmul.f32.gmra.mxu0 %v538
  %v653 = vpop.f32.mrf.mxu0
  %v654 = vadd.f32 %v442, %v653
  %655 = vmatmul.f32.gmra.mxu0 %v541
  %v656 = vpop.f32.mrf.mxu0
  %v657 = vadd.f32 %v445, %v656
  %658 = vmatmul.f32.gmra.mxu0 %v544
  %v659 = vpop.f32.mrf.mxu0
  %v660 = vadd.f32 %v448, %v659
  %661 = vmatmul.f32.gmra.mxu0 %v547
  %v662 = vpop.f32.mrf.mxu0
  %v663 = vadd.f32 %v451, %v662
  %664 = vmatmul.f32.gmra.mxu0 %v550
  %v665 = vpop.f32.mrf.mxu0
  %v666 = vadd.f32 %v454, %v665
  %667 = vmatmul.f32.gmra.mxu0 %v553
  %v668 = vpop.f32.mrf.mxu0
  %v669 = vadd.f32 %v457, %v668
  %670 = vmatmul.f32.gmra.mxu0 %v556
  %v671 = vpop.f32.mrf.mxu0
  %v672 = vadd.f32 %v460, %v671
  %673 = vmatmul.f32.gmra.mxu0 %v559
  %v674 = vpop.f32.mrf.mxu0
  %v675 = vadd.f32 %v463, %v674
  %676 = vmatmul.f32.gmra.mxu0 %v562
  %v677 = vpop.f32.mrf.mxu0
  %v678 = vadd.f32 %v466, %v677
  %679 = vmatmul.f32.gmra.mxu0 %v565
  %v680 = vpop.f32.mrf.mxu0
  %v681 = vadd.f32 %v469, %v680
  %682 = vdwg.mxu0
  %v683 = vld [vmem:[#allocation2 + $0x2] sm:$0xff]
  %v684 = vld [vmem:[#allocation2 + $0xa] sm:$0xff]
  %v685 = vld [vmem:[#allocation2 + $0x1a] sm:$0xff]
  %v686 = vld [vmem:[#allocation2 + $0x22] sm:$0xff]
  %v687 = vld [vmem:[#allocation2 + $0x32] sm:$0xff]
  %v688 = vld [vmem:[#allocation2 + $0x3a] sm:$0xff]
  %v689 = vld [vmem:[#allocation2 + $0x4a] sm:$0xff]
  %v690 = vld [vmem:[#allocation2 + $0x52] sm:$0xff]
  %v691 = vld [vmem:[#allocation2 + $0x62] sm:$0xff]
  %v692 = vld [vmem:[#allocation2 + $0x6a] sm:$0xff]
  %v693 = vld [vmem:[#allocation2 + $0x7a] sm:$0xff]
  %v694 = vld [vmem:[#allocation2 + $0x82] sm:$0xff]
  %v695 = vld [vmem:[#allocation2 + $0x92] sm:$0xff]
  %v696 = vld [vmem:[#allocation2 + $0x9a] sm:$0xff]
  %v697 = vld [vmem:[#allocation2 + $0xaa] sm:$0xff]
  %v698 = vld [vmem:[#allocation2 + $0xb2] sm:$0xff]
  %v699 = vld [vmem:[#allocation2 + $0xc2] sm:$0xff]
  %v700 = vld [vmem:[#allocation2 + $0xca] sm:$0xff]
  %v701 = vld [vmem:[#allocation2 + $0xda] sm:$0xff]
  %v702 = vld [vmem:[#allocation2 + $0xe2] sm:$0xff]
  %v703 = vld [vmem:[#allocation2 + $0xf2] sm:$0xff]
  %v704 = vld [vmem:[#allocation2 + $0xfa] sm:$0xff]
  %v705 = vld [vmem:[#allocation2 + $0x10a] sm:$0xff]
  %v706 = vld [vmem:[#allocation2 + $0x112] sm:$0xff]
  %v707 = vld [vmem:[#allocation2 + $0x122] sm:$0xff]
  %v708 = vld [vmem:[#allocation2 + $0x12a] sm:$0xff]
  %v709 = vld [vmem:[#allocation2 + $0x13a] sm:$0xff]
  %v710 = vld [vmem:[#allocation2 + $0x142] sm:$0xff]
  %v711 = vld [vmem:[#allocation2 + $0x152] sm:$0xff]
  %v712 = vld [vmem:[#allocation2 + $0x15a] sm:$0xff]
  %v713 = vld [vmem:[#allocation2 + $0x16a] sm:$0xff]
  %v714 = vld [vmem:[#allocation2 + $0x172] sm:$0xff]
  %s715 = scalar_lea.vmem %s1, 8
  %v716 = vld [vmem:[%s715] sm:$0x7]
  %v718 = vsel %vm14, %v683, 0
  %v721 = vsel %vm14, %v684, 0
  %v724 = vsel %vm14, %v685, 0
  %v727 = vsel %vm14, %v686, 0
  %v730 = vsel %vm14, %v687, 0
  %v733 = vsel %vm14, %v688, 0
  %v736 = vsel %vm14, %v689, 0
  %v739 = vsel %vm14, %v690, 0
  %v742 = vsel %vm14, %v691, 0
  %v745 = vsel %vm14, %v692, 0
  %v748 = vsel %vm14, %v693, 0
  %v751 = vsel %vm14, %v694, 0
  %v754 = vsel %vm14, %v695, 0
  %v757 = vsel %vm14, %v696, 0
  %v760 = vsel %vm14, %v697, 0
  %v763 = vsel %vm14, %v698, 0
  %v766 = vsel %vm14, %v699, 0
  %v769 = vsel %vm14, %v700, 0
  %v772 = vsel %vm14, %v701, 0
  %v775 = vsel %vm14, %v702, 0
  %v778 = vsel %vm14, %v703, 0
  %v781 = vsel %vm14, %v704, 0
  %v784 = vsel %vm14, %v705, 0
  %v787 = vsel %vm14, %v706, 0
  %v790 = vsel %vm14, %v707, 0
  %v793 = vsel %vm14, %v708, 0
  %v796 = vsel %vm14, %v709, 0
  %v799 = vsel %vm14, %v710, 0
  %v802 = vsel %vm14, %v711, 0
  %v805 = vsel %vm14, %v712, 0
  %v808 = vsel %vm14, %v713, 0
  %v811 = vsel %vm14, %v714, 0
  %v814 = vsel %vm354, %v716, 0
  %816 = vmatpush.msra.mxu0 0.0
  %817 = vmatpush.msra.mxu0 0.0
  %818 = vmatpush.msra.mxu0 0.0
  %819 = vmatpush.msra.mxu0 0.0
  %820 = vmatpush.msra.mxu0 0.0
  %821 = vmatpush.msra.mxu0 0.0
  %822 = vmatpush.msra.mxu0 0.0
  %823 = vmatpush.msra.mxu0 0.0
  %824 = vmatpush.msra.mxu0 0.0
  %825 = vmatpush.msra.mxu0 0.0
  %826 = vmatpush.msra.mxu0 0.0
  %827 = vmatpush.msra.mxu0 0.0
  %828 = vmatpush.msra.mxu0 0.0
  %829 = vmatpush.msra.mxu0 0.0
  %830 = vmatpush.msra.mxu0 0.0
  %831 = vmatpush.msra.mxu0 %v814
  %832 = vmatmul.f32.gmra.mxu0 %v718
  %v833 = vpop.f32.mrf.mxu0
  %v834 = vadd.f32 0.0, %v833
  %835 = vmatmul.f32.gmra.mxu0 %v721
  %v836 = vpop.f32.mrf.mxu0
  %v837 = vadd.f32 0.0, %v836
  %838 = vmatmul.f32.gmra.mxu0 %v724
  %v839 = vpop.f32.mrf.mxu0
  %v840 = vadd.f32 0.0, %v839
  %841 = vmatmul.f32.gmra.mxu0 %v727
  %v842 = vpop.f32.mrf.mxu0
  %v843 = vadd.f32 0.0, %v842
  %844 = vmatmul.f32.gmra.mxu0 %v730
  %v845 = vpop.f32.mrf.mxu0
  %v846 = vadd.f32 0.0, %v845
  %847 = vmatmul.f32.gmra.mxu0 %v733
  %v848 = vpop.f32.mrf.mxu0
  %v849 = vadd.f32 0.0, %v848
  %850 = vmatmul.f32.gmra.mxu0 %v736
  %v851 = vpop.f32.mrf.mxu0
  %v852 = vadd.f32 0.0, %v851
  %853 = vmatmul.f32.gmra.mxu0 %v739
  %v854 = vpop.f32.mrf.mxu0
  %v855 = vadd.f32 0.0, %v854
  %856 = vmatmul.f32.gmra.mxu0 %v742
  %v857 = vpop.f32.mrf.mxu0
  %v858 = vadd.f32 0.0, %v857
  %859 = vmatmul.f32.gmra.mxu0 %v745
  %v860 = vpop.f32.mrf.mxu0
  %v861 = vadd.f32 0.0, %v860
  %862 = vmatmul.f32.gmra.mxu0 %v748
  %v863 = vpop.f32.mrf.mxu0
  %v864 = vadd.f32 0.0, %v863
  %865 = vmatmul.f32.gmra.mxu0 %v751
  %v866 = vpop.f32.mrf.mxu0
  %v867 = vadd.f32 0.0, %v866
  %868 = vmatmul.f32.gmra.mxu0 %v754
  %v869 = vpop.f32.mrf.mxu0
  %v870 = vadd.f32 0.0, %v869
  %871 = vmatmul.f32.gmra.mxu0 %v757
  %v872 = vpop.f32.mrf.mxu0
  %v873 = vadd.f32 0.0, %v872
  %874 = vmatmul.f32.gmra.mxu0 %v760
  %v875 = vpop.f32.mrf.mxu0
  %v876 = vadd.f32 0.0, %v875
  %877 = vmatmul.f32.gmra.mxu0 %v763
  %v878 = vpop.f32.mrf.mxu0
  %v879 = vadd.f32 0.0, %v878
  %880 = vmatmul.f32.gmra.mxu0 %v766
  %v881 = vpop.f32.mrf.mxu0
  %v882 = vadd.f32 0.0, %v881
  %883 = vmatmul.f32.gmra.mxu0 %v769
  %v884 = vpop.f32.mrf.mxu0
  %v885 = vadd.f32 0.0, %v884
  %886 = vmatmul.f32.gmra.mxu0 %v772
  %v887 = vpop.f32.mrf.mxu0
  %v888 = vadd.f32 0.0, %v887
  %889 = vmatmul.f32.gmra.mxu0 %v775
  %v890 = vpop.f32.mrf.mxu0
  %v891 = vadd.f32 0.0, %v890
  %892 = vmatmul.f32.gmra.mxu0 %v778
  %v893 = vpop.f32.mrf.mxu0
  %v894 = vadd.f32 0.0, %v893
  %895 = vmatmul.f32.gmra.mxu0 %v781
  %v896 = vpop.f32.mrf.mxu0
  %v897 = vadd.f32 0.0, %v896
  %898 = vmatmul.f32.gmra.mxu0 %v784
  %v899 = vpop.f32.mrf.mxu0
  %v900 = vadd.f32 0.0, %v899
  %901 = vmatmul.f32.gmra.mxu0 %v787
  %v902 = vpop.f32.mrf.mxu0
  %v903 = vadd.f32 0.0, %v902
  %904 = vmatmul.f32.gmra.mxu0 %v790
  %v905 = vpop.f32.mrf.mxu0
  %v906 = vadd.f32 0.0, %v905
  %907 = vmatmul.f32.gmra.mxu0 %v793
  %v908 = vpop.f32.mrf.mxu0
  %v909 = vadd.f32 0.0, %v908
  %910 = vmatmul.f32.gmra.mxu0 %v796
  %v911 = vpop.f32.mrf.mxu0
  %v912 = vadd.f32 0.0, %v911
  %913 = vmatmul.f32.gmra.mxu0 %v799
  %v914 = vpop.f32.mrf.mxu0
  %v915 = vadd.f32 0.0, %v914
  %916 = vmatmul.f32.gmra.mxu0 %v802
  %v917 = vpop.f32.mrf.mxu0
  %v918 = vadd.f32 0.0, %v917
  %919 = vmatmul.f32.gmra.mxu0 %v805
  %v920 = vpop.f32.mrf.mxu0
  %v921 = vadd.f32 0.0, %v920
  %922 = vmatmul.f32.gmra.mxu0 %v808
  %v923 = vpop.f32.mrf.mxu0
  %v924 = vadd.f32 0.0, %v923
  %925 = vmatmul.f32.gmra.mxu0 %v811
  %v926 = vpop.f32.mrf.mxu0
  %v927 = vadd.f32 0.0, %v926
  %928 = vdwg.mxu0
  %v929 = vadd.f32 %v588, %v834
  %v930 = vadd.f32 %v591, %v837
  %v931 = vadd.f32 %v594, %v840
  %v932 = vadd.f32 %v597, %v843
  %v933 = vadd.f32 %v600, %v846
  %v934 = vadd.f32 %v603, %v849
  %v935 = vadd.f32 %v606, %v852
  %v936 = vadd.f32 %v609, %v855
  %v937 = vadd.f32 %v612, %v858
  %v938 = vadd.f32 %v615, %v861
  %v939 = vadd.f32 %v618, %v864
  %v940 = vadd.f32 %v621, %v867
  %v941 = vadd.f32 %v624, %v870
  %v942 = vadd.f32 %v627, %v873
  %v943 = vadd.f32 %v630, %v876
  %v944 = vadd.f32 %v633, %v879
  %v945 = vadd.f32 %v636, %v882
  %v946 = vadd.f32 %v639, %v885
  %v947 = vadd.f32 %v642, %v888
  %v948 = vadd.f32 %v645, %v891
  %v949 = vadd.f32 %v648, %v894
  %v950 = vadd.f32 %v651, %v897
  %v951 = vadd.f32 %v654, %v900
  %v952 = vadd.f32 %v657, %v903
  %v953 = vadd.f32 %v660, %v906
  %v954 = vadd.f32 %v663, %v909
  %v955 = vadd.f32 %v666, %v912
  %v956 = vadd.f32 %v669, %v915
  %v957 = vadd.f32 %v672, %v918
  %v958 = vadd.f32 %v675, %v921
  %v959 = vadd.f32 %v678, %v924
  %v960 = vadd.f32 %v681, %v927
  %v961 = vld [vmem:[%s158] sm:$0xff]
  %v962 = vld [vmem:[%s158 + $0x8] sm:$0xff]
  %v963 = vld [vmem:[%s158 + $0x18] sm:$0xff]
  %v964 = vld [vmem:[%s158 + $0x20] sm:$0xff]
  %v965 = vld [vmem:[%s158 + $0x30] sm:$0xff]
  %v966 = vld [vmem:[%s158 + $0x38] sm:$0xff]
  %v967 = vld [vmem:[%s158 + $0x48] sm:$0xff]
  %v968 = vld [vmem:[%s158 + $0x50] sm:$0xff]
  %v969 = vld [vmem:[%s158 + $0x60] sm:$0xff]
  %v970 = vld [vmem:[%s158 + $0x68] sm:$0xff]
  %v971 = vld [vmem:[%s158 + $0x78] sm:$0xff]
  %v972 = vld [vmem:[%s158 + $0x80] sm:$0xff]
  %v973 = vld [vmem:[%s158 + $0x90] sm:$0xff]
  %v974 = vld [vmem:[%s158 + $0x98] sm:$0xff]
  %v975 = vld [vmem:[%s158 + $0xa8] sm:$0xff]
  %v976 = vld [vmem:[%s158 + $0xb0] sm:$0xff]
  %v977 = vld [vmem:[%s158 + $0xc0] sm:$0xff]
  %v978 = vld [vmem:[%s158 + $0xc8] sm:$0xff]
  %v979 = vld [vmem:[%s158 + $0xd8] sm:$0xff]
  %v980 = vld [vmem:[%s158 + $0xe0] sm:$0xff]
  %v981 = vld [vmem:[%s158 + $0xf0] sm:$0xff]
  %v982 = vld [vmem:[%s158 + $0xf8] sm:$0xff]
  %v983 = vld [vmem:[%s158 + $0x108] sm:$0xff]
  %v984 = vld [vmem:[%s158 + $0x110] sm:$0xff]
  %v985 = vld [vmem:[%s158 + $0x120] sm:$0xff]
  %v986 = vld [vmem:[%s158 + $0x128] sm:$0xff]
  %v987 = vld [vmem:[%s158 + $0x138] sm:$0xff]
  %v988 = vld [vmem:[%s158 + $0x140] sm:$0xff]
  %v989 = vld [vmem:[%s158 + $0x150] sm:$0xff]
  %v990 = vld [vmem:[%s158 + $0x158] sm:$0xff]
  %v991 = vld [vmem:[%s158 + $0x168] sm:$0xff]
  %v992 = vld [vmem:[%s158 + $0x170] sm:$0xff]
  %s993 = scalar_lea.vmem %s1, 12
  %v994 = vld [vmem:[%s993] sm:$0x7]
  %v996 = vsel %vm14, %v961, 0
  %v999 = vsel %vm14, %v962, 0
  %v1002 = vsel %vm14, %v963, 0
  %v1005 = vsel %vm14, %v964, 0
  %v1008 = vsel %vm14, %v965, 0
  %v1011 = vsel %vm14, %v966, 0
  %v1014 = vsel %vm14, %v967, 0
  %v1017 = vsel %vm14, %v968, 0
  %v1020 = vsel %vm14, %v969, 0
  %v1023 = vsel %vm14, %v970, 0
  %v1026 = vsel %vm14, %v971, 0
  %v1029 = vsel %vm14, %v972, 0
  %v1032 = vsel %vm14, %v973, 0
  %v1035 = vsel %vm14, %v974, 0
  %v1038 = vsel %vm14, %v975, 0
  %v1041 = vsel %vm14, %v976, 0
  %v1044 = vsel %vm14, %v977, 0
  %v1047 = vsel %vm14, %v978, 0
  %v1050 = vsel %vm14, %v979, 0
  %v1053 = vsel %vm14, %v980, 0
  %v1056 = vsel %vm14, %v981, 0
  %v1059 = vsel %vm14, %v982, 0
  %v1062 = vsel %vm14, %v983, 0
  %v1065 = vsel %vm14, %v984, 0
  %v1068 = vsel %vm14, %v985, 0
  %v1071 = vsel %vm14, %v986, 0
  %v1074 = vsel %vm14, %v987, 0
  %v1077 = vsel %vm14, %v988, 0
  %v1080 = vsel %vm14, %v989, 0
  %v1083 = vsel %vm14, %v990, 0
  %v1086 = vsel %vm14, %v991, 0
  %v1089 = vsel %vm14, %v992, 0
  %v1092 = vsel %vm354, %v994, 0
  %1094 = vmatpush.msra.mxu0 0.0
  %1095 = vmatpush.msra.mxu0 0.0
  %1096 = vmatpush.msra.mxu0 0.0
  %1097 = vmatpush.msra.mxu0 0.0
  %1098 = vmatpush.msra.mxu0 0.0
  %1099 = vmatpush.msra.mxu0 0.0
  %1100 = vmatpush.msra.mxu0 0.0
  %1101 = vmatpush.msra.mxu0 0.0
  %1102 = vmatpush.msra.mxu0 0.0
  %1103 = vmatpush.msra.mxu0 0.0
  %1104 = vmatpush.msra.mxu0 0.0
  %1105 = vmatpush.msra.mxu0 0.0
  %1106 = vmatpush.msra.mxu0 0.0
  %1107 = vmatpush.msra.mxu0 0.0
  %1108 = vmatpush.msra.mxu0 0.0
  %1109 = vmatpush.msra.mxu0 %v1092
  %1110 = vmatmul.f32.gmra.mxu0 %v996
  %v1111 = vpop.f32.mrf.mxu0
  %v1112 = vadd.f32 0.0, %v1111
  %1113 = vmatmul.f32.gmra.mxu0 %v999
  %v1114 = vpop.f32.mrf.mxu0
  %v1115 = vadd.f32 0.0, %v1114
  %1116 = vmatmul.f32.gmra.mxu0 %v1002
  %v1117 = vpop.f32.mrf.mxu0
  %v1118 = vadd.f32 0.0, %v1117
  %1119 = vmatmul.f32.gmra.mxu0 %v1005
  %v1120 = vpop.f32.mrf.mxu0
  %v1121 = vadd.f32 0.0, %v1120
  %1122 = vmatmul.f32.gmra.mxu0 %v1008
  %v1123 = vpop.f32.mrf.mxu0
  %v1124 = vadd.f32 0.0, %v1123
  %1125 = vmatmul.f32.gmra.mxu0 %v1011
  %v1126 = vpop.f32.mrf.mxu0
  %v1127 = vadd.f32 0.0, %v1126
  %1128 = vmatmul.f32.gmra.mxu0 %v1014
  %v1129 = vpop.f32.mrf.mxu0
  %v1130 = vadd.f32 0.0, %v1129
  %1131 = vmatmul.f32.gmra.mxu0 %v1017
  %v1132 = vpop.f32.mrf.mxu0
  %v1133 = vadd.f32 0.0, %v1132
  %1134 = vmatmul.f32.gmra.mxu0 %v1020
  %v1135 = vpop.f32.mrf.mxu0
  %v1136 = vadd.f32 0.0, %v1135
  %1137 = vmatmul.f32.gmra.mxu0 %v1023
  %v1138 = vpop.f32.mrf.mxu0
  %v1139 = vadd.f32 0.0, %v1138
  %1140 = vmatmul.f32.gmra.mxu0 %v1026
  %v1141 = vpop.f32.mrf.mxu0
  %v1142 = vadd.f32 0.0, %v1141
  %1143 = vmatmul.f32.gmra.mxu0 %v1029
  %v1144 = vpop.f32.mrf.mxu0
  %v1145 = vadd.f32 0.0, %v1144
  %1146 = vmatmul.f32.gmra.mxu0 %v1032
  %v1147 = vpop.f32.mrf.mxu0
  %v1148 = vadd.f32 0.0, %v1147
  %1149 = vmatmul.f32.gmra.mxu0 %v1035
  %v1150 = vpop.f32.mrf.mxu0
  %v1151 = vadd.f32 0.0, %v1150
  %1152 = vmatmul.f32.gmra.mxu0 %v1038
  %v1153 = vpop.f32.mrf.mxu0
  %v1154 = vadd.f32 0.0, %v1153
  %1155 = vmatmul.f32.gmra.mxu0 %v1041
  %v1156 = vpop.f32.mrf.mxu0
  %v1157 = vadd.f32 0.0, %v1156
  %1158 = vmatmul.f32.gmra.mxu0 %v1044
  %v1159 = vpop.f32.mrf.mxu0
  %v1160 = vadd.f32 0.0, %v1159
  %1161 = vmatmul.f32.gmra.mxu0 %v1047
  %v1162 = vpop.f32.mrf.mxu0
  %v1163 = vadd.f32 0.0, %v1162
  %1164 = vmatmul.f32.gmra.mxu0 %v1050
  %v1165 = vpop.f32.mrf.mxu0
  %v1166 = vadd.f32 0.0, %v1165
  %1167 = vmatmul.f32.gmra.mxu0 %v1053
  %v1168 = vpop.f32.mrf.mxu0
  %v1169 = vadd.f32 0.0, %v1168
  %1170 = vmatmul.f32.gmra.mxu0 %v1056
  %v1171 = vpop.f32.mrf.mxu0
  %v1172 = vadd.f32 0.0, %v1171
  %1173 = vmatmul.f32.gmra.mxu0 %v1059
  %v1174 = vpop.f32.mrf.mxu0
  %v1175 = vadd.f32 0.0, %v1174
  %1176 = vmatmul.f32.gmra.mxu0 %v1062
  %v1177 = vpop.f32.mrf.mxu0
  %v1178 = vadd.f32 0.0, %v1177
  %1179 = vmatmul.f32.gmra.mxu0 %v1065
  %v1180 = vpop.f32.mrf.mxu0
  %v1181 = vadd.f32 0.0, %v1180
  %1182 = vmatmul.f32.gmra.mxu0 %v1068
  %v1183 = vpop.f32.mrf.mxu0
  %v1184 = vadd.f32 0.0, %v1183
  %1185 = vmatmul.f32.gmra.mxu0 %v1071
  %v1186 = vpop.f32.mrf.mxu0
  %v1187 = vadd.f32 0.0, %v1186
  %1188 = vmatmul.f32.gmra.mxu0 %v1074
  %v1189 = vpop.f32.mrf.mxu0
  %v1190 = vadd.f32 0.0, %v1189
  %1191 = vmatmul.f32.gmra.mxu0 %v1077
  %v1192 = vpop.f32.mrf.mxu0
  %v1193 = vadd.f32 0.0, %v1192
  %1194 = vmatmul.f32.gmra.mxu0 %v1080
  %v1195 = vpop.f32.mrf.mxu0
  %v1196 = vadd.f32 0.0, %v1195
  %1197 = vmatmul.f32.gmra.mxu0 %v1083
  %v1198 = vpop.f32.mrf.mxu0
  %v1199 = vadd.f32 0.0, %v1198
  %1200 = vmatmul.f32.gmra.mxu0 %v1086
  %v1201 = vpop.f32.mrf.mxu0
  %v1202 = vadd.f32 0.0, %v1201
  %1203 = vmatmul.f32.gmra.mxu0 %v1089
  %v1204 = vpop.f32.mrf.mxu0
  %v1205 = vadd.f32 0.0, %v1204
  %1206 = vdwg.mxu0
  %v1207 = vadd.f32 %v929, %v1112
  %v1208 = vadd.f32 %v930, %v1115
  %v1209 = vadd.f32 %v931, %v1118
  %v1210 = vadd.f32 %v932, %v1121
  %v1211 = vadd.f32 %v933, %v1124
  %v1212 = vadd.f32 %v934, %v1127
  %v1213 = vadd.f32 %v935, %v1130
  %v1214 = vadd.f32 %v936, %v1133
  %v1215 = vadd.f32 %v937, %v1136
  %v1216 = vadd.f32 %v938, %v1139
  %v1217 = vadd.f32 %v939, %v1142
  %v1218 = vadd.f32 %v940, %v1145
  %v1219 = vadd.f32 %v941, %v1148
  %v1220 = vadd.f32 %v942, %v1151
  %v1221 = vadd.f32 %v943, %v1154
  %v1222 = vadd.f32 %v944, %v1157
  %v1223 = vadd.f32 %v945, %v1160
  %v1224 = vadd.f32 %v946, %v1163
  %v1225 = vadd.f32 %v947, %v1166
  %v1226 = vadd.f32 %v948, %v1169
  %v1227 = vadd.f32 %v949, %v1172
  %v1228 = vadd.f32 %v950, %v1175
  %v1229 = vadd.f32 %v951, %v1178
  %v1230 = vadd.f32 %v952, %v1181
  %v1231 = vadd.f32 %v953, %v1184
  %v1232 = vadd.f32 %v954, %v1187
  %v1233 = vadd.f32 %v955, %v1190
  %v1234 = vadd.f32 %v956, %v1193
  %v1235 = vadd.f32 %v957, %v1196
  %v1236 = vadd.f32 %v958, %v1199
  %v1237 = vadd.f32 %v959, %v1202
  %v1238 = vadd.f32 %v960, %v1205
  %v1239 = vld [vmem:[%s158 + $0x1] sm:$0xff]
  %v1240 = vld [vmem:[%s158 + $0x9] sm:$0xff]
  %v1241 = vld [vmem:[%s158 + $0x19] sm:$0xff]
  %v1242 = vld [vmem:[%s158 + $0x21] sm:$0xff]
  %v1243 = vld [vmem:[%s158 + $0x31] sm:$0xff]
  %v1244 = vld [vmem:[%s158 + $0x39] sm:$0xff]
  %v1245 = vld [vmem:[%s158 + $0x49] sm:$0xff]
  %v1246 = vld [vmem:[%s158 + $0x51] sm:$0xff]
  %v1247 = vld [vmem:[%s158 + $0x61] sm:$0xff]
  %v1248 = vld [vmem:[%s158 + $0x69] sm:$0xff]
  %v1249 = vld [vmem:[%s158 + $0x79] sm:$0xff]
  %v1250 = vld [vmem:[%s158 + $0x81] sm:$0xff]
  %v1251 = vld [vmem:[%s158 + $0x91] sm:$0xff]
  %v1252 = vld [vmem:[%s158 + $0x99] sm:$0xff]
  %v1253 = vld [vmem:[%s158 + $0xa9] sm:$0xff]
  %v1254 = vld [vmem:[%s158 + $0xb1] sm:$0xff]
  %v1255 = vld [vmem:[%s158 + $0xc1] sm:$0xff]
  %v1256 = vld [vmem:[%s158 + $0xc9] sm:$0xff]
  %v1257 = vld [vmem:[%s158 + $0xd9] sm:$0xff]
  %v1258 = vld [vmem:[%s158 + $0xe1] sm:$0xff]
  %v1259 = vld [vmem:[%s158 + $0xf1] sm:$0xff]
  %v1260 = vld [vmem:[%s158 + $0xf9] sm:$0xff]
  %v1261 = vld [vmem:[%s158 + $0x109] sm:$0xff]
  %v1262 = vld [vmem:[%s158 + $0x111] sm:$0xff]
  %v1263 = vld [vmem:[%s158 + $0x121] sm:$0xff]
  %v1264 = vld [vmem:[%s158 + $0x129] sm:$0xff]
  %v1265 = vld [vmem:[%s158 + $0x139] sm:$0xff]
  %v1266 = vld [vmem:[%s158 + $0x141] sm:$0xff]
  %v1267 = vld [vmem:[%s158 + $0x151] sm:$0xff]
  %v1268 = vld [vmem:[%s158 + $0x159] sm:$0xff]
  %v1269 = vld [vmem:[%s158 + $0x169] sm:$0xff]
  %v1270 = vld [vmem:[%s158 + $0x171] sm:$0xff]
  %s1271 = scalar_lea.vmem %s1, 16
  %v1272 = vld [vmem:[%s1271] sm:$0x7]
  %v1274 = vsel %vm14, %v1239, 0
  %v1277 = vsel %vm14, %v1240, 0
  %v1280 = vsel %vm14, %v1241, 0
  %v1283 = vsel %vm14, %v1242, 0
  %v1286 = vsel %vm14, %v1243, 0
  %v1289 = vsel %vm14, %v1244, 0
  %v1292 = vsel %vm14, %v1245, 0
  %v1295 = vsel %vm14, %v1246, 0
  %v1298 = vsel %vm14, %v1247, 0
  %v1301 = vsel %vm14, %v1248, 0
  %v1304 = vsel %vm14, %v1249, 0
  %v1307 = vsel %vm14, %v1250, 0
  %v1310 = vsel %vm14, %v1251, 0
  %v1313 = vsel %vm14, %v1252, 0
  %v1316 = vsel %vm14, %v1253, 0
  %v1319 = vsel %vm14, %v1254, 0
  %v1322 = vsel %vm14, %v1255, 0
  %v1325 = vsel %vm14, %v1256, 0
  %v1328 = vsel %vm14, %v1257, 0
  %v1331 = vsel %vm14, %v1258, 0
  %v1334 = vsel %vm14, %v1259, 0
  %v1337 = vsel %vm14, %v1260, 0
  %v1340 = vsel %vm14, %v1261, 0
  %v1343 = vsel %vm14, %v1262, 0
  %v1346 = vsel %vm14, %v1263, 0
  %v1349 = vsel %vm14, %v1264, 0
  %v1352 = vsel %vm14, %v1265, 0
  %v1355 = vsel %vm14, %v1266, 0
  %v1358 = vsel %vm14, %v1267, 0
  %v1361 = vsel %vm14, %v1268, 0
  %v1364 = vsel %vm14, %v1269, 0
  %v1367 = vsel %vm14, %v1270, 0
  %v1370 = vsel %vm354, %v1272, 0
  %1372 = vmatpush.msra.mxu0 0.0
  %1373 = vmatpush.msra.mxu0 0.0
  %1374 = vmatpush.msra.mxu0 0.0
  %1375 = vmatpush.msra.mxu0 0.0
  %1376 = vmatpush.msra.mxu0 0.0
  %1377 = vmatpush.msra.mxu0 0.0
  %1378 = vmatpush.msra.mxu0 0.0
  %1379 = vmatpush.msra.mxu0 0.0
  %1380 = vmatpush.msra.mxu0 0.0
  %1381 = vmatpush.msra.mxu0 0.0
  %1382 = vmatpush.msra.mxu0 0.0
  %1383 = vmatpush.msra.mxu0 0.0
  %1384 = vmatpush.msra.mxu0 0.0
  %1385 = vmatpush.msra.mxu0 0.0
  %1386 = vmatpush.msra.mxu0 0.0
  %1387 = vmatpush.msra.mxu0 %v1370
  %1388 = vmatmul.f32.gmra.mxu0 %v1274
  %v1389 = vpop.f32.mrf.mxu0
  %v1390 = vadd.f32 0.0, %v1389
  %1391 = vmatmul.f32.gmra.mxu0 %v1277
  %v1392 = vpop.f32.mrf.mxu0
  %v1393 = vadd.f32 0.0, %v1392
  %1394 = vmatmul.f32.gmra.mxu0 %v1280
  %v1395 = vpop.f32.mrf.mxu0
  %v1396 = vadd.f32 0.0, %v1395
  %1397 = vmatmul.f32.gmra.mxu0 %v1283
  %v1398 = vpop.f32.mrf.mxu0
  %v1399 = vadd.f32 0.0, %v1398
  %1400 = vmatmul.f32.gmra.mxu0 %v1286
  %v1401 = vpop.f32.mrf.mxu0
  %v1402 = vadd.f32 0.0, %v1401
  %1403 = vmatmul.f32.gmra.mxu0 %v1289
  %v1404 = vpop.f32.mrf.mxu0
  %v1405 = vadd.f32 0.0, %v1404
  %1406 = vmatmul.f32.gmra.mxu0 %v1292
  %v1407 = vpop.f32.mrf.mxu0
  %v1408 = vadd.f32 0.0, %v1407
  %1409 = vmatmul.f32.gmra.mxu0 %v1295
  %v1410 = vpop.f32.mrf.mxu0
  %v1411 = vadd.f32 0.0, %v1410
  %1412 = vmatmul.f32.gmra.mxu0 %v1298
  %v1413 = vpop.f32.mrf.mxu0
  %v1414 = vadd.f32 0.0, %v1413
  %1415 = vmatmul.f32.gmra.mxu0 %v1301
  %v1416 = vpop.f32.mrf.mxu0
  %v1417 = vadd.f32 0.0, %v1416
  %1418 = vmatmul.f32.gmra.mxu0 %v1304
  %v1419 = vpop.f32.mrf.mxu0
  %v1420 = vadd.f32 0.0, %v1419
  %1421 = vmatmul.f32.gmra.mxu0 %v1307
  %v1422 = vpop.f32.mrf.mxu0
  %v1423 = vadd.f32 0.0, %v1422
  %1424 = vmatmul.f32.gmra.mxu0 %v1310
  %v1425 = vpop.f32.mrf.mxu0
  %v1426 = vadd.f32 0.0, %v1425
  %1427 = vmatmul.f32.gmra.mxu0 %v1313
  %v1428 = vpop.f32.mrf.mxu0
  %v1429 = vadd.f32 0.0, %v1428
  %1430 = vmatmul.f32.gmra.mxu0 %v1316
  %v1431 = vpop.f32.mrf.mxu0
  %v1432 = vadd.f32 0.0, %v1431
  %1433 = vmatmul.f32.gmra.mxu0 %v1319
  %v1434 = vpop.f32.mrf.mxu0
  %v1435 = vadd.f32 0.0, %v1434
  %1436 = vmatmul.f32.gmra.mxu0 %v1322
  %v1437 = vpop.f32.mrf.mxu0
  %v1438 = vadd.f32 0.0, %v1437
  %1439 = vmatmul.f32.gmra.mxu0 %v1325
  %v1440 = vpop.f32.mrf.mxu0
  %v1441 = vadd.f32 0.0, %v1440
  %1442 = vmatmul.f32.gmra.mxu0 %v1328
  %v1443 = vpop.f32.mrf.mxu0
  %v1444 = vadd.f32 0.0, %v1443
  %1445 = vmatmul.f32.gmra.mxu0 %v1331
  %v1446 = vpop.f32.mrf.mxu0
  %v1447 = vadd.f32 0.0, %v1446
  %1448 = vmatmul.f32.gmra.mxu0 %v1334
  %v1449 = vpop.f32.mrf.mxu0
  %v1450 = vadd.f32 0.0, %v1449
  %1451 = vmatmul.f32.gmra.mxu0 %v1337
  %v1452 = vpop.f32.mrf.mxu0
  %v1453 = vadd.f32 0.0, %v1452
  %1454 = vmatmul.f32.gmra.mxu0 %v1340
  %v1455 = vpop.f32.mrf.mxu0
  %v1456 = vadd.f32 0.0, %v1455
  %1457 = vmatmul.f32.gmra.mxu0 %v1343
  %v1458 = vpop.f32.mrf.mxu0
  %v1459 = vadd.f32 0.0, %v1458
  %1460 = vmatmul.f32.gmra.mxu0 %v1346
  %v1461 = vpop.f32.mrf.mxu0
  %v1462 = vadd.f32 0.0, %v1461
  %1463 = vmatmul.f32.gmra.mxu0 %v1349
  %v1464 = vpop.f32.mrf.mxu0
  %v1465 = vadd.f32 0.0, %v1464
  %1466 = vmatmul.f32.gmra.mxu0 %v1352
  %v1467 = vpop.f32.mrf.mxu0
  %v1468 = vadd.f32 0.0, %v1467
  %1469 = vmatmul.f32.gmra.mxu0 %v1355
  %v1470 = vpop.f32.mrf.mxu0
  %v1471 = vadd.f32 0.0, %v1470
  %1472 = vmatmul.f32.gmra.mxu0 %v1358
  %v1473 = vpop.f32.mrf.mxu0
  %v1474 = vadd.f32 0.0, %v1473
  %1475 = vmatmul.f32.gmra.mxu0 %v1361
  %v1476 = vpop.f32.mrf.mxu0
  %v1477 = vadd.f32 0.0, %v1476
  %1478 = vmatmul.f32.gmra.mxu0 %v1364
  %v1479 = vpop.f32.mrf.mxu0
  %v1480 = vadd.f32 0.0, %v1479
  %1481 = vmatmul.f32.gmra.mxu0 %v1367
  %v1482 = vpop.f32.mrf.mxu0
  %v1483 = vadd.f32 0.0, %v1482
  %1484 = vdwg.mxu0
  %v1485 = vadd.f32 %v1207, %v1390
  %v1486 = vadd.f32 %v1208, %v1393
  %v1487 = vadd.f32 %v1209, %v1396
  %v1488 = vadd.f32 %v1210, %v1399
  %v1489 = vadd.f32 %v1211, %v1402
  %v1490 = vadd.f32 %v1212, %v1405
  %v1491 = vadd.f32 %v1213, %v1408
  %v1492 = vadd.f32 %v1214, %v1411
  %v1493 = vadd.f32 %v1215, %v1414
  %v1494 = vadd.f32 %v1216, %v1417
  %v1495 = vadd.f32 %v1217, %v1420
  %v1496 = vadd.f32 %v1218, %v1423
  %v1497 = vadd.f32 %v1219, %v1426
  %v1498 = vadd.f32 %v1220, %v1429
  %v1499 = vadd.f32 %v1221, %v1432
  %v1500 = vadd.f32 %v1222, %v1435
  %v1501 = vadd.f32 %v1223, %v1438
  %v1502 = vadd.f32 %v1224, %v1441
  %v1503 = vadd.f32 %v1225, %v1444
  %v1504 = vadd.f32 %v1226, %v1447
  %v1505 = vadd.f32 %v1227, %v1450
  %v1506 = vadd.f32 %v1228, %v1453
  %v1507 = vadd.f32 %v1229, %v1456
  %v1508 = vadd.f32 %v1230, %v1459
  %v1509 = vadd.f32 %v1231, %v1462
  %v1510 = vadd.f32 %v1232, %v1465
  %v1511 = vadd.f32 %v1233, %v1468
  %v1512 = vadd.f32 %v1234, %v1471
  %v1513 = vadd.f32 %v1235, %v1474
  %v1514 = vadd.f32 %v1236, %v1477
  %v1515 = vadd.f32 %v1237, %v1480
  %v1516 = vadd.f32 %v1238, %v1483
  %v1517 = vld [vmem:[%s158 + $0x2] sm:$0xff]
  %v1518 = vld [vmem:[%s158 + $0xa] sm:$0xff]
  %v1519 = vld [vmem:[%s158 + $0x1a] sm:$0xff]
  %v1520 = vld [vmem:[%s158 + $0x22] sm:$0xff]
  %v1521 = vld [vmem:[%s158 + $0x32] sm:$0xff]
  %v1522 = vld [vmem:[%s158 + $0x3a] sm:$0xff]
  %v1523 = vld [vmem:[%s158 + $0x4a] sm:$0xff]
  %v1524 = vld [vmem:[%s158 + $0x52] sm:$0xff]
  %v1525 = vld [vmem:[%s158 + $0x62] sm:$0xff]
  %v1526 = vld [vmem:[%s158 + $0x6a] sm:$0xff]
  %v1527 = vld [vmem:[%s158 + $0x7a] sm:$0xff]
  %v1528 = vld [vmem:[%s158 + $0x82] sm:$0xff]
  %v1529 = vld [vmem:[%s158 + $0x92] sm:$0xff]
  %v1530 = vld [vmem:[%s158 + $0x9a] sm:$0xff]
  %v1531 = vld [vmem:[%s158 + $0xaa] sm:$0xff]
  %v1532 = vld [vmem:[%s158 + $0xb2] sm:$0xff]
  %v1533 = vld [vmem:[%s158 + $0xc2] sm:$0xff]
  %v1534 = vld [vmem:[%s158 + $0xca] sm:$0xff]
  %v1535 = vld [vmem:[%s158 + $0xda] sm:$0xff]
  %v1536 = vld [vmem:[%s158 + $0xe2] sm:$0xff]
  %v1537 = vld [vmem:[%s158 + $0xf2] sm:$0xff]
  %v1538 = vld [vmem:[%s158 + $0xfa] sm:$0xff]
  %v1539 = vld [vmem:[%s158 + $0x10a] sm:$0xff]
  %v1540 = vld [vmem:[%s158 + $0x112] sm:$0xff]
  %v1541 = vld [vmem:[%s158 + $0x122] sm:$0xff]
  %v1542 = vld [vmem:[%s158 + $0x12a] sm:$0xff]
  %v1543 = vld [vmem:[%s158 + $0x13a] sm:$0xff]
  %v1544 = vld [vmem:[%s158 + $0x142] sm:$0xff]
  %v1545 = vld [vmem:[%s158 + $0x152] sm:$0xff]
  %v1546 = vld [vmem:[%s158 + $0x15a] sm:$0xff]
  %v1547 = vld [vmem:[%s158 + $0x16a] sm:$0xff]
  %v1548 = vld [vmem:[%s158 + $0x172] sm:$0xff]
  %s1549 = scalar_lea.vmem %s1, 20
  %v1550 = vld [vmem:[%s1549] sm:$0x7]
  %v1552 = vsel %vm14, %v1517, 0
  %v1555 = vsel %vm14, %v1518, 0
  %v1558 = vsel %vm14, %v1519, 0
  %v1561 = vsel %vm14, %v1520, 0
  %v1564 = vsel %vm14, %v1521, 0
  %v1567 = vsel %vm14, %v1522, 0
  %v1570 = vsel %vm14, %v1523, 0
  %v1573 = vsel %vm14, %v1524, 0
  %v1576 = vsel %vm14, %v1525, 0
  %v1579 = vsel %vm14, %v1526, 0
  %v1582 = vsel %vm14, %v1527, 0
  %v1585 = vsel %vm14, %v1528, 0
  %v1588 = vsel %vm14, %v1529, 0
  %v1591 = vsel %vm14, %v1530, 0
  %v1594 = vsel %vm14, %v1531, 0
  %v1597 = vsel %vm14, %v1532, 0
  %v1600 = vsel %vm14, %v1533, 0
  %v1603 = vsel %vm14, %v1534, 0
  %v1606 = vsel %vm14, %v1535, 0
  %v1609 = vsel %vm14, %v1536, 0
  %v1612 = vsel %vm14, %v1537, 0
  %v1615 = vsel %vm14, %v1538, 0
  %v1618 = vsel %vm14, %v1539, 0
  %v1621 = vsel %vm14, %v1540, 0
  %v1624 = vsel %vm14, %v1541, 0
  %v1627 = vsel %vm14, %v1542, 0
  %v1630 = vsel %vm14, %v1543, 0
  %v1633 = vsel %vm14, %v1544, 0
  %v1636 = vsel %vm14, %v1545, 0
  %v1639 = vsel %vm14, %v1546, 0
  %v1642 = vsel %vm14, %v1547, 0
  %v1645 = vsel %vm14, %v1548, 0
  %v1648 = vsel %vm354, %v1550, 0
  %1650 = vmatpush.msra.mxu0 0.0
  %1651 = vmatpush.msra.mxu0 0.0
  %1652 = vmatpush.msra.mxu0 0.0
  %1653 = vmatpush.msra.mxu0 0.0
  %1654 = vmatpush.msra.mxu0 0.0
  %1655 = vmatpush.msra.mxu0 0.0
  %1656 = vmatpush.msra.mxu0 0.0
  %1657 = vmatpush.msra.mxu0 0.0
  %1658 = vmatpush.msra.mxu0 0.0
  %1659 = vmatpush.msra.mxu0 0.0
  %1660 = vmatpush.msra.mxu0 0.0
  %1661 = vmatpush.msra.mxu0 0.0
  %1662 = vmatpush.msra.mxu0 0.0
  %1663 = vmatpush.msra.mxu0 0.0
  %1664 = vmatpush.msra.mxu0 0.0
  %1665 = vmatpush.msra.mxu0 %v1648
  %1666 = vmatmul.f32.gmra.mxu0 %v1552
  %v1667 = vpop.f32.mrf.mxu0
  %v1668 = vadd.f32 0.0, %v1667
  %1669 = vmatmul.f32.gmra.mxu0 %v1555
  %v1670 = vpop.f32.mrf.mxu0
  %v1671 = vadd.f32 0.0, %v1670
  %1672 = vmatmul.f32.gmra.mxu0 %v1558
  %v1673 = vpop.f32.mrf.mxu0
  %v1674 = vadd.f32 0.0, %v1673
  %1675 = vmatmul.f32.gmra.mxu0 %v1561
  %v1676 = vpop.f32.mrf.mxu0
  %v1677 = vadd.f32 0.0, %v1676
  %1678 = vmatmul.f32.gmra.mxu0 %v1564
  %v1679 = vpop.f32.mrf.mxu0
  %v1680 = vadd.f32 0.0, %v1679
  %1681 = vmatmul.f32.gmra.mxu0 %v1567
  %v1682 = vpop.f32.mrf.mxu0
  %v1683 = vadd.f32 0.0, %v1682
  %1684 = vmatmul.f32.gmra.mxu0 %v1570
  %v1685 = vpop.f32.mrf.mxu0
  %v1686 = vadd.f32 0.0, %v1685
  %1687 = vmatmul.f32.gmra.mxu0 %v1573
  %v1688 = vpop.f32.mrf.mxu0
  %v1689 = vadd.f32 0.0, %v1688
  %1690 = vmatmul.f32.gmra.mxu0 %v1576
  %v1691 = vpop.f32.mrf.mxu0
  %v1692 = vadd.f32 0.0, %v1691
  %1693 = vmatmul.f32.gmra.mxu0 %v1579
  %v1694 = vpop.f32.mrf.mxu0
  %v1695 = vadd.f32 0.0, %v1694
  %1696 = vmatmul.f32.gmra.mxu0 %v1582
  %v1697 = vpop.f32.mrf.mxu0
  %v1698 = vadd.f32 0.0, %v1697
  %1699 = vmatmul.f32.gmra.mxu0 %v1585
  %v1700 = vpop.f32.mrf.mxu0
  %v1701 = vadd.f32 0.0, %v1700
  %1702 = vmatmul.f32.gmra.mxu0 %v1588
  %v1703 = vpop.f32.mrf.mxu0
  %v1704 = vadd.f32 0.0, %v1703
  %1705 = vmatmul.f32.gmra.mxu0 %v1591
  %v1706 = vpop.f32.mrf.mxu0
  %v1707 = vadd.f32 0.0, %v1706
  %1708 = vmatmul.f32.gmra.mxu0 %v1594
  %v1709 = vpop.f32.mrf.mxu0
  %v1710 = vadd.f32 0.0, %v1709
  %1711 = vmatmul.f32.gmra.mxu0 %v1597
  %v1712 = vpop.f32.mrf.mxu0
  %v1713 = vadd.f32 0.0, %v1712
  %1714 = vmatmul.f32.gmra.mxu0 %v1600
  %v1715 = vpop.f32.mrf.mxu0
  %v1716 = vadd.f32 0.0, %v1715
  %1717 = vmatmul.f32.gmra.mxu0 %v1603
  %v1718 = vpop.f32.mrf.mxu0
  %v1719 = vadd.f32 0.0, %v1718
  %1720 = vmatmul.f32.gmra.mxu0 %v1606
  %v1721 = vpop.f32.mrf.mxu0
  %v1722 = vadd.f32 0.0, %v1721
  %1723 = vmatmul.f32.gmra.mxu0 %v1609
  %v1724 = vpop.f32.mrf.mxu0
  %v1725 = vadd.f32 0.0, %v1724
  %1726 = vmatmul.f32.gmra.mxu0 %v1612
  %v1727 = vpop.f32.mrf.mxu0
  %v1728 = vadd.f32 0.0, %v1727
  %1729 = vmatmul.f32.gmra.mxu0 %v1615
  %v1730 = vpop.f32.mrf.mxu0
  %v1731 = vadd.f32 0.0, %v1730
  %1732 = vmatmul.f32.gmra.mxu0 %v1618
  %v1733 = vpop.f32.mrf.mxu0
  %v1734 = vadd.f32 0.0, %v1733
  %1735 = vmatmul.f32.gmra.mxu0 %v1621
  %v1736 = vpop.f32.mrf.mxu0
  %v1737 = vadd.f32 0.0, %v1736
  %1738 = vmatmul.f32.gmra.mxu0 %v1624
  %v1739 = vpop.f32.mrf.mxu0
  %v1740 = vadd.f32 0.0, %v1739
  %1741 = vmatmul.f32.gmra.mxu0 %v1627
  %v1742 = vpop.f32.mrf.mxu0
  %v1743 = vadd.f32 0.0, %v1742
  %1744 = vmatmul.f32.gmra.mxu0 %v1630
  %v1745 = vpop.f32.mrf.mxu0
  %v1746 = vadd.f32 0.0, %v1745
  %1747 = vmatmul.f32.gmra.mxu0 %v1633
  %v1748 = vpop.f32.mrf.mxu0
  %v1749 = vadd.f32 0.0, %v1748
  %1750 = vmatmul.f32.gmra.mxu0 %v1636
  %v1751 = vpop.f32.mrf.mxu0
  %v1752 = vadd.f32 0.0, %v1751
  %1753 = vmatmul.f32.gmra.mxu0 %v1639
  %v1754 = vpop.f32.mrf.mxu0
  %v1755 = vadd.f32 0.0, %v1754
  %1756 = vmatmul.f32.gmra.mxu0 %v1642
  %v1757 = vpop.f32.mrf.mxu0
  %v1758 = vadd.f32 0.0, %v1757
  %1759 = vmatmul.f32.gmra.mxu0 %v1645
  %v1760 = vpop.f32.mrf.mxu0
  %v1761 = vadd.f32 0.0, %v1760
  %1762 = vdwg.mxu0
  %v1763 = vadd.f32 %v1485, %v1668
  %v1764 = vadd.f32 %v1486, %v1671
  %v1765 = vadd.f32 %v1487, %v1674
  %v1766 = vadd.f32 %v1488, %v1677
  %v1767 = vadd.f32 %v1489, %v1680
  %v1768 = vadd.f32 %v1490, %v1683
  %v1769 = vadd.f32 %v1491, %v1686
  %v1770 = vadd.f32 %v1492, %v1689
  %v1771 = vadd.f32 %v1493, %v1692
  %v1772 = vadd.f32 %v1494, %v1695
  %v1773 = vadd.f32 %v1495, %v1698
  %v1774 = vadd.f32 %v1496, %v1701
  %v1775 = vadd.f32 %v1497, %v1704
  %v1776 = vadd.f32 %v1498, %v1707
  %v1777 = vadd.f32 %v1499, %v1710
  %v1778 = vadd.f32 %v1500, %v1713
  %v1779 = vadd.f32 %v1501, %v1716
  %v1780 = vadd.f32 %v1502, %v1719
  %v1781 = vadd.f32 %v1503, %v1722
  %v1782 = vadd.f32 %v1504, %v1725
  %v1783 = vadd.f32 %v1505, %v1728
  %v1784 = vadd.f32 %v1506, %v1731
  %v1785 = vadd.f32 %v1507, %v1734
  %v1786 = vadd.f32 %v1508, %v1737
  %v1787 = vadd.f32 %v1509, %v1740
  %v1788 = vadd.f32 %v1510, %v1743
  %v1789 = vadd.f32 %v1511, %v1746
  %v1790 = vadd.f32 %v1512, %v1749
  %v1791 = vadd.f32 %v1513, %v1752
  %v1792 = vadd.f32 %v1514, %v1755
  %v1793 = vadd.f32 %v1515, %v1758
  %v1794 = vadd.f32 %v1516, %v1761
  %s1795 = scalar_lea.vmem [#allocation2], 48
  %v1796 = vld [vmem:[%s1795] sm:$0xff]
  %v1797 = vld [vmem:[%s1795 + $0x8] sm:$0xff]
  %v1798 = vld [vmem:[%s1795 + $0x18] sm:$0xff]
  %v1799 = vld [vmem:[%s1795 + $0x20] sm:$0xff]
  %v1800 = vld [vmem:[%s1795 + $0x30] sm:$0xff]
  %v1801 = vld [vmem:[%s1795 + $0x38] sm:$0xff]
  %v1802 = vld [vmem:[%s1795 + $0x48] sm:$0xff]
  %v1803 = vld [vmem:[%s1795 + $0x50] sm:$0xff]
  %v1804 = vld [vmem:[%s1795 + $0x60] sm:$0xff]
  %v1805 = vld [vmem:[%s1795 + $0x68] sm:$0xff]
  %v1806 = vld [vmem:[%s1795 + $0x78] sm:$0xff]
  %v1807 = vld [vmem:[%s1795 + $0x80] sm:$0xff]
  %v1808 = vld [vmem:[%s1795 + $0x90] sm:$0xff]
  %v1809 = vld [vmem:[%s1795 + $0x98] sm:$0xff]
  %v1810 = vld [vmem:[%s1795 + $0xa8] sm:$0xff]
  %v1811 = vld [vmem:[%s1795 + $0xb0] sm:$0xff]
  %v1812 = vld [vmem:[%s1795 + $0xc0] sm:$0xff]
  %v1813 = vld [vmem:[%s1795 + $0xc8] sm:$0xff]
  %v1814 = vld [vmem:[%s1795 + $0xd8] sm:$0xff]
  %v1815 = vld [vmem:[%s1795 + $0xe0] sm:$0xff]
  %v1816 = vld [vmem:[%s1795 + $0xf0] sm:$0xff]
  %v1817 = vld [vmem:[%s1795 + $0xf8] sm:$0xff]
  %v1818 = vld [vmem:[%s1795 + $0x108] sm:$0xff]
  %v1819 = vld [vmem:[%s1795 + $0x110] sm:$0xff]
  %v1820 = vld [vmem:[%s1795 + $0x120] sm:$0xff]
  %v1821 = vld [vmem:[%s1795 + $0x128] sm:$0xff]
  %v1822 = vld [vmem:[%s1795 + $0x138] sm:$0xff]
  %v1823 = vld [vmem:[%s1795 + $0x140] sm:$0xff]
  %v1824 = vld [vmem:[%s1795 + $0x150] sm:$0xff]
  %v1825 = vld [vmem:[%s1795 + $0x158] sm:$0xff]
  %v1826 = vld [vmem:[%s1795 + $0x168] sm:$0xff]
  %v1827 = vld [vmem:[%s1795 + $0x170] sm:$0xff]
  %s1828 = scalar_lea.vmem %s1, 24
  %v1829 = vld [vmem:[%s1828] sm:$0x7]
  %v1831 = vsel %vm14, %v1796, 0
  %v1834 = vsel %vm14, %v1797, 0
  %v1837 = vsel %vm14, %v1798, 0
  %v1840 = vsel %vm14, %v1799, 0
  %v1843 = vsel %vm14, %v1800, 0
  %v1846 = vsel %vm14, %v1801, 0
  %v1849 = vsel %vm14, %v1802, 0
  %v1852 = vsel %vm14, %v1803, 0
  %v1855 = vsel %vm14, %v1804, 0
  %v1858 = vsel %vm14, %v1805, 0
  %v1861 = vsel %vm14, %v1806, 0
  %v1864 = vsel %vm14, %v1807, 0
  %v1867 = vsel %vm14, %v1808, 0
  %v1870 = vsel %vm14, %v1809, 0
  %v1873 = vsel %vm14, %v1810, 0
  %v1876 = vsel %vm14, %v1811, 0
  %v1879 = vsel %vm14, %v1812, 0
  %v1882 = vsel %vm14, %v1813, 0
  %v1885 = vsel %vm14, %v1814, 0
  %v1888 = vsel %vm14, %v1815, 0
  %v1891 = vsel %vm14, %v1816, 0
  %v1894 = vsel %vm14, %v1817, 0
  %v1897 = vsel %vm14, %v1818, 0
  %v1900 = vsel %vm14, %v1819, 0
  %v1903 = vsel %vm14, %v1820, 0
  %v1906 = vsel %vm14, %v1821, 0
  %v1909 = vsel %vm14, %v1822, 0
  %v1912 = vsel %vm14, %v1823, 0
  %v1915 = vsel %vm14, %v1824, 0
  %v1918 = vsel %vm14, %v1825, 0
  %v1921 = vsel %vm14, %v1826, 0
  %v1924 = vsel %vm14, %v1827, 0
  %v1927 = vsel %vm354, %v1829, 0
  %1929 = vmatpush.msra.mxu0 0.0
  %1930 = vmatpush.msra.mxu0 0.0
  %1931 = vmatpush.msra.mxu0 0.0
  %1932 = vmatpush.msra.mxu0 0.0
  %1933 = vmatpush.msra.mxu0 0.0
  %1934 = vmatpush.msra.mxu0 0.0
  %1935 = vmatpush.msra.mxu0 0.0
  %1936 = vmatpush.msra.mxu0 0.0
  %1937 = vmatpush.msra.mxu0 0.0
  %1938 = vmatpush.msra.mxu0 0.0
  %1939 = vmatpush.msra.mxu0 0.0
  %1940 = vmatpush.msra.mxu0 0.0
  %1941 = vmatpush.msra.mxu0 0.0
  %1942 = vmatpush.msra.mxu0 0.0
  %1943 = vmatpush.msra.mxu0 0.0
  %1944 = vmatpush.msra.mxu0 %v1927
  %1945 = vmatmul.f32.gmra.mxu0 %v1831
  %v1946 = vpop.f32.mrf.mxu0
  %v1947 = vadd.f32 0.0, %v1946
  %1948 = vmatmul.f32.gmra.mxu0 %v1834
  %v1949 = vpop.f32.mrf.mxu0
  %v1950 = vadd.f32 0.0, %v1949
  %1951 = vmatmul.f32.gmra.mxu0 %v1837
  %v1952 = vpop.f32.mrf.mxu0
  %v1953 = vadd.f32 0.0, %v1952
  %1954 = vmatmul.f32.gmra.mxu0 %v1840
  %v1955 = vpop.f32.mrf.mxu0
  %v1956 = vadd.f32 0.0, %v1955
  %1957 = vmatmul.f32.gmra.mxu0 %v1843
  %v1958 = vpop.f32.mrf.mxu0
  %v1959 = vadd.f32 0.0, %v1958
  %1960 = vmatmul.f32.gmra.mxu0 %v1846
  %v1961 = vpop.f32.mrf.mxu0
  %v1962 = vadd.f32 0.0, %v1961
  %1963 = vmatmul.f32.gmra.mxu0 %v1849
  %v1964 = vpop.f32.mrf.mxu0
  %v1965 = vadd.f32 0.0, %v1964
  %1966 = vmatmul.f32.gmra.mxu0 %v1852
  %v1967 = vpop.f32.mrf.mxu0
  %v1968 = vadd.f32 0.0, %v1967
  %1969 = vmatmul.f32.gmra.mxu0 %v1855
  %v1970 = vpop.f32.mrf.mxu0
  %v1971 = vadd.f32 0.0, %v1970
  %1972 = vmatmul.f32.gmra.mxu0 %v1858
  %v1973 = vpop.f32.mrf.mxu0
  %v1974 = vadd.f32 0.0, %v1973
  %1975 = vmatmul.f32.gmra.mxu0 %v1861
  %v1976 = vpop.f32.mrf.mxu0
  %v1977 = vadd.f32 0.0, %v1976
  %1978 = vmatmul.f32.gmra.mxu0 %v1864
  %v1979 = vpop.f32.mrf.mxu0
  %v1980 = vadd.f32 0.0, %v1979
  %1981 = vmatmul.f32.gmra.mxu0 %v1867
  %v1982 = vpop.f32.mrf.mxu0
  %v1983 = vadd.f32 0.0, %v1982
  %1984 = vmatmul.f32.gmra.mxu0 %v1870
  %v1985 = vpop.f32.mrf.mxu0
  %v1986 = vadd.f32 0.0, %v1985
  %1987 = vmatmul.f32.gmra.mxu0 %v1873
  %v1988 = vpop.f32.mrf.mxu0
  %v1989 = vadd.f32 0.0, %v1988
  %1990 = vmatmul.f32.gmra.mxu0 %v1876
  %v1991 = vpop.f32.mrf.mxu0
  %v1992 = vadd.f32 0.0, %v1991
  %1993 = vmatmul.f32.gmra.mxu0 %v1879
  %v1994 = vpop.f32.mrf.mxu0
  %v1995 = vadd.f32 0.0, %v1994
  %1996 = vmatmul.f32.gmra.mxu0 %v1882
  %v1997 = vpop.f32.mrf.mxu0
  %v1998 = vadd.f32 0.0, %v1997
  %1999 = vmatmul.f32.gmra.mxu0 %v1885
  %v2000 = vpop.f32.mrf.mxu0
  %v2001 = vadd.f32 0.0, %v2000
  %2002 = vmatmul.f32.gmra.mxu0 %v1888
  %v2003 = vpop.f32.mrf.mxu0
  %v2004 = vadd.f32 0.0, %v2003
  %2005 = vmatmul.f32.gmra.mxu0 %v1891
  %v2006 = vpop.f32.mrf.mxu0
  %v2007 = vadd.f32 0.0, %v2006
  %2008 = vmatmul.f32.gmra.mxu0 %v1894
  %v2009 = vpop.f32.mrf.mxu0
  %v2010 = vadd.f32 0.0, %v2009
  %2011 = vmatmul.f32.gmra.mxu0 %v1897
  %v2012 = vpop.f32.mrf.mxu0
  %v2013 = vadd.f32 0.0, %v2012
  %2014 = vmatmul.f32.gmra.mxu0 %v1900
  %v2015 = vpop.f32.mrf.mxu0
  %v2016 = vadd.f32 0.0, %v2015
  %2017 = vmatmul.f32.gmra.mxu0 %v1903
  %v2018 = vpop.f32.mrf.mxu0
  %v2019 = vadd.f32 0.0, %v2018
  %2020 = vmatmul.f32.gmra.mxu0 %v1906
  %v2021 = vpop.f32.mrf.mxu0
  %v2022 = vadd.f32 0.0, %v2021
  %2023 = vmatmul.f32.gmra.mxu0 %v1909
  %v2024 = vpop.f32.mrf.mxu0
  %v2025 = vadd.f32 0.0, %v2024
  %2026 = vmatmul.f32.gmra.mxu0 %v1912
  %v2027 = vpop.f32.mrf.mxu0
  %v2028 = vadd.f32 0.0, %v2027
  %2029 = vmatmul.f32.gmra.mxu0 %v1915
  %v2030 = vpop.f32.mrf.mxu0
  %v2031 = vadd.f32 0.0, %v2030
  %2032 = vmatmul.f32.gmra.mxu0 %v1918
  %v2033 = vpop.f32.mrf.mxu0
  %v2034 = vadd.f32 0.0, %v2033
  %2035 = vmatmul.f32.gmra.mxu0 %v1921
  %v2036 = vpop.f32.mrf.mxu0
  %v2037 = vadd.f32 0.0, %v2036
  %2038 = vmatmul.f32.gmra.mxu0 %v1924
  %v2039 = vpop.f32.mrf.mxu0
  %v2040 = vadd.f32 0.0, %v2039
  %2041 = vdwg.mxu0
  %v2042 = vadd.f32 %v1763, %v1947
  %v2043 = vadd.f32 %v1764, %v1950
  %v2044 = vadd.f32 %v1765, %v1953
  %v2045 = vadd.f32 %v1766, %v1956
  %v2046 = vadd.f32 %v1767, %v1959
  %v2047 = vadd.f32 %v1768, %v1962
  %v2048 = vadd.f32 %v1769, %v1965
  %v2049 = vadd.f32 %v1770, %v1968
  %v2050 = vadd.f32 %v1771, %v1971
  %v2051 = vadd.f32 %v1772, %v1974
  %v2052 = vadd.f32 %v1773, %v1977
  %v2053 = vadd.f32 %v1774, %v1980
  %v2054 = vadd.f32 %v1775, %v1983
  %v2055 = vadd.f32 %v1776, %v1986
  %v2056 = vadd.f32 %v1777, %v1989
  %v2057 = vadd.f32 %v1778, %v1992
  %v2058 = vadd.f32 %v1779, %v1995
  %v2059 = vadd.f32 %v1780, %v1998
  %v2060 = vadd.f32 %v1781, %v2001
  %v2061 = vadd.f32 %v1782, %v2004
  %v2062 = vadd.f32 %v1783, %v2007
  %v2063 = vadd.f32 %v1784, %v2010
  %v2064 = vadd.f32 %v1785, %v2013
  %v2065 = vadd.f32 %v1786, %v2016
  %v2066 = vadd.f32 %v1787, %v2019
  %v2067 = vadd.f32 %v1788, %v2022
  %v2068 = vadd.f32 %v1789, %v2025
  %v2069 = vadd.f32 %v1790, %v2028
  %v2070 = vadd.f32 %v1791, %v2031
  %v2071 = vadd.f32 %v1792, %v2034
  %v2072 = vadd.f32 %v1793, %v2037
  %v2073 = vadd.f32 %v1794, %v2040
  %v2074 = vld [vmem:[%s1795 + $0x1] sm:$0xff]
  %v2075 = vld [vmem:[%s1795 + $0x9] sm:$0xff]
  %v2076 = vld [vmem:[%s1795 + $0x19] sm:$0xff]
  %v2077 = vld [vmem:[%s1795 + $0x21] sm:$0xff]
  %v2078 = vld [vmem:[%s1795 + $0x31] sm:$0xff]
  %v2079 = vld [vmem:[%s1795 + $0x39] sm:$0xff]
  %v2080 = vld [vmem:[%s1795 + $0x49] sm:$0xff]
  %v2081 = vld [vmem:[%s1795 + $0x51] sm:$0xff]
  %v2082 = vld [vmem:[%s1795 + $0x61] sm:$0xff]
  %v2083 = vld [vmem:[%s1795 + $0x69] sm:$0xff]
  %v2084 = vld [vmem:[%s1795 + $0x79] sm:$0xff]
  %v2085 = vld [vmem:[%s1795 + $0x81] sm:$0xff]
  %v2086 = vld [vmem:[%s1795 + $0x91] sm:$0xff]
  %v2087 = vld [vmem:[%s1795 + $0x99] sm:$0xff]
  %v2088 = vld [vmem:[%s1795 + $0xa9] sm:$0xff]
  %v2089 = vld [vmem:[%s1795 + $0xb1] sm:$0xff]
  %v2090 = vld [vmem:[%s1795 + $0xc1] sm:$0xff]
  %v2091 = vld [vmem:[%s1795 + $0xc9] sm:$0xff]
  %v2092 = vld [vmem:[%s1795 + $0xd9] sm:$0xff]
  %v2093 = vld [vmem:[%s1795 + $0xe1] sm:$0xff]
  %v2094 = vld [vmem:[%s1795 + $0xf1] sm:$0xff]
  %v2095 = vld [vmem:[%s1795 + $0xf9] sm:$0xff]
  %v2096 = vld [vmem:[%s1795 + $0x109] sm:$0xff]
  %v2097 = vld [vmem:[%s1795 + $0x111] sm:$0xff]
  %v2098 = vld [vmem:[%s1795 + $0x121] sm:$0xff]
  %v2099 = vld [vmem:[%s1795 + $0x129] sm:$0xff]
  %v2100 = vld [vmem:[%s1795 + $0x139] sm:$0xff]
  %v2101 = vld [vmem:[%s1795 + $0x141] sm:$0xff]
  %v2102 = vld [vmem:[%s1795 + $0x151] sm:$0xff]
  %v2103 = vld [vmem:[%s1795 + $0x159] sm:$0xff]
  %v2104 = vld [vmem:[%s1795 + $0x169] sm:$0xff]
  %v2105 = vld [vmem:[%s1795 + $0x171] sm:$0xff]
  %s2106 = scalar_lea.vmem %s1, 28
  %v2107 = vld [vmem:[%s2106] sm:$0x7]
  %v2109 = vsel %vm14, %v2074, 0
  %v2112 = vsel %vm14, %v2075, 0
  %v2115 = vsel %vm14, %v2076, 0
  %v2118 = vsel %vm14, %v2077, 0
  %v2121 = vsel %vm14, %v2078, 0
  %v2124 = vsel %vm14, %v2079, 0
  %v2127 = vsel %vm14, %v2080, 0
  %v2130 = vsel %vm14, %v2081, 0
  %v2133 = vsel %vm14, %v2082, 0
  %v2136 = vsel %vm14, %v2083, 0
  %v2139 = vsel %vm14, %v2084, 0
  %v2142 = vsel %vm14, %v2085, 0
  %v2145 = vsel %vm14, %v2086, 0
  %v2148 = vsel %vm14, %v2087, 0
  %v2151 = vsel %vm14, %v2088, 0
  %v2154 = vsel %vm14, %v2089, 0
  %v2157 = vsel %vm14, %v2090, 0
  %v2160 = vsel %vm14, %v2091, 0
  %v2163 = vsel %vm14, %v2092, 0
  %v2166 = vsel %vm14, %v2093, 0
  %v2169 = vsel %vm14, %v2094, 0
  %v2172 = vsel %vm14, %v2095, 0
  %v2175 = vsel %vm14, %v2096, 0
  %v2178 = vsel %vm14, %v2097, 0
  %v2181 = vsel %vm14, %v2098, 0
  %v2184 = vsel %vm14, %v2099, 0
  %v2187 = vsel %vm14, %v2100, 0
  %v2190 = vsel %vm14, %v2101, 0
  %v2193 = vsel %vm14, %v2102, 0
  %v2196 = vsel %vm14, %v2103, 0
  %v2199 = vsel %vm14, %v2104, 0
  %v2202 = vsel %vm14, %v2105, 0
  %v2205 = vsel %vm354, %v2107, 0
  %2207 = vmatpush.msra.mxu0 0.0
  %2208 = vmatpush.msra.mxu0 0.0
  %2209 = vmatpush.msra.mxu0 0.0
  %2210 = vmatpush.msra.mxu0 0.0
  %2211 = vmatpush.msra.mxu0 0.0
  %2212 = vmatpush.msra.mxu0 0.0
  %2213 = vmatpush.msra.mxu0 0.0
  %2214 = vmatpush.msra.mxu0 0.0
  %2215 = vmatpush.msra.mxu0 0.0
  %2216 = vmatpush.msra.mxu0 0.0
  %2217 = vmatpush.msra.mxu0 0.0
  %2218 = vmatpush.msra.mxu0 0.0
  %2219 = vmatpush.msra.mxu0 0.0
  %2220 = vmatpush.msra.mxu0 0.0
  %2221 = vmatpush.msra.mxu0 0.0
  %2222 = vmatpush.msra.mxu0 %v2205
  %2223 = vmatmul.f32.gmra.mxu0 %v2109
  %v2224 = vpop.f32.mrf.mxu0
  %v2225 = vadd.f32 0.0, %v2224
  %2226 = vmatmul.f32.gmra.mxu0 %v2112
  %v2227 = vpop.f32.mrf.mxu0
  %v2228 = vadd.f32 0.0, %v2227
  %2229 = vmatmul.f32.gmra.mxu0 %v2115
  %v2230 = vpop.f32.mrf.mxu0
  %v2231 = vadd.f32 0.0, %v2230
  %2232 = vmatmul.f32.gmra.mxu0 %v2118
  %v2233 = vpop.f32.mrf.mxu0
  %v2234 = vadd.f32 0.0, %v2233
  %2235 = vmatmul.f32.gmra.mxu0 %v2121
  %v2236 = vpop.f32.mrf.mxu0
  %v2237 = vadd.f32 0.0, %v2236
  %2238 = vmatmul.f32.gmra.mxu0 %v2124
  %v2239 = vpop.f32.mrf.mxu0
  %v2240 = vadd.f32 0.0, %v2239
  %2241 = vmatmul.f32.gmra.mxu0 %v2127
  %v2242 = vpop.f32.mrf.mxu0
  %v2243 = vadd.f32 0.0, %v2242
  %2244 = vmatmul.f32.gmra.mxu0 %v2130
  %v2245 = vpop.f32.mrf.mxu0
  %v2246 = vadd.f32 0.0, %v2245
  %2247 = vmatmul.f32.gmra.mxu0 %v2133
  %v2248 = vpop.f32.mrf.mxu0
  %v2249 = vadd.f32 0.0, %v2248
  %2250 = vmatmul.f32.gmra.mxu0 %v2136
  %v2251 = vpop.f32.mrf.mxu0
  %v2252 = vadd.f32 0.0, %v2251
  %2253 = vmatmul.f32.gmra.mxu0 %v2139
  %v2254 = vpop.f32.mrf.mxu0
  %v2255 = vadd.f32 0.0, %v2254
  %2256 = vmatmul.f32.gmra.mxu0 %v2142
  %v2257 = vpop.f32.mrf.mxu0
  %v2258 = vadd.f32 0.0, %v2257
  %2259 = vmatmul.f32.gmra.mxu0 %v2145
  %v2260 = vpop.f32.mrf.mxu0
  %v2261 = vadd.f32 0.0, %v2260
  %2262 = vmatmul.f32.gmra.mxu0 %v2148
  %v2263 = vpop.f32.mrf.mxu0
  %v2264 = vadd.f32 0.0, %v2263
  %2265 = vmatmul.f32.gmra.mxu0 %v2151
  %v2266 = vpop.f32.mrf.mxu0
  %v2267 = vadd.f32 0.0, %v2266
  %2268 = vmatmul.f32.gmra.mxu0 %v2154
  %v2269 = vpop.f32.mrf.mxu0
  %v2270 = vadd.f32 0.0, %v2269
  %2271 = vmatmul.f32.gmra.mxu0 %v2157
  %v2272 = vpop.f32.mrf.mxu0
  %v2273 = vadd.f32 0.0, %v2272
  %2274 = vmatmul.f32.gmra.mxu0 %v2160
  %v2275 = vpop.f32.mrf.mxu0
  %v2276 = vadd.f32 0.0, %v2275
  %2277 = vmatmul.f32.gmra.mxu0 %v2163
  %v2278 = vpop.f32.mrf.mxu0
  %v2279 = vadd.f32 0.0, %v2278
  %2280 = vmatmul.f32.gmra.mxu0 %v2166
  %v2281 = vpop.f32.mrf.mxu0
  %v2282 = vadd.f32 0.0, %v2281
  %2283 = vmatmul.f32.gmra.mxu0 %v2169
  %v2284 = vpop.f32.mrf.mxu0
  %v2285 = vadd.f32 0.0, %v2284
  %2286 = vmatmul.f32.gmra.mxu0 %v2172
  %v2287 = vpop.f32.mrf.mxu0
  %v2288 = vadd.f32 0.0, %v2287
  %2289 = vmatmul.f32.gmra.mxu0 %v2175
  %v2290 = vpop.f32.mrf.mxu0
  %v2291 = vadd.f32 0.0, %v2290
  %2292 = vmatmul.f32.gmra.mxu0 %v2178
  %v2293 = vpop.f32.mrf.mxu0
  %v2294 = vadd.f32 0.0, %v2293
  %2295 = vmatmul.f32.gmra.mxu0 %v2181
  %v2296 = vpop.f32.mrf.mxu0
  %v2297 = vadd.f32 0.0, %v2296
  %2298 = vmatmul.f32.gmra.mxu0 %v2184
  %v2299 = vpop.f32.mrf.mxu0
  %v2300 = vadd.f32 0.0, %v2299
  %2301 = vmatmul.f32.gmra.mxu0 %v2187
  %v2302 = vpop.f32.mrf.mxu0
  %v2303 = vadd.f32 0.0, %v2302
  %2304 = vmatmul.f32.gmra.mxu0 %v2190
  %v2305 = vpop.f32.mrf.mxu0
  %v2306 = vadd.f32 0.0, %v2305
  %2307 = vmatmul.f32.gmra.mxu0 %v2193
  %v2308 = vpop.f32.mrf.mxu0
  %v2309 = vadd.f32 0.0, %v2308
  %2310 = vmatmul.f32.gmra.mxu0 %v2196
  %v2311 = vpop.f32.mrf.mxu0
  %v2312 = vadd.f32 0.0, %v2311
  %2313 = vmatmul.f32.gmra.mxu0 %v2199
  %v2314 = vpop.f32.mrf.mxu0
  %v2315 = vadd.f32 0.0, %v2314
  %2316 = vmatmul.f32.gmra.mxu0 %v2202
  %v2317 = vpop.f32.mrf.mxu0
  %v2318 = vadd.f32 0.0, %v2317
  %2319 = vdwg.mxu0
  %v2320 = vadd.f32 %v2042, %v2225
  %v2321 = vadd.f32 %v2043, %v2228
  %v2322 = vadd.f32 %v2044, %v2231
  %v2323 = vadd.f32 %v2045, %v2234
  %v2324 = vadd.f32 %v2046, %v2237
  %v2325 = vadd.f32 %v2047, %v2240
  %v2326 = vadd.f32 %v2048, %v2243
  %v2327 = vadd.f32 %v2049, %v2246
  %v2328 = vadd.f32 %v2050, %v2249
  %v2329 = vadd.f32 %v2051, %v2252
  %v2330 = vadd.f32 %v2052, %v2255
  %v2331 = vadd.f32 %v2053, %v2258
  %v2332 = vadd.f32 %v2054, %v2261
  %v2333 = vadd.f32 %v2055, %v2264
  %v2334 = vadd.f32 %v2056, %v2267
  %v2335 = vadd.f32 %v2057, %v2270
  %v2336 = vadd.f32 %v2058, %v2273
  %v2337 = vadd.f32 %v2059, %v2276
  %v2338 = vadd.f32 %v2060, %v2279
  %v2339 = vadd.f32 %v2061, %v2282
  %v2340 = vadd.f32 %v2062, %v2285
  %v2341 = vadd.f32 %v2063, %v2288
  %v2342 = vadd.f32 %v2064, %v2291
  %v2343 = vadd.f32 %v2065, %v2294
  %v2344 = vadd.f32 %v2066, %v2297
  %v2345 = vadd.f32 %v2067, %v2300
  %v2346 = vadd.f32 %v2068, %v2303
  %v2347 = vadd.f32 %v2069, %v2306
  %v2348 = vadd.f32 %v2070, %v2309
  %v2349 = vadd.f32 %v2071, %v2312
  %v2350 = vadd.f32 %v2072, %v2315
  %v2351 = vadd.f32 %v2073, %v2318
  %v2352 = vld [vmem:[%s1795 + $0x2] sm:$0xff]
  %v2353 = vld [vmem:[%s1795 + $0xa] sm:$0xff]
  %v2354 = vld [vmem:[%s1795 + $0x1a] sm:$0xff]
  %v2355 = vld [vmem:[%s1795 + $0x22] sm:$0xff]
  %v2356 = vld [vmem:[%s1795 + $0x32] sm:$0xff]
  %v2357 = vld [vmem:[%s1795 + $0x3a] sm:$0xff]
  %v2358 = vld [vmem:[%s1795 + $0x4a] sm:$0xff]
  %v2359 = vld [vmem:[%s1795 + $0x52] sm:$0xff]
  %v2360 = vld [vmem:[%s1795 + $0x62] sm:$0xff]
  %v2361 = vld [vmem:[%s1795 + $0x6a] sm:$0xff]
  %v2362 = vld [vmem:[%s1795 + $0x7a] sm:$0xff]
  %v2363 = vld [vmem:[%s1795 + $0x82] sm:$0xff]
  %v2364 = vld [vmem:[%s1795 + $0x92] sm:$0xff]
  %v2365 = vld [vmem:[%s1795 + $0x9a] sm:$0xff]
  %v2366 = vld [vmem:[%s1795 + $0xaa] sm:$0xff]
  %v2367 = vld [vmem:[%s1795 + $0xb2] sm:$0xff]
  %v2368 = vld [vmem:[%s1795 + $0xc2] sm:$0xff]
  %v2369 = vld [vmem:[%s1795 + $0xca] sm:$0xff]
  %v2370 = vld [vmem:[%s1795 + $0xda] sm:$0xff]
  %v2371 = vld [vmem:[%s1795 + $0xe2] sm:$0xff]
  %v2372 = vld [vmem:[%s1795 + $0xf2] sm:$0xff]
  %v2373 = vld [vmem:[%s1795 + $0xfa] sm:$0xff]
  %v2374 = vld [vmem:[%s1795 + $0x10a] sm:$0xff]
  %v2375 = vld [vmem:[%s1795 + $0x112] sm:$0xff]
  %v2376 = vld [vmem:[%s1795 + $0x122] sm:$0xff]
  %v2377 = vld [vmem:[%s1795 + $0x12a] sm:$0xff]
  %v2378 = vld [vmem:[%s1795 + $0x13a] sm:$0xff]
  %v2379 = vld [vmem:[%s1795 + $0x142] sm:$0xff]
  %v2380 = vld [vmem:[%s1795 + $0x152] sm:$0xff]
  %v2381 = vld [vmem:[%s1795 + $0x15a] sm:$0xff]
  %v2382 = vld [vmem:[%s1795 + $0x16a] sm:$0xff]
  %v2383 = vld [vmem:[%s1795 + $0x172] sm:$0xff]
  %s2384 = scalar_lea.vmem %s1, 32
  %v2385 = vld [vmem:[%s2384] sm:$0x7]
  %v2387 = vsel %vm14, %v2352, 0
  %v2390 = vsel %vm14, %v2353, 0
  %v2393 = vsel %vm14, %v2354, 0
  %v2396 = vsel %vm14, %v2355, 0
  %v2399 = vsel %vm14, %v2356, 0
  %v2402 = vsel %vm14, %v2357, 0
  %v2405 = vsel %vm14, %v2358, 0
  %v2408 = vsel %vm14, %v2359, 0
  %v2411 = vsel %vm14, %v2360, 0
  %v2414 = vsel %vm14, %v2361, 0
  %v2417 = vsel %vm14, %v2362, 0
  %v2420 = vsel %vm14, %v2363, 0
  %v2423 = vsel %vm14, %v2364, 0
  %v2426 = vsel %vm14, %v2365, 0
  %v2429 = vsel %vm14, %v2366, 0
  %v2432 = vsel %vm14, %v2367, 0
  %v2435 = vsel %vm14, %v2368, 0
  %v2438 = vsel %vm14, %v2369, 0
  %v2441 = vsel %vm14, %v2370, 0
  %v2444 = vsel %vm14, %v2371, 0
  %v2447 = vsel %vm14, %v2372, 0
  %v2450 = vsel %vm14, %v2373, 0
  %v2453 = vsel %vm14, %v2374, 0
  %v2456 = vsel %vm14, %v2375, 0
  %v2459 = vsel %vm14, %v2376, 0
  %v2462 = vsel %vm14, %v2377, 0
  %v2465 = vsel %vm14, %v2378, 0
  %v2468 = vsel %vm14, %v2379, 0
  %v2471 = vsel %vm14, %v2380, 0
  %v2474 = vsel %vm14, %v2381, 0
  %v2477 = vsel %vm14, %v2382, 0
  %v2480 = vsel %vm14, %v2383, 0
  %v2483 = vsel %vm354, %v2385, 0
  %2485 = vmatpush.msra.mxu0 0.0
  %2486 = vmatpush.msra.mxu0 0.0
  %2487 = vmatpush.msra.mxu0 0.0
  %2488 = vmatpush.msra.mxu0 0.0
  %2489 = vmatpush.msra.mxu0 0.0
  %2490 = vmatpush.msra.mxu0 0.0
  %2491 = vmatpush.msra.mxu0 0.0
  %2492 = vmatpush.msra.mxu0 0.0
  %2493 = vmatpush.msra.mxu0 0.0
  %2494 = vmatpush.msra.mxu0 0.0
  %2495 = vmatpush.msra.mxu0 0.0
  %2496 = vmatpush.msra.mxu0 0.0
  %2497 = vmatpush.msra.mxu0 0.0
  %2498 = vmatpush.msra.mxu0 0.0
  %2499 = vmatpush.msra.mxu0 0.0
  %2500 = vmatpush.msra.mxu0 %v2483
  %2501 = vmatmul.f32.gmra.mxu0 %v2387
  %v2502 = vpop.f32.mrf.mxu0
  %v2503 = vadd.f32 0.0, %v2502
  %2504 = vmatmul.f32.gmra.mxu0 %v2390
  %v2505 = vpop.f32.mrf.mxu0
  %v2506 = vadd.f32 0.0, %v2505
  %2507 = vmatmul.f32.gmra.mxu0 %v2393
  %v2508 = vpop.f32.mrf.mxu0
  %v2509 = vadd.f32 0.0, %v2508
  %2510 = vmatmul.f32.gmra.mxu0 %v2396
  %v2511 = vpop.f32.mrf.mxu0
  %v2512 = vadd.f32 0.0, %v2511
  %2513 = vmatmul.f32.gmra.mxu0 %v2399
  %v2514 = vpop.f32.mrf.mxu0
  %v2515 = vadd.f32 0.0, %v2514
  %2516 = vmatmul.f32.gmra.mxu0 %v2402
  %v2517 = vpop.f32.mrf.mxu0
  %v2518 = vadd.f32 0.0, %v2517
  %2519 = vmatmul.f32.gmra.mxu0 %v2405
  %v2520 = vpop.f32.mrf.mxu0
  %v2521 = vadd.f32 0.0, %v2520
  %2522 = vmatmul.f32.gmra.mxu0 %v2408
  %v2523 = vpop.f32.mrf.mxu0
  %v2524 = vadd.f32 0.0, %v2523
  %2525 = vmatmul.f32.gmra.mxu0 %v2411
  %v2526 = vpop.f32.mrf.mxu0
  %v2527 = vadd.f32 0.0, %v2526
  %2528 = vmatmul.f32.gmra.mxu0 %v2414
  %v2529 = vpop.f32.mrf.mxu0
  %v2530 = vadd.f32 0.0, %v2529
  %2531 = vmatmul.f32.gmra.mxu0 %v2417
  %v2532 = vpop.f32.mrf.mxu0
  %v2533 = vadd.f32 0.0, %v2532
  %2534 = vmatmul.f32.gmra.mxu0 %v2420
  %v2535 = vpop.f32.mrf.mxu0
  %v2536 = vadd.f32 0.0, %v2535
  %2537 = vmatmul.f32.gmra.mxu0 %v2423
  %v2538 = vpop.f32.mrf.mxu0
  %v2539 = vadd.f32 0.0, %v2538
  %2540 = vmatmul.f32.gmra.mxu0 %v2426
  %v2541 = vpop.f32.mrf.mxu0
  %v2542 = vadd.f32 0.0, %v2541
  %2543 = vmatmul.f32.gmra.mxu0 %v2429
  %v2544 = vpop.f32.mrf.mxu0
  %v2545 = vadd.f32 0.0, %v2544
  %2546 = vmatmul.f32.gmra.mxu0 %v2432
  %v2547 = vpop.f32.mrf.mxu0
  %v2548 = vadd.f32 0.0, %v2547
  %2549 = vmatmul.f32.gmra.mxu0 %v2435
  %v2550 = vpop.f32.mrf.mxu0
  %v2551 = vadd.f32 0.0, %v2550
  %2552 = vmatmul.f32.gmra.mxu0 %v2438
  %v2553 = vpop.f32.mrf.mxu0
  %v2554 = vadd.f32 0.0, %v2553
  %2555 = vmatmul.f32.gmra.mxu0 %v2441
  %v2556 = vpop.f32.mrf.mxu0
  %v2557 = vadd.f32 0.0, %v2556
  %2558 = vmatmul.f32.gmra.mxu0 %v2444
  %v2559 = vpop.f32.mrf.mxu0
  %v2560 = vadd.f32 0.0, %v2559
  %2561 = vmatmul.f32.gmra.mxu0 %v2447
  %v2562 = vpop.f32.mrf.mxu0
  %v2563 = vadd.f32 0.0, %v2562
  %2564 = vmatmul.f32.gmra.mxu0 %v2450
  %v2565 = vpop.f32.mrf.mxu0
  %v2566 = vadd.f32 0.0, %v2565
  %2567 = vmatmul.f32.gmra.mxu0 %v2453
  %v2568 = vpop.f32.mrf.mxu0
  %v2569 = vadd.f32 0.0, %v2568
  %2570 = vmatmul.f32.gmra.mxu0 %v2456
  %v2571 = vpop.f32.mrf.mxu0
  %v2572 = vadd.f32 0.0, %v2571
  %2573 = vmatmul.f32.gmra.mxu0 %v2459
  %v2574 = vpop.f32.mrf.mxu0
  %v2575 = vadd.f32 0.0, %v2574
  %2576 = vmatmul.f32.gmra.mxu0 %v2462
  %v2577 = vpop.f32.mrf.mxu0
  %v2578 = vadd.f32 0.0, %v2577
  %2579 = vmatmul.f32.gmra.mxu0 %v2465
  %v2580 = vpop.f32.mrf.mxu0
  %v2581 = vadd.f32 0.0, %v2580
  %2582 = vmatmul.f32.gmra.mxu0 %v2468
  %v2583 = vpop.f32.mrf.mxu0
  %v2584 = vadd.f32 0.0, %v2583
  %2585 = vmatmul.f32.gmra.mxu0 %v2471
  %v2586 = vpop.f32.mrf.mxu0
  %v2587 = vadd.f32 0.0, %v2586
  %2588 = vmatmul.f32.gmra.mxu0 %v2474
  %v2589 = vpop.f32.mrf.mxu0
  %v2590 = vadd.f32 0.0, %v2589
  %2591 = vmatmul.f32.gmra.mxu0 %v2477
  %v2592 = vpop.f32.mrf.mxu0
  %v2593 = vadd.f32 0.0, %v2592
  %2594 = vmatmul.f32.gmra.mxu0 %v2480
  %v2595 = vpop.f32.mrf.mxu0
  %v2596 = vadd.f32 0.0, %v2595
  %2597 = vdwg.mxu0
  %v2598 = vadd.f32 %v2320, %v2503
  %v2599 = vadd.f32 %v2321, %v2506
  %v2600 = vadd.f32 %v2322, %v2509
  %v2601 = vadd.f32 %v2323, %v2512
  %v2602 = vadd.f32 %v2324, %v2515
  %v2603 = vadd.f32 %v2325, %v2518
  %v2604 = vadd.f32 %v2326, %v2521
  %v2605 = vadd.f32 %v2327, %v2524
  %v2606 = vadd.f32 %v2328, %v2527
  %v2607 = vadd.f32 %v2329, %v2530
  %v2608 = vadd.f32 %v2330, %v2533
  %v2609 = vadd.f32 %v2331, %v2536
  %v2610 = vadd.f32 %v2332, %v2539
  %v2611 = vadd.f32 %v2333, %v2542
  %v2612 = vadd.f32 %v2334, %v2545
  %v2613 = vadd.f32 %v2335, %v2548
  %v2614 = vadd.f32 %v2336, %v2551
  %v2615 = vadd.f32 %v2337, %v2554
  %v2616 = vadd.f32 %v2338, %v2557
  %v2617 = vadd.f32 %v2339, %v2560
  %v2618 = vadd.f32 %v2340, %v2563
  %v2619 = vadd.f32 %v2341, %v2566
  %v2620 = vadd.f32 %v2342, %v2569
  %v2621 = vadd.f32 %v2343, %v2572
  %v2622 = vadd.f32 %v2344, %v2575
  %v2623 = vadd.f32 %v2345, %v2578
  %v2624 = vadd.f32 %v2346, %v2581
  %v2625 = vadd.f32 %v2347, %v2584
  %v2626 = vadd.f32 %v2348, %v2587
  %v2627 = vadd.f32 %v2349, %v2590
  %v2628 = vadd.f32 %v2350, %v2593
  %v2629 = vadd.f32 %v2351, %v2596
  %s2630 = scalar_lea.vmem [#allocation3], 24
  %2631 = vst.msk [vmem:[%s2630 + $0x1] sm:$0xff] %vm70, %v2598
  %2632 = vst.msk [vmem:[%s2630 + $0x9] sm:$0xff] %vm70, %v2599
  %2633 = vst.msk [vmem:[%s2630 + $0x19] sm:$0xff] %vm70, %v2600
  %2634 = vst.msk [vmem:[%s2630 + $0x21] sm:$0xff] %vm70, %v2601
  %2635 = vst.msk [vmem:[%s2630 + $0x31] sm:$0xff] %vm70, %v2602
  %2636 = vst.msk [vmem:[%s2630 + $0x39] sm:$0xff] %vm70, %v2603
  %2637 = vst.msk [vmem:[%s2630 + $0x49] sm:$0xff] %vm70, %v2604
  %2638 = vst.msk [vmem:[%s2630 + $0x51] sm:$0xff] %vm70, %v2605
  %2639 = vst.msk [vmem:[%s2630 + $0x61] sm:$0xff] %vm70, %v2606
  %2640 = vst.msk [vmem:[%s2630 + $0x69] sm:$0xff] %vm70, %v2607
  %2641 = vst.msk [vmem:[%s2630 + $0x79] sm:$0xff] %vm70, %v2608
  %2642 = vst.msk [vmem:[%s2630 + $0x81] sm:$0xff] %vm70, %v2609
  %2643 = vst.msk [vmem:[%s2630 + $0x91] sm:$0xff] %vm70, %v2610
  %2644 = vst.msk [vmem:[%s2630 + $0x99] sm:$0xff] %vm70, %v2611
  %2645 = vst.msk [vmem:[%s2630 + $0xa9] sm:$0xff] %vm70, %v2612
  %2646 = vst.msk [vmem:[%s2630 + $0xb1] sm:$0xff] %vm70, %v2613
  %2647 = vst.msk [vmem:[%s2630 + $0xc1] sm:$0xff] %vm70, %v2614
  %2648 = vst.msk [vmem:[%s2630 + $0xc9] sm:$0xff] %vm70, %v2615
  %2649 = vst.msk [vmem:[%s2630 + $0xd9] sm:$0xff] %vm70, %v2616
  %2650 = vst.msk [vmem:[%s2630 + $0xe1] sm:$0xff] %vm70, %v2617
  %2651 = vst.msk [vmem:[%s2630 + $0xf1] sm:$0xff] %vm70, %v2618
  %2652 = vst.msk [vmem:[%s2630 + $0xf9] sm:$0xff] %vm70, %v2619
  %2653 = vst.msk [vmem:[%s2630 + $0x109] sm:$0xff] %vm70, %v2620
  %2654 = vst.msk [vmem:[%s2630 + $0x111] sm:$0xff] %vm70, %v2621
  %2655 = vst.msk [vmem:[%s2630 + $0x121] sm:$0xff] %vm70, %v2622
  %2656 = vst.msk [vmem:[%s2630 + $0x129] sm:$0xff] %vm70, %v2623
  %2657 = vst.msk [vmem:[%s2630 + $0x139] sm:$0xff] %vm70, %v2624
  %2658 = vst.msk [vmem:[%s2630 + $0x141] sm:$0xff] %vm70, %v2625
  %2659 = vst.msk [vmem:[%s2630 + $0x151] sm:$0xff] %vm70, %v2626
  %2660 = vst.msk [vmem:[%s2630 + $0x159] sm:$0xff] %vm70, %v2627
  %2661 = vst.msk [vmem:[%s2630 + $0x169] sm:$0xff] %vm70, %v2628
  %2662 = vst.msk [vmem:[%s2630 + $0x171] sm:$0xff] %vm70, %v2629
  %v2663 = vld [vmem:[#allocation3] sm:$0xff]
  %v2664 = vld [vmem:[#allocation3 + $0x8] sm:$0xff]
  %v2665 = vld [vmem:[#allocation3 + $0x18] sm:$0xff]
  %v2666 = vld [vmem:[#allocation3 + $0x20] sm:$0xff]
  %v2667 = vld [vmem:[#allocation3 + $0x30] sm:$0xff]
  %v2668 = vld [vmem:[#allocation3 + $0x38] sm:$0xff]
  %v2669 = vld [vmem:[#allocation3 + $0x48] sm:$0xff]
  %v2670 = vld [vmem:[#allocation3 + $0x50] sm:$0xff]
  %v2671 = vld [vmem:[#allocation3 + $0x60] sm:$0xff]
  %v2672 = vld [vmem:[#allocation3 + $0x68] sm:$0xff]
  %v2673 = vld [vmem:[#allocation3 + $0x78] sm:$0xff]
  %v2674 = vld [vmem:[#allocation3 + $0x80] sm:$0xff]
  %v2675 = vld [vmem:[#allocation3 + $0x90] sm:$0xff]
  %v2676 = vld [vmem:[#allocation3 + $0x98] sm:$0xff]
  %v2677 = vld [vmem:[#allocation3 + $0xa8] sm:$0xff]
  %v2678 = vld [vmem:[#allocation3 + $0xb0] sm:$0xff]
  %v2679 = vld [vmem:[#allocation3 + $0xc0] sm:$0xff]
  %v2680 = vld [vmem:[#allocation3 + $0xc8] sm:$0xff]
  %v2681 = vld [vmem:[#allocation3 + $0xd8] sm:$0xff]
  %v2682 = vld [vmem:[#allocation3 + $0xe0] sm:$0xff]
  %v2683 = vld [vmem:[#allocation3 + $0xf0] sm:$0xff]
  %v2684 = vld [vmem:[#allocation3 + $0xf8] sm:$0xff]
  %v2685 = vld [vmem:[#allocation3 + $0x108] sm:$0xff]
  %v2686 = vld [vmem:[#allocation3 + $0x110] sm:$0xff]
  %v2687 = vld [vmem:[#allocation3 + $0x120] sm:$0xff]
  %v2688 = vld [vmem:[#allocation3 + $0x128] sm:$0xff]
  %v2689 = vld [vmem:[#allocation3 + $0x138] sm:$0xff]
  %v2690 = vld [vmem:[#allocation3 + $0x140] sm:$0xff]
  %v2691 = vld [vmem:[#allocation3 + $0x150] sm:$0xff]
  %v2692 = vld [vmem:[#allocation3 + $0x158] sm:$0xff]
  %v2693 = vld [vmem:[#allocation3 + $0x168] sm:$0xff]
  %v2694 = vld [vmem:[#allocation3 + $0x170] sm:$0xff]
  %v2695 = vld [vmem:[%s2] sm:$0xff]
  %v2696 = vld [vmem:[%s2 + $0x8] sm:$0xff]
  %v2697 = vld [vmem:[%s2 + $0x10] sm:$0xff]
  %v2698 = vld [vmem:[%s2 + $0x18] sm:$0xff]
  %v2699 = vld [vmem:[#allocation3 + $0x1] sm:$0xff]
  %v2700 = vld [vmem:[#allocation3 + $0x9] sm:$0xff]
  %v2701 = vld [vmem:[#allocation3 + $0x19] sm:$0xff]
  %v2702 = vld [vmem:[#allocation3 + $0x21] sm:$0xff]
  %v2703 = vld [vmem:[#allocation3 + $0x31] sm:$0xff]
  %v2704 = vld [vmem:[#allocation3 + $0x39] sm:$0xff]
  %v2705 = vld [vmem:[#allocation3 + $0x49] sm:$0xff]
  %v2706 = vld [vmem:[#allocation3 + $0x51] sm:$0xff]
  %v2707 = vld [vmem:[#allocation3 + $0x61] sm:$0xff]
  %v2708 = vld [vmem:[#allocation3 + $0x69] sm:$0xff]
  %v2709 = vld [vmem:[#allocation3 + $0x79] sm:$0xff]
  %v2710 = vld [vmem:[#allocation3 + $0x81] sm:$0xff]
  %v2711 = vld [vmem:[#allocation3 + $0x91] sm:$0xff]
  %v2712 = vld [vmem:[#allocation3 + $0x99] sm:$0xff]
  %v2713 = vld [vmem:[#allocation3 + $0xa9] sm:$0xff]
  %v2714 = vld [vmem:[#allocation3 + $0xb1] sm:$0xff]
  %v2715 = vld [vmem:[#allocation3 + $0xc1] sm:$0xff]
  %v2716 = vld [vmem:[#allocation3 + $0xc9] sm:$0xff]
  %v2717 = vld [vmem:[#allocation3 + $0xd9] sm:$0xff]
  %v2718 = vld [vmem:[#allocation3 + $0xe1] sm:$0xff]
  %v2719 = vld [vmem:[#allocation3 + $0xf1] sm:$0xff]
  %v2720 = vld [vmem:[#allocation3 + $0xf9] sm:$0xff]
  %v2721 = vld [vmem:[#allocation3 + $0x109] sm:$0xff]
  %v2722 = vld [vmem:[#allocation3 + $0x111] sm:$0xff]
  %v2723 = vld [vmem:[#allocation3 + $0x121] sm:$0xff]
  %v2724 = vld [vmem:[#allocation3 + $0x129] sm:$0xff]
  %v2725 = vld [vmem:[#allocation3 + $0x139] sm:$0xff]
  %v2726 = vld [vmem:[#allocation3 + $0x141] sm:$0xff]
  %v2727 = vld [vmem:[#allocation3 + $0x151] sm:$0xff]
  %v2728 = vld [vmem:[#allocation3 + $0x159] sm:$0xff]
  %v2729 = vld [vmem:[#allocation3 + $0x169] sm:$0xff]
  %v2730 = vld [vmem:[#allocation3 + $0x171] sm:$0xff]
  %s2731 = scalar_lea.vmem %s2, 32
  %v2732 = vld [vmem:[%s2731] sm:$0xff]
  %v2733 = vld [vmem:[%s2731 + $0x8] sm:$0xff]
  %v2734 = vld [vmem:[%s2731 + $0x10] sm:$0xff]
  %v2735 = vld [vmem:[%s2731 + $0x18] sm:$0xff]
  %v2737 = vsel %vm70, %v2699, 0
  %v2740 = vsel %vm70, %v2700, 0
  %v2743 = vsel %vm70, %v2701, 0
  %v2746 = vsel %vm70, %v2702, 0
  %v2749 = vsel %vm70, %v2703, 0
  %v2752 = vsel %vm70, %v2704, 0
  %v2755 = vsel %vm70, %v2705, 0
  %v2758 = vsel %vm70, %v2706, 0
  %v2761 = vsel %vm70, %v2707, 0
  %v2764 = vsel %vm70, %v2708, 0
  %v2767 = vsel %vm70, %v2709, 0
  %v2770 = vsel %vm70, %v2710, 0
  %v2773 = vsel %vm70, %v2711, 0
  %v2776 = vsel %vm70, %v2712, 0
  %v2779 = vsel %vm70, %v2713, 0
  %v2782 = vsel %vm70, %v2714, 0
  %v2785 = vsel %vm70, %v2715, 0
  %v2788 = vsel %vm70, %v2716, 0
  %v2791 = vsel %vm70, %v2717, 0
  %v2794 = vsel %vm70, %v2718, 0
  %v2797 = vsel %vm70, %v2719, 0
  %v2800 = vsel %vm70, %v2720, 0
  %v2803 = vsel %vm70, %v2721, 0
  %v2806 = vsel %vm70, %v2722, 0
  %v2809 = vsel %vm70, %v2723, 0
  %v2812 = vsel %vm70, %v2724, 0
  %v2815 = vsel %vm70, %v2725, 0
  %v2818 = vsel %vm70, %v2726, 0
  %v2821 = vsel %vm70, %v2727, 0
  %v2824 = vsel %vm70, %v2728, 0
  %v2827 = vsel %vm70, %v2729, 0
  %v2830 = vsel %vm70, %v2730, 0
  %2832 = vmatpush.msra.mxu0 0.0
  %2833 = vmatpush.msra.mxu0 0.0
  %2834 = vmatpush.msra.mxu0 0.0
  %2835 = vmatpush.msra.mxu0 0.0
  %2836 = vmatpush.msra.mxu0 0.0
  %2837 = vmatpush.msra.mxu0 0.0
  %2838 = vmatpush.msra.mxu0 0.0
  %2839 = vmatpush.msra.mxu0 0.0
  %2840 = vmatpush.msra.mxu0 0.0
  %2841 = vmatpush.msra.mxu0 0.0
  %2842 = vmatpush.msra.mxu0 0.0
  %2843 = vmatpush.msra.mxu0 0.0
  %2844 = vmatpush.msra.mxu0 %v2735
  %2845 = vmatpush.msra.mxu0 %v2734
  %2846 = vmatpush.msra.mxu0 %v2733
  %2847 = vmatpush.msra.mxu0 %v2732
  %2848 = vmatmul.f32.gmra.mxu0 %v2737
  %v2849 = vpop.f32.mrf.mxu0
  %v2850 = vadd.f32 0.0, %v2849
  %2851 = vmatmul.f32.gmra.mxu0 %v2740
  %v2852 = vpop.f32.mrf.mxu0
  %v2853 = vadd.f32 0.0, %v2852
  %2854 = vmatmul.f32.gmra.mxu0 %v2743
  %v2855 = vpop.f32.mrf.mxu0
  %v2856 = vadd.f32 0.0, %v2855
  %2857 = vmatmul.f32.gmra.mxu0 %v2746
  %v2858 = vpop.f32.mrf.mxu0
  %v2859 = vadd.f32 0.0, %v2858
  %2860 = vmatmul.f32.gmra.mxu0 %v2749
  %v2861 = vpop.f32.mrf.mxu0
  %v2862 = vadd.f32 0.0, %v2861
  %2863 = vmatmul.f32.gmra.mxu0 %v2752
  %v2864 = vpop.f32.mrf.mxu0
  %v2865 = vadd.f32 0.0, %v2864
  %2866 = vmatmul.f32.gmra.mxu0 %v2755
  %v2867 = vpop.f32.mrf.mxu0
  %v2868 = vadd.f32 0.0, %v2867
  %2869 = vmatmul.f32.gmra.mxu0 %v2758
  %v2870 = vpop.f32.mrf.mxu0
  %v2871 = vadd.f32 0.0, %v2870
  %2872 = vmatmul.f32.gmra.mxu0 %v2761
  %v2873 = vpop.f32.mrf.mxu0
  %v2874 = vadd.f32 0.0, %v2873
  %2875 = vmatmul.f32.gmra.mxu0 %v2764
  %v2876 = vpop.f32.mrf.mxu0
  %v2877 = vadd.f32 0.0, %v2876
  %2878 = vmatmul.f32.gmra.mxu0 %v2767
  %v2879 = vpop.f32.mrf.mxu0
  %v2880 = vadd.f32 0.0, %v2879
  %2881 = vmatmul.f32.gmra.mxu0 %v2770
  %v2882 = vpop.f32.mrf.mxu0
  %v2883 = vadd.f32 0.0, %v2882
  %2884 = vmatmul.f32.gmra.mxu0 %v2773
  %v2885 = vpop.f32.mrf.mxu0
  %v2886 = vadd.f32 0.0, %v2885
  %2887 = vmatmul.f32.gmra.mxu0 %v2776
  %v2888 = vpop.f32.mrf.mxu0
  %v2889 = vadd.f32 0.0, %v2888
  %2890 = vmatmul.f32.gmra.mxu0 %v2779
  %v2891 = vpop.f32.mrf.mxu0
  %v2892 = vadd.f32 0.0, %v2891
  %2893 = vmatmul.f32.gmra.mxu0 %v2782
  %v2894 = vpop.f32.mrf.mxu0
  %v2895 = vadd.f32 0.0, %v2894
  %2896 = vmatmul.f32.gmra.mxu0 %v2785
  %v2897 = vpop.f32.mrf.mxu0
  %v2898 = vadd.f32 0.0, %v2897
  %2899 = vmatmul.f32.gmra.mxu0 %v2788
  %v2900 = vpop.f32.mrf.mxu0
  %v2901 = vadd.f32 0.0, %v2900
  %2902 = vmatmul.f32.gmra.mxu0 %v2791
  %v2903 = vpop.f32.mrf.mxu0
  %v2904 = vadd.f32 0.0, %v2903
  %2905 = vmatmul.f32.gmra.mxu0 %v2794
  %v2906 = vpop.f32.mrf.mxu0
  %v2907 = vadd.f32 0.0, %v2906
  %2908 = vmatmul.f32.gmra.mxu0 %v2797
  %v2909 = vpop.f32.mrf.mxu0
  %v2910 = vadd.f32 0.0, %v2909
  %2911 = vmatmul.f32.gmra.mxu0 %v2800
  %v2912 = vpop.f32.mrf.mxu0
  %v2913 = vadd.f32 0.0, %v2912
  %2914 = vmatmul.f32.gmra.mxu0 %v2803
  %v2915 = vpop.f32.mrf.mxu0
  %v2916 = vadd.f32 0.0, %v2915
  %2917 = vmatmul.f32.gmra.mxu0 %v2806
  %v2918 = vpop.f32.mrf.mxu0
  %v2919 = vadd.f32 0.0, %v2918
  %2920 = vmatmul.f32.gmra.mxu0 %v2809
  %v2921 = vpop.f32.mrf.mxu0
  %v2922 = vadd.f32 0.0, %v2921
  %2923 = vmatmul.f32.gmra.mxu0 %v2812
  %v2924 = vpop.f32.mrf.mxu0
  %v2925 = vadd.f32 0.0, %v2924
  %2926 = vmatmul.f32.gmra.mxu0 %v2815
  %v2927 = vpop.f32.mrf.mxu0
  %v2928 = vadd.f32 0.0, %v2927
  %2929 = vmatmul.f32.gmra.mxu0 %v2818
  %v2930 = vpop.f32.mrf.mxu0
  %v2931 = vadd.f32 0.0, %v2930
  %2932 = vmatmul.f32.gmra.mxu0 %v2821
  %v2933 = vpop.f32.mrf.mxu0
  %v2934 = vadd.f32 0.0, %v2933
  %2935 = vmatmul.f32.gmra.mxu0 %v2824
  %v2936 = vpop.f32.mrf.mxu0
  %v2937 = vadd.f32 0.0, %v2936
  %2938 = vmatmul.f32.gmra.mxu0 %v2827
  %v2939 = vpop.f32.mrf.mxu0
  %v2940 = vadd.f32 0.0, %v2939
  %2941 = vmatmul.f32.gmra.mxu0 %v2830
  %v2942 = vpop.f32.mrf.mxu0
  %v2943 = vadd.f32 0.0, %v2942
  %2944 = vdwg.mxu0
  %v2946 = vsel %vm70, %v2663, 0
  %v2949 = vsel %vm70, %v2664, 0
  %v2952 = vsel %vm70, %v2665, 0
  %v2955 = vsel %vm70, %v2666, 0
  %v2958 = vsel %vm70, %v2667, 0
  %v2961 = vsel %vm70, %v2668, 0
  %v2964 = vsel %vm70, %v2669, 0
  %v2967 = vsel %vm70, %v2670, 0
  %v2970 = vsel %vm70, %v2671, 0
  %v2973 = vsel %vm70, %v2672, 0
  %v2976 = vsel %vm70, %v2673, 0
  %v2979 = vsel %vm70, %v2674, 0
  %v2982 = vsel %vm70, %v2675, 0
  %v2985 = vsel %vm70, %v2676, 0
  %v2988 = vsel %vm70, %v2677, 0
  %v2991 = vsel %vm70, %v2678, 0
  %v2994 = vsel %vm70, %v2679, 0
  %v2997 = vsel %vm70, %v2680, 0
  %v3000 = vsel %vm70, %v2681, 0
  %v3003 = vsel %vm70, %v2682, 0
  %v3006 = vsel %vm70, %v2683, 0
  %v3009 = vsel %vm70, %v2684, 0
  %v3012 = vsel %vm70, %v2685, 0
  %v3015 = vsel %vm70, %v2686, 0
  %v3018 = vsel %vm70, %v2687, 0
  %v3021 = vsel %vm70, %v2688, 0
  %v3024 = vsel %vm70, %v2689, 0
  %v3027 = vsel %vm70, %v2690, 0
  %v3030 = vsel %vm70, %v2691, 0
  %v3033 = vsel %vm70, %v2692, 0
  %v3036 = vsel %vm70, %v2693, 0
  %v3039 = vsel %vm70, %v2694, 0
  %3041 = vmatpush.msra.mxu0 0.0
  %3042 = vmatpush.msra.mxu0 0.0
  %3043 = vmatpush.msra.mxu0 0.0
  %3044 = vmatpush.msra.mxu0 0.0
  %3045 = vmatpush.msra.mxu0 0.0
  %3046 = vmatpush.msra.mxu0 0.0
  %3047 = vmatpush.msra.mxu0 0.0
  %3048 = vmatpush.msra.mxu0 0.0
  %3049 = vmatpush.msra.mxu0 0.0
  %3050 = vmatpush.msra.mxu0 0.0
  %3051 = vmatpush.msra.mxu0 0.0
  %3052 = vmatpush.msra.mxu0 0.0
  %3053 = vmatpush.msra.mxu0 %v2698
  %3054 = vmatpush.msra.mxu0 %v2697
  %3055 = vmatpush.msra.mxu0 %v2696
  %3056 = vmatpush.msra.mxu0 %v2695
  %3057 = vmatmul.f32.gmra.mxu0 %v2946
  %v3058 = vpop.f32.mrf.mxu0
  %v3059 = vadd.f32 %v2850, %v3058
  %3060 = vmatmul.f32.gmra.mxu0 %v2949
  %v3061 = vpop.f32.mrf.mxu0
  %v3062 = vadd.f32 %v2853, %v3061
  %3063 = vmatmul.f32.gmra.mxu0 %v2952
  %v3064 = vpop.f32.mrf.mxu0
  %v3065 = vadd.f32 %v2856, %v3064
  %3066 = vmatmul.f32.gmra.mxu0 %v2955
  %v3067 = vpop.f32.mrf.mxu0
  %v3068 = vadd.f32 %v2859, %v3067
  %3069 = vmatmul.f32.gmra.mxu0 %v2958
  %v3070 = vpop.f32.mrf.mxu0
  %v3071 = vadd.f32 %v2862, %v3070
  %3072 = vmatmul.f32.gmra.mxu0 %v2961
  %v3073 = vpop.f32.mrf.mxu0
  %v3074 = vadd.f32 %v2865, %v3073
  %3075 = vmatmul.f32.gmra.mxu0 %v2964
  %v3076 = vpop.f32.mrf.mxu0
  %v3077 = vadd.f32 %v2868, %v3076
  %3078 = vmatmul.f32.gmra.mxu0 %v2967
  %v3079 = vpop.f32.mrf.mxu0
  %v3080 = vadd.f32 %v2871, %v3079
  %3081 = vmatmul.f32.gmra.mxu0 %v2970
  %v3082 = vpop.f32.mrf.mxu0
  %v3083 = vadd.f32 %v2874, %v3082
  %3084 = vmatmul.f32.gmra.mxu0 %v2973
  %v3085 = vpop.f32.mrf.mxu0
  %v3086 = vadd.f32 %v2877, %v3085
  %3087 = vmatmul.f32.gmra.mxu0 %v2976
  %v3088 = vpop.f32.mrf.mxu0
  %v3089 = vadd.f32 %v2880, %v3088
  %3090 = vmatmul.f32.gmra.mxu0 %v2979
  %v3091 = vpop.f32.mrf.mxu0
  %v3092 = vadd.f32 %v2883, %v3091
  %3093 = vmatmul.f32.gmra.mxu0 %v2982
  %v3094 = vpop.f32.mrf.mxu0
  %v3095 = vadd.f32 %v2886, %v3094
  %3096 = vmatmul.f32.gmra.mxu0 %v2985
  %v3097 = vpop.f32.mrf.mxu0
  %v3098 = vadd.f32 %v2889, %v3097
  %3099 = vmatmul.f32.gmra.mxu0 %v2988
  %v3100 = vpop.f32.mrf.mxu0
  %v3101 = vadd.f32 %v2892, %v3100
  %3102 = vmatmul.f32.gmra.mxu0 %v2991
  %v3103 = vpop.f32.mrf.mxu0
  %v3104 = vadd.f32 %v2895, %v3103
  %3105 = vmatmul.f32.gmra.mxu0 %v2994
  %v3106 = vpop.f32.mrf.mxu0
  %v3107 = vadd.f32 %v2898, %v3106
  %3108 = vmatmul.f32.gmra.mxu0 %v2997
  %v3109 = vpop.f32.mrf.mxu0
  %v3110 = vadd.f32 %v2901, %v3109
  %3111 = vmatmul.f32.gmra.mxu0 %v3000
  %v3112 = vpop.f32.mrf.mxu0
  %v3113 = vadd.f32 %v2904, %v3112
  %3114 = vmatmul.f32.gmra.mxu0 %v3003
  %v3115 = vpop.f32.mrf.mxu0
  %v3116 = vadd.f32 %v2907, %v3115
  %3117 = vmatmul.f32.gmra.mxu0 %v3006
  %v3118 = vpop.f32.mrf.mxu0
  %v3119 = vadd.f32 %v2910, %v3118
  %3120 = vmatmul.f32.gmra.mxu0 %v3009
  %v3121 = vpop.f32.mrf.mxu0
  %v3122 = vadd.f32 %v2913, %v3121
  %3123 = vmatmul.f32.gmra.mxu0 %v3012
  %v3124 = vpop.f32.mrf.mxu0
  %v3125 = vadd.f32 %v2916, %v3124
  %3126 = vmatmul.f32.gmra.mxu0 %v3015
  %v3127 = vpop.f32.mrf.mxu0
  %v3128 = vadd.f32 %v2919, %v3127
  %3129 = vmatmul.f32.gmra.mxu0 %v3018
  %v3130 = vpop.f32.mrf.mxu0
  %v3131 = vadd.f32 %v2922, %v3130
  %3132 = vmatmul.f32.gmra.mxu0 %v3021
  %v3133 = vpop.f32.mrf.mxu0
  %v3134 = vadd.f32 %v2925, %v3133
  %3135 = vmatmul.f32.gmra.mxu0 %v3024
  %v3136 = vpop.f32.mrf.mxu0
  %v3137 = vadd.f32 %v2928, %v3136
  %3138 = vmatmul.f32.gmra.mxu0 %v3027
  %v3139 = vpop.f32.mrf.mxu0
  %v3140 = vadd.f32 %v2931, %v3139
  %3141 = vmatmul.f32.gmra.mxu0 %v3030
  %v3142 = vpop.f32.mrf.mxu0
  %v3143 = vadd.f32 %v2934, %v3142
  %3144 = vmatmul.f32.gmra.mxu0 %v3033
  %v3145 = vpop.f32.mrf.mxu0
  %v3146 = vadd.f32 %v2937, %v3145
  %3147 = vmatmul.f32.gmra.mxu0 %v3036
  %v3148 = vpop.f32.mrf.mxu0
  %v3149 = vadd.f32 %v2940, %v3148
  %3150 = vmatmul.f32.gmra.mxu0 %v3039
  %v3151 = vpop.f32.mrf.mxu0
  %v3152 = vadd.f32 %v2943, %v3151
  %3153 = vdwg.mxu0
  %v3154 = vld [vmem:[#allocation3 + $0x2] sm:$0xff]
  %v3155 = vld [vmem:[#allocation3 + $0xa] sm:$0xff]
  %v3156 = vld [vmem:[#allocation3 + $0x1a] sm:$0xff]
  %v3157 = vld [vmem:[#allocation3 + $0x22] sm:$0xff]
  %v3158 = vld [vmem:[#allocation3 + $0x32] sm:$0xff]
  %v3159 = vld [vmem:[#allocation3 + $0x3a] sm:$0xff]
  %v3160 = vld [vmem:[#allocation3 + $0x4a] sm:$0xff]
  %v3161 = vld [vmem:[#allocation3 + $0x52] sm:$0xff]
  %v3162 = vld [vmem:[#allocation3 + $0x62] sm:$0xff]
  %v3163 = vld [vmem:[#allocation3 + $0x6a] sm:$0xff]
  %v3164 = vld [vmem:[#allocation3 + $0x7a] sm:$0xff]
  %v3165 = vld [vmem:[#allocation3 + $0x82] sm:$0xff]
  %v3166 = vld [vmem:[#allocation3 + $0x92] sm:$0xff]
  %v3167 = vld [vmem:[#allocation3 + $0x9a] sm:$0xff]
  %v3168 = vld [vmem:[#allocation3 + $0xaa] sm:$0xff]
  %v3169 = vld [vmem:[#allocation3 + $0xb2] sm:$0xff]
  %v3170 = vld [vmem:[#allocation3 + $0xc2] sm:$0xff]
  %v3171 = vld [vmem:[#allocation3 + $0xca] sm:$0xff]
  %v3172 = vld [vmem:[#allocation3 + $0xda] sm:$0xff]
  %v3173 = vld [vmem:[#allocation3 + $0xe2] sm:$0xff]
  %v3174 = vld [vmem:[#allocation3 + $0xf2] sm:$0xff]
  %v3175 = vld [vmem:[#allocation3 + $0xfa] sm:$0xff]
  %v3176 = vld [vmem:[#allocation3 + $0x10a] sm:$0xff]
  %v3177 = vld [vmem:[#allocation3 + $0x112] sm:$0xff]
  %v3178 = vld [vmem:[#allocation3 + $0x122] sm:$0xff]
  %v3179 = vld [vmem:[#allocation3 + $0x12a] sm:$0xff]
  %v3180 = vld [vmem:[#allocation3 + $0x13a] sm:$0xff]
  %v3181 = vld [vmem:[#allocation3 + $0x142] sm:$0xff]
  %v3182 = vld [vmem:[#allocation3 + $0x152] sm:$0xff]
  %v3183 = vld [vmem:[#allocation3 + $0x15a] sm:$0xff]
  %v3184 = vld [vmem:[#allocation3 + $0x16a] sm:$0xff]
  %v3185 = vld [vmem:[#allocation3 + $0x172] sm:$0xff]
  %s3186 = scalar_lea.vmem %s2, 64
  %v3187 = vld [vmem:[%s3186] sm:$0xff]
  %v3188 = vld [vmem:[%s3186 + $0x8] sm:$0xff]
  %v3189 = vld [vmem:[%s3186 + $0x10] sm:$0xff]
  %v3190 = vld [vmem:[%s3186 + $0x18] sm:$0xff]
  %v3192 = vsel %vm70, %v3154, 0
  %v3195 = vsel %vm70, %v3155, 0
  %v3198 = vsel %vm70, %v3156, 0
  %v3201 = vsel %vm70, %v3157, 0
  %v3204 = vsel %vm70, %v3158, 0
  %v3207 = vsel %vm70, %v3159, 0
  %v3210 = vsel %vm70, %v3160, 0
  %v3213 = vsel %vm70, %v3161, 0
  %v3216 = vsel %vm70, %v3162, 0
  %v3219 = vsel %vm70, %v3163, 0
  %v3222 = vsel %vm70, %v3164, 0
  %v3225 = vsel %vm70, %v3165, 0
  %v3228 = vsel %vm70, %v3166, 0
  %v3231 = vsel %vm70, %v3167, 0
  %v3234 = vsel %vm70, %v3168, 0
  %v3237 = vsel %vm70, %v3169, 0
  %v3240 = vsel %vm70, %v3170, 0
  %v3243 = vsel %vm70, %v3171, 0
  %v3246 = vsel %vm70, %v3172, 0
  %v3249 = vsel %vm70, %v3173, 0
  %v3252 = vsel %vm70, %v3174, 0
  %v3255 = vsel %vm70, %v3175, 0
  %v3258 = vsel %vm70, %v3176, 0
  %v3261 = vsel %vm70, %v3177, 0
  %v3264 = vsel %vm70, %v3178, 0
  %v3267 = vsel %vm70, %v3179, 0
  %v3270 = vsel %vm70, %v3180, 0
  %v3273 = vsel %vm70, %v3181, 0
  %v3276 = vsel %vm70, %v3182, 0
  %v3279 = vsel %vm70, %v3183, 0
  %v3282 = vsel %vm70, %v3184, 0
  %v3285 = vsel %vm70, %v3185, 0
  %3287 = vmatpush.msra.mxu0 0.0
  %3288 = vmatpush.msra.mxu0 0.0
  %3289 = vmatpush.msra.mxu0 0.0
  %3290 = vmatpush.msra.mxu0 0.0
  %3291 = vmatpush.msra.mxu0 0.0
  %3292 = vmatpush.msra.mxu0 0.0
  %3293 = vmatpush.msra.mxu0 0.0
  %3294 = vmatpush.msra.mxu0 0.0
  %3295 = vmatpush.msra.mxu0 0.0
  %3296 = vmatpush.msra.mxu0 0.0
  %3297 = vmatpush.msra.mxu0 0.0
  %3298 = vmatpush.msra.mxu0 0.0
  %3299 = vmatpush.msra.mxu0 %v3190
  %3300 = vmatpush.msra.mxu0 %v3189
  %3301 = vmatpush.msra.mxu0 %v3188
  %3302 = vmatpush.msra.mxu0 %v3187
  %3303 = vmatmul.f32.gmra.mxu0 %v3192
  %v3304 = vpop.f32.mrf.mxu0
  %v3305 = vadd.f32 0.0, %v3304
  %3306 = vmatmul.f32.gmra.mxu0 %v3195
  %v3307 = vpop.f32.mrf.mxu0
  %v3308 = vadd.f32 0.0, %v3307
  %3309 = vmatmul.f32.gmra.mxu0 %v3198
  %v3310 = vpop.f32.mrf.mxu0
  %v3311 = vadd.f32 0.0, %v3310
  %3312 = vmatmul.f32.gmra.mxu0 %v3201
  %v3313 = vpop.f32.mrf.mxu0
  %v3314 = vadd.f32 0.0, %v3313
  %3315 = vmatmul.f32.gmra.mxu0 %v3204
  %v3316 = vpop.f32.mrf.mxu0
  %v3317 = vadd.f32 0.0, %v3316
  %3318 = vmatmul.f32.gmra.mxu0 %v3207
  %v3319 = vpop.f32.mrf.mxu0
  %v3320 = vadd.f32 0.0, %v3319
  %3321 = vmatmul.f32.gmra.mxu0 %v3210
  %v3322 = vpop.f32.mrf.mxu0
  %v3323 = vadd.f32 0.0, %v3322
  %3324 = vmatmul.f32.gmra.mxu0 %v3213
  %v3325 = vpop.f32.mrf.mxu0
  %v3326 = vadd.f32 0.0, %v3325
  %3327 = vmatmul.f32.gmra.mxu0 %v3216
  %v3328 = vpop.f32.mrf.mxu0
  %v3329 = vadd.f32 0.0, %v3328
  %3330 = vmatmul.f32.gmra.mxu0 %v3219
  %v3331 = vpop.f32.mrf.mxu0
  %v3332 = vadd.f32 0.0, %v3331
  %3333 = vmatmul.f32.gmra.mxu0 %v3222
  %v3334 = vpop.f32.mrf.mxu0
  %v3335 = vadd.f32 0.0, %v3334
  %3336 = vmatmul.f32.gmra.mxu0 %v3225
  %v3337 = vpop.f32.mrf.mxu0
  %v3338 = vadd.f32 0.0, %v3337
  %3339 = vmatmul.f32.gmra.mxu0 %v3228
  %v3340 = vpop.f32.mrf.mxu0
  %v3341 = vadd.f32 0.0, %v3340
  %3342 = vmatmul.f32.gmra.mxu0 %v3231
  %v3343 = vpop.f32.mrf.mxu0
  %v3344 = vadd.f32 0.0, %v3343
  %3345 = vmatmul.f32.gmra.mxu0 %v3234
  %v3346 = vpop.f32.mrf.mxu0
  %v3347 = vadd.f32 0.0, %v3346
  %3348 = vmatmul.f32.gmra.mxu0 %v3237
  %v3349 = vpop.f32.mrf.mxu0
  %v3350 = vadd.f32 0.0, %v3349
  %3351 = vmatmul.f32.gmra.mxu0 %v3240
  %v3352 = vpop.f32.mrf.mxu0
  %v3353 = vadd.f32 0.0, %v3352
  %3354 = vmatmul.f32.gmra.mxu0 %v3243
  %v3355 = vpop.f32.mrf.mxu0
  %v3356 = vadd.f32 0.0, %v3355
  %3357 = vmatmul.f32.gmra.mxu0 %v3246
  %v3358 = vpop.f32.mrf.mxu0
  %v3359 = vadd.f32 0.0, %v3358
  %3360 = vmatmul.f32.gmra.mxu0 %v3249
  %v3361 = vpop.f32.mrf.mxu0
  %v3362 = vadd.f32 0.0, %v3361
  %3363 = vmatmul.f32.gmra.mxu0 %v3252
  %v3364 = vpop.f32.mrf.mxu0
  %v3365 = vadd.f32 0.0, %v3364
  %3366 = vmatmul.f32.gmra.mxu0 %v3255
  %v3367 = vpop.f32.mrf.mxu0
  %v3368 = vadd.f32 0.0, %v3367
  %3369 = vmatmul.f32.gmra.mxu0 %v3258
  %v3370 = vpop.f32.mrf.mxu0
  %v3371 = vadd.f32 0.0, %v3370
  %3372 = vmatmul.f32.gmra.mxu0 %v3261
  %v3373 = vpop.f32.mrf.mxu0
  %v3374 = vadd.f32 0.0, %v3373
  %3375 = vmatmul.f32.gmra.mxu0 %v3264
  %v3376 = vpop.f32.mrf.mxu0
  %v3377 = vadd.f32 0.0, %v3376
  %3378 = vmatmul.f32.gmra.mxu0 %v3267
  %v3379 = vpop.f32.mrf.mxu0
  %v3380 = vadd.f32 0.0, %v3379
  %3381 = vmatmul.f32.gmra.mxu0 %v3270
  %v3382 = vpop.f32.mrf.mxu0
  %v3383 = vadd.f32 0.0, %v3382
  %3384 = vmatmul.f32.gmra.mxu0 %v3273
  %v3385 = vpop.f32.mrf.mxu0
  %v3386 = vadd.f32 0.0, %v3385
  %3387 = vmatmul.f32.gmra.mxu0 %v3276
  %v3388 = vpop.f32.mrf.mxu0
  %v3389 = vadd.f32 0.0, %v3388
  %3390 = vmatmul.f32.gmra.mxu0 %v3279
  %v3391 = vpop.f32.mrf.mxu0
  %v3392 = vadd.f32 0.0, %v3391
  %3393 = vmatmul.f32.gmra.mxu0 %v3282
  %v3394 = vpop.f32.mrf.mxu0
  %v3395 = vadd.f32 0.0, %v3394
  %3396 = vmatmul.f32.gmra.mxu0 %v3285
  %v3397 = vpop.f32.mrf.mxu0
  %v3398 = vadd.f32 0.0, %v3397
  %3399 = vdwg.mxu0
  %v3400 = vadd.f32 %v3059, %v3305
  %v3401 = vadd.f32 %v3062, %v3308
  %v3402 = vadd.f32 %v3065, %v3311
  %v3403 = vadd.f32 %v3068, %v3314
  %v3404 = vadd.f32 %v3071, %v3317
  %v3405 = vadd.f32 %v3074, %v3320
  %v3406 = vadd.f32 %v3077, %v3323
  %v3407 = vadd.f32 %v3080, %v3326
  %v3408 = vadd.f32 %v3083, %v3329
  %v3409 = vadd.f32 %v3086, %v3332
  %v3410 = vadd.f32 %v3089, %v3335
  %v3411 = vadd.f32 %v3092, %v3338
  %v3412 = vadd.f32 %v3095, %v3341
  %v3413 = vadd.f32 %v3098, %v3344
  %v3414 = vadd.f32 %v3101, %v3347
  %v3415 = vadd.f32 %v3104, %v3350
  %v3416 = vadd.f32 %v3107, %v3353
  %v3417 = vadd.f32 %v3110, %v3356
  %v3418 = vadd.f32 %v3113, %v3359
  %v3419 = vadd.f32 %v3116, %v3362
  %v3420 = vadd.f32 %v3119, %v3365
  %v3421 = vadd.f32 %v3122, %v3368
  %v3422 = vadd.f32 %v3125, %v3371
  %v3423 = vadd.f32 %v3128, %v3374
  %v3424 = vadd.f32 %v3131, %v3377
  %v3425 = vadd.f32 %v3134, %v3380
  %v3426 = vadd.f32 %v3137, %v3383
  %v3427 = vadd.f32 %v3140, %v3386
  %v3428 = vadd.f32 %v3143, %v3389
  %v3429 = vadd.f32 %v3146, %v3392
  %v3430 = vadd.f32 %v3149, %v3395
  %v3431 = vadd.f32 %v3152, %v3398
  %v3432 = vld [vmem:[%s2630] sm:$0xff]
  %v3433 = vld [vmem:[%s2630 + $0x8] sm:$0xff]
  %v3434 = vld [vmem:[%s2630 + $0x18] sm:$0xff]
  %v3435 = vld [vmem:[%s2630 + $0x20] sm:$0xff]
  %v3436 = vld [vmem:[%s2630 + $0x30] sm:$0xff]
  %v3437 = vld [vmem:[%s2630 + $0x38] sm:$0xff]
  %v3438 = vld [vmem:[%s2630 + $0x48] sm:$0xff]
  %v3439 = vld [vmem:[%s2630 + $0x50] sm:$0xff]
  %v3440 = vld [vmem:[%s2630 + $0x60] sm:$0xff]
  %v3441 = vld [vmem:[%s2630 + $0x68] sm:$0xff]
  %v3442 = vld [vmem:[%s2630 + $0x78] sm:$0xff]
  %v3443 = vld [vmem:[%s2630 + $0x80] sm:$0xff]
  %v3444 = vld [vmem:[%s2630 + $0x90] sm:$0xff]
  %v3445 = vld [vmem:[%s2630 + $0x98] sm:$0xff]
  %v3446 = vld [vmem:[%s2630 + $0xa8] sm:$0xff]
  %v3447 = vld [vmem:[%s2630 + $0xb0] sm:$0xff]
  %v3448 = vld [vmem:[%s2630 + $0xc0] sm:$0xff]
  %v3449 = vld [vmem:[%s2630 + $0xc8] sm:$0xff]
  %v3450 = vld [vmem:[%s2630 + $0xd8] sm:$0xff]
  %v3451 = vld [vmem:[%s2630 + $0xe0] sm:$0xff]
  %v3452 = vld [vmem:[%s2630 + $0xf0] sm:$0xff]
  %v3453 = vld [vmem:[%s2630 + $0xf8] sm:$0xff]
  %v3454 = vld [vmem:[%s2630 + $0x108] sm:$0xff]
  %v3455 = vld [vmem:[%s2630 + $0x110] sm:$0xff]
  %v3456 = vld [vmem:[%s2630 + $0x120] sm:$0xff]
  %v3457 = vld [vmem:[%s2630 + $0x128] sm:$0xff]
  %v3458 = vld [vmem:[%s2630 + $0x138] sm:$0xff]
  %v3459 = vld [vmem:[%s2630 + $0x140] sm:$0xff]
  %v3460 = vld [vmem:[%s2630 + $0x150] sm:$0xff]
  %v3461 = vld [vmem:[%s2630 + $0x158] sm:$0xff]
  %v3462 = vld [vmem:[%s2630 + $0x168] sm:$0xff]
  %v3463 = vld [vmem:[%s2630 + $0x170] sm:$0xff]
  %s3464 = scalar_lea.vmem %s2, 96
  %v3465 = vld [vmem:[%s3464] sm:$0xff]
  %v3466 = vld [vmem:[%s3464 + $0x8] sm:$0xff]
  %v3467 = vld [vmem:[%s3464 + $0x10] sm:$0xff]
  %v3468 = vld [vmem:[%s3464 + $0x18] sm:$0xff]
  %v3470 = vsel %vm70, %v3432, 0
  %v3473 = vsel %vm70, %v3433, 0
  %v3476 = vsel %vm70, %v3434, 0
  %v3479 = vsel %vm70, %v3435, 0
  %v3482 = vsel %vm70, %v3436, 0
  %v3485 = vsel %vm70, %v3437, 0
  %v3488 = vsel %vm70, %v3438, 0
  %v3491 = vsel %vm70, %v3439, 0
  %v3494 = vsel %vm70, %v3440, 0
  %v3497 = vsel %vm70, %v3441, 0
  %v3500 = vsel %vm70, %v3442, 0
  %v3503 = vsel %vm70, %v3443, 0
  %v3506 = vsel %vm70, %v3444, 0
  %v3509 = vsel %vm70, %v3445, 0
  %v3512 = vsel %vm70, %v3446, 0
  %v3515 = vsel %vm70, %v3447, 0
  %v3518 = vsel %vm70, %v3448, 0
  %v3521 = vsel %vm70, %v3449, 0
  %v3524 = vsel %vm70, %v3450, 0
  %v3527 = vsel %vm70, %v3451, 0
  %v3530 = vsel %vm70, %v3452, 0
  %v3533 = vsel %vm70, %v3453, 0
  %v3536 = vsel %vm70, %v3454, 0
  %v3539 = vsel %vm70, %v3455, 0
  %v3542 = vsel %vm70, %v3456, 0
  %v3545 = vsel %vm70, %v3457, 0
  %v3548 = vsel %vm70, %v3458, 0
  %v3551 = vsel %vm70, %v3459, 0
  %v3554 = vsel %vm70, %v3460, 0
  %v3557 = vsel %vm70, %v3461, 0
  %v3560 = vsel %vm70, %v3462, 0
  %v3563 = vsel %vm70, %v3463, 0
  %3565 = vmatpush.msra.mxu0 0.0
  %3566 = vmatpush.msra.mxu0 0.0
  %3567 = vmatpush.msra.mxu0 0.0
  %3568 = vmatpush.msra.mxu0 0.0
  %3569 = vmatpush.msra.mxu0 0.0
  %3570 = vmatpush.msra.mxu0 0.0
  %3571 = vmatpush.msra.mxu0 0.0
  %3572 = vmatpush.msra.mxu0 0.0
  %3573 = vmatpush.msra.mxu0 0.0
  %3574 = vmatpush.msra.mxu0 0.0
  %3575 = vmatpush.msra.mxu0 0.0
  %3576 = vmatpush.msra.mxu0 0.0
  %3577 = vmatpush.msra.mxu0 %v3468
  %3578 = vmatpush.msra.mxu0 %v3467
  %3579 = vmatpush.msra.mxu0 %v3466
  %3580 = vmatpush.msra.mxu0 %v3465
  %3581 = vmatmul.f32.gmra.mxu0 %v3470
  %v3582 = vpop.f32.mrf.mxu0
  %v3583 = vadd.f32 0.0, %v3582
  %3584 = vmatmul.f32.gmra.mxu0 %v3473
  %v3585 = vpop.f32.mrf.mxu0
  %v3586 = vadd.f32 0.0, %v3585
  %3587 = vmatmul.f32.gmra.mxu0 %v3476
  %v3588 = vpop.f32.mrf.mxu0
  %v3589 = vadd.f32 0.0, %v3588
  %3590 = vmatmul.f32.gmra.mxu0 %v3479
  %v3591 = vpop.f32.mrf.mxu0
  %v3592 = vadd.f32 0.0, %v3591
  %3593 = vmatmul.f32.gmra.mxu0 %v3482
  %v3594 = vpop.f32.mrf.mxu0
  %v3595 = vadd.f32 0.0, %v3594
  %3596 = vmatmul.f32.gmra.mxu0 %v3485
  %v3597 = vpop.f32.mrf.mxu0
  %v3598 = vadd.f32 0.0, %v3597
  %3599 = vmatmul.f32.gmra.mxu0 %v3488
  %v3600 = vpop.f32.mrf.mxu0
  %v3601 = vadd.f32 0.0, %v3600
  %3602 = vmatmul.f32.gmra.mxu0 %v3491
  %v3603 = vpop.f32.mrf.mxu0
  %v3604 = vadd.f32 0.0, %v3603
  %3605 = vmatmul.f32.gmra.mxu0 %v3494
  %v3606 = vpop.f32.mrf.mxu0
  %v3607 = vadd.f32 0.0, %v3606
  %3608 = vmatmul.f32.gmra.mxu0 %v3497
  %v3609 = vpop.f32.mrf.mxu0
  %v3610 = vadd.f32 0.0, %v3609
  %3611 = vmatmul.f32.gmra.mxu0 %v3500
  %v3612 = vpop.f32.mrf.mxu0
  %v3613 = vadd.f32 0.0, %v3612
  %3614 = vmatmul.f32.gmra.mxu0 %v3503
  %v3615 = vpop.f32.mrf.mxu0
  %v3616 = vadd.f32 0.0, %v3615
  %3617 = vmatmul.f32.gmra.mxu0 %v3506
  %v3618 = vpop.f32.mrf.mxu0
  %v3619 = vadd.f32 0.0, %v3618
  %3620 = vmatmul.f32.gmra.mxu0 %v3509
  %v3621 = vpop.f32.mrf.mxu0
  %v3622 = vadd.f32 0.0, %v3621
  %3623 = vmatmul.f32.gmra.mxu0 %v3512
  %v3624 = vpop.f32.mrf.mxu0
  %v3625 = vadd.f32 0.0, %v3624
  %3626 = vmatmul.f32.gmra.mxu0 %v3515
  %v3627 = vpop.f32.mrf.mxu0
  %v3628 = vadd.f32 0.0, %v3627
  %3629 = vmatmul.f32.gmra.mxu0 %v3518
  %v3630 = vpop.f32.mrf.mxu0
  %v3631 = vadd.f32 0.0, %v3630
  %3632 = vmatmul.f32.gmra.mxu0 %v3521
  %v3633 = vpop.f32.mrf.mxu0
  %v3634 = vadd.f32 0.0, %v3633
  %3635 = vmatmul.f32.gmra.mxu0 %v3524
  %v3636 = vpop.f32.mrf.mxu0
  %v3637 = vadd.f32 0.0, %v3636
  %3638 = vmatmul.f32.gmra.mxu0 %v3527
  %v3639 = vpop.f32.mrf.mxu0
  %v3640 = vadd.f32 0.0, %v3639
  %3641 = vmatmul.f32.gmra.mxu0 %v3530
  %v3642 = vpop.f32.mrf.mxu0
  %v3643 = vadd.f32 0.0, %v3642
  %3644 = vmatmul.f32.gmra.mxu0 %v3533
  %v3645 = vpop.f32.mrf.mxu0
  %v3646 = vadd.f32 0.0, %v3645
  %3647 = vmatmul.f32.gmra.mxu0 %v3536
  %v3648 = vpop.f32.mrf.mxu0
  %v3649 = vadd.f32 0.0, %v3648
  %3650 = vmatmul.f32.gmra.mxu0 %v3539
  %v3651 = vpop.f32.mrf.mxu0
  %v3652 = vadd.f32 0.0, %v3651
  %3653 = vmatmul.f32.gmra.mxu0 %v3542
  %v3654 = vpop.f32.mrf.mxu0
  %v3655 = vadd.f32 0.0, %v3654
  %3656 = vmatmul.f32.gmra.mxu0 %v3545
  %v3657 = vpop.f32.mrf.mxu0
  %v3658 = vadd.f32 0.0, %v3657
  %3659 = vmatmul.f32.gmra.mxu0 %v3548
  %v3660 = vpop.f32.mrf.mxu0
  %v3661 = vadd.f32 0.0, %v3660
  %3662 = vmatmul.f32.gmra.mxu0 %v3551
  %v3663 = vpop.f32.mrf.mxu0
  %v3664 = vadd.f32 0.0, %v3663
  %3665 = vmatmul.f32.gmra.mxu0 %v3554
  %v3666 = vpop.f32.mrf.mxu0
  %v3667 = vadd.f32 0.0, %v3666
  %3668 = vmatmul.f32.gmra.mxu0 %v3557
  %v3669 = vpop.f32.mrf.mxu0
  %v3670 = vadd.f32 0.0, %v3669
  %3671 = vmatmul.f32.gmra.mxu0 %v3560
  %v3672 = vpop.f32.mrf.mxu0
  %v3673 = vadd.f32 0.0, %v3672
  %3674 = vmatmul.f32.gmra.mxu0 %v3563
  %v3675 = vpop.f32.mrf.mxu0
  %v3676 = vadd.f32 0.0, %v3675
  %3677 = vdwg.mxu0
  %v3678 = vadd.f32 %v3400, %v3583
  %v3679 = vadd.f32 %v3401, %v3586
  %v3680 = vadd.f32 %v3402, %v3589
  %v3681 = vadd.f32 %v3403, %v3592
  %v3682 = vadd.f32 %v3404, %v3595
  %v3683 = vadd.f32 %v3405, %v3598
  %v3684 = vadd.f32 %v3406, %v3601
  %v3685 = vadd.f32 %v3407, %v3604
  %v3686 = vadd.f32 %v3408, %v3607
  %v3687 = vadd.f32 %v3409, %v3610
  %v3688 = vadd.f32 %v3410, %v3613
  %v3689 = vadd.f32 %v3411, %v3616
  %v3690 = vadd.f32 %v3412, %v3619
  %v3691 = vadd.f32 %v3413, %v3622
  %v3692 = vadd.f32 %v3414, %v3625
  %v3693 = vadd.f32 %v3415, %v3628
  %v3694 = vadd.f32 %v3416, %v3631
  %v3695 = vadd.f32 %v3417, %v3634
  %v3696 = vadd.f32 %v3418, %v3637
  %v3697 = vadd.f32 %v3419, %v3640
  %v3698 = vadd.f32 %v3420, %v3643
  %v3699 = vadd.f32 %v3421, %v3646
  %v3700 = vadd.f32 %v3422, %v3649
  %v3701 = vadd.f32 %v3423, %v3652
  %v3702 = vadd.f32 %v3424, %v3655
  %v3703 = vadd.f32 %v3425, %v3658
  %v3704 = vadd.f32 %v3426, %v3661
  %v3705 = vadd.f32 %v3427, %v3664
  %v3706 = vadd.f32 %v3428, %v3667
  %v3707 = vadd.f32 %v3429, %v3670
  %v3708 = vadd.f32 %v3430, %v3673
  %v3709 = vadd.f32 %v3431, %v3676
  %v3710 = vld [vmem:[%s2630 + $0x1] sm:$0xff]
  %v3711 = vld [vmem:[%s2630 + $0x9] sm:$0xff]
  %v3712 = vld [vmem:[%s2630 + $0x19] sm:$0xff]
  %v3713 = vld [vmem:[%s2630 + $0x21] sm:$0xff]
  %v3714 = vld [vmem:[%s2630 + $0x31] sm:$0xff]
  %v3715 = vld [vmem:[%s2630 + $0x39] sm:$0xff]
  %v3716 = vld [vmem:[%s2630 + $0x49] sm:$0xff]
  %v3717 = vld [vmem:[%s2630 + $0x51] sm:$0xff]
  %v3718 = vld [vmem:[%s2630 + $0x61] sm:$0xff]
  %v3719 = vld [vmem:[%s2630 + $0x69] sm:$0xff]
  %v3720 = vld [vmem:[%s2630 + $0x79] sm:$0xff]
  %v3721 = vld [vmem:[%s2630 + $0x81] sm:$0xff]
  %v3722 = vld [vmem:[%s2630 + $0x91] sm:$0xff]
  %v3723 = vld [vmem:[%s2630 + $0x99] sm:$0xff]
  %v3724 = vld [vmem:[%s2630 + $0xa9] sm:$0xff]
  %v3725 = vld [vmem:[%s2630 + $0xb1] sm:$0xff]
  %v3726 = vld [vmem:[%s2630 + $0xc1] sm:$0xff]
  %v3727 = vld [vmem:[%s2630 + $0xc9] sm:$0xff]
  %v3728 = vld [vmem:[%s2630 + $0xd9] sm:$0xff]
  %v3729 = vld [vmem:[%s2630 + $0xe1] sm:$0xff]
  %v3730 = vld [vmem:[%s2630 + $0xf1] sm:$0xff]
  %v3731 = vld [vmem:[%s2630 + $0xf9] sm:$0xff]
  %v3732 = vld [vmem:[%s2630 + $0x109] sm:$0xff]
  %v3733 = vld [vmem:[%s2630 + $0x111] sm:$0xff]
  %v3734 = vld [vmem:[%s2630 + $0x121] sm:$0xff]
  %v3735 = vld [vmem:[%s2630 + $0x129] sm:$0xff]
  %v3736 = vld [vmem:[%s2630 + $0x139] sm:$0xff]
  %v3737 = vld [vmem:[%s2630 + $0x141] sm:$0xff]
  %v3738 = vld [vmem:[%s2630 + $0x151] sm:$0xff]
  %v3739 = vld [vmem:[%s2630 + $0x159] sm:$0xff]
  %v3740 = vld [vmem:[%s2630 + $0x169] sm:$0xff]
  %v3741 = vld [vmem:[%s2630 + $0x171] sm:$0xff]
  %s3742 = scalar_lea.vmem %s2, 128
  %v3743 = vld [vmem:[%s3742] sm:$0xff]
  %v3744 = vld [vmem:[%s3742 + $0x8] sm:$0xff]
  %v3745 = vld [vmem:[%s3742 + $0x10] sm:$0xff]
  %v3746 = vld [vmem:[%s3742 + $0x18] sm:$0xff]
  %v3748 = vsel %vm70, %v3710, 0
  %v3751 = vsel %vm70, %v3711, 0
  %v3754 = vsel %vm70, %v3712, 0
  %v3757 = vsel %vm70, %v3713, 0
  %v3760 = vsel %vm70, %v3714, 0
  %v3763 = vsel %vm70, %v3715, 0
  %v3766 = vsel %vm70, %v3716, 0
  %v3769 = vsel %vm70, %v3717, 0
  %v3772 = vsel %vm70, %v3718, 0
  %v3775 = vsel %vm70, %v3719, 0
  %v3778 = vsel %vm70, %v3720, 0
  %v3781 = vsel %vm70, %v3721, 0
  %v3784 = vsel %vm70, %v3722, 0
  %v3787 = vsel %vm70, %v3723, 0
  %v3790 = vsel %vm70, %v3724, 0
  %v3793 = vsel %vm70, %v3725, 0
  %v3796 = vsel %vm70, %v3726, 0
  %v3799 = vsel %vm70, %v3727, 0
  %v3802 = vsel %vm70, %v3728, 0
  %v3805 = vsel %vm70, %v3729, 0
  %v3808 = vsel %vm70, %v3730, 0
  %v3811 = vsel %vm70, %v3731, 0
  %v3814 = vsel %vm70, %v3732, 0
  %v3817 = vsel %vm70, %v3733, 0
  %v3820 = vsel %vm70, %v3734, 0
  %v3823 = vsel %vm70, %v3735, 0
  %v3826 = vsel %vm70, %v3736, 0
  %v3829 = vsel %vm70, %v3737, 0
  %v3832 = vsel %vm70, %v3738, 0
  %v3835 = vsel %vm70, %v3739, 0
  %v3838 = vsel %vm70, %v3740, 0
  %v3841 = vsel %vm70, %v3741, 0
  %3843 = vmatpush.msra.mxu0 0.0
  %3844 = vmatpush.msra.mxu0 0.0
  %3845 = vmatpush.msra.mxu0 0.0
  %3846 = vmatpush.msra.mxu0 0.0
  %3847 = vmatpush.msra.mxu0 0.0
  %3848 = vmatpush.msra.mxu0 0.0
  %3849 = vmatpush.msra.mxu0 0.0
  %3850 = vmatpush.msra.mxu0 0.0
  %3851 = vmatpush.msra.mxu0 0.0
  %3852 = vmatpush.msra.mxu0 0.0
  %3853 = vmatpush.msra.mxu0 0.0
  %3854 = vmatpush.msra.mxu0 0.0
  %3855 = vmatpush.msra.mxu0 %v3746
  %3856 = vmatpush.msra.mxu0 %v3745
  %3857 = vmatpush.msra.mxu0 %v3744
  %3858 = vmatpush.msra.mxu0 %v3743
  %3859 = vmatmul.f32.gmra.mxu0 %v3748
  %v3860 = vpop.f32.mrf.mxu0
  %v3861 = vadd.f32 0.0, %v3860
  %3862 = vmatmul.f32.gmra.mxu0 %v3751
  %v3863 = vpop.f32.mrf.mxu0
  %v3864 = vadd.f32 0.0, %v3863
  %3865 = vmatmul.f32.gmra.mxu0 %v3754
  %v3866 = vpop.f32.mrf.mxu0
  %v3867 = vadd.f32 0.0, %v3866
  %3868 = vmatmul.f32.gmra.mxu0 %v3757
  %v3869 = vpop.f32.mrf.mxu0
  %v3870 = vadd.f32 0.0, %v3869
  %3871 = vmatmul.f32.gmra.mxu0 %v3760
  %v3872 = vpop.f32.mrf.mxu0
  %v3873 = vadd.f32 0.0, %v3872
  %3874 = vmatmul.f32.gmra.mxu0 %v3763
  %v3875 = vpop.f32.mrf.mxu0
  %v3876 = vadd.f32 0.0, %v3875
  %3877 = vmatmul.f32.gmra.mxu0 %v3766
  %v3878 = vpop.f32.mrf.mxu0
  %v3879 = vadd.f32 0.0, %v3878
  %3880 = vmatmul.f32.gmra.mxu0 %v3769
  %v3881 = vpop.f32.mrf.mxu0
  %v3882 = vadd.f32 0.0, %v3881
  %3883 = vmatmul.f32.gmra.mxu0 %v3772
  %v3884 = vpop.f32.mrf.mxu0
  %v3885 = vadd.f32 0.0, %v3884
  %3886 = vmatmul.f32.gmra.mxu0 %v3775
  %v3887 = vpop.f32.mrf.mxu0
  %v3888 = vadd.f32 0.0, %v3887
  %3889 = vmatmul.f32.gmra.mxu0 %v3778
  %v3890 = vpop.f32.mrf.mxu0
  %v3891 = vadd.f32 0.0, %v3890
  %3892 = vmatmul.f32.gmra.mxu0 %v3781
  %v3893 = vpop.f32.mrf.mxu0
  %v3894 = vadd.f32 0.0, %v3893
  %3895 = vmatmul.f32.gmra.mxu0 %v3784
  %v3896 = vpop.f32.mrf.mxu0
  %v3897 = vadd.f32 0.0, %v3896
  %3898 = vmatmul.f32.gmra.mxu0 %v3787
  %v3899 = vpop.f32.mrf.mxu0
  %v3900 = vadd.f32 0.0, %v3899
  %3901 = vmatmul.f32.gmra.mxu0 %v3790
  %v3902 = vpop.f32.mrf.mxu0
  %v3903 = vadd.f32 0.0, %v3902
  %3904 = vmatmul.f32.gmra.mxu0 %v3793
  %v3905 = vpop.f32.mrf.mxu0
  %v3906 = vadd.f32 0.0, %v3905
  %3907 = vmatmul.f32.gmra.mxu0 %v3796
  %v3908 = vpop.f32.mrf.mxu0
  %v3909 = vadd.f32 0.0, %v3908
  %3910 = vmatmul.f32.gmra.mxu0 %v3799
  %v3911 = vpop.f32.mrf.mxu0
  %v3912 = vadd.f32 0.0, %v3911
  %3913 = vmatmul.f32.gmra.mxu0 %v3802
  %v3914 = vpop.f32.mrf.mxu0
  %v3915 = vadd.f32 0.0, %v3914
  %3916 = vmatmul.f32.gmra.mxu0 %v3805
  %v3917 = vpop.f32.mrf.mxu0
  %v3918 = vadd.f32 0.0, %v3917
  %3919 = vmatmul.f32.gmra.mxu0 %v3808
  %v3920 = vpop.f32.mrf.mxu0
  %v3921 = vadd.f32 0.0, %v3920
  %3922 = vmatmul.f32.gmra.mxu0 %v3811
  %v3923 = vpop.f32.mrf.mxu0
  %v3924 = vadd.f32 0.0, %v3923
  %3925 = vmatmul.f32.gmra.mxu0 %v3814
  %v3926 = vpop.f32.mrf.mxu0
  %v3927 = vadd.f32 0.0, %v3926
  %3928 = vmatmul.f32.gmra.mxu0 %v3817
  %v3929 = vpop.f32.mrf.mxu0
  %v3930 = vadd.f32 0.0, %v3929
  %3931 = vmatmul.f32.gmra.mxu0 %v3820
  %v3932 = vpop.f32.mrf.mxu0
  %v3933 = vadd.f32 0.0, %v3932
  %3934 = vmatmul.f32.gmra.mxu0 %v3823
  %v3935 = vpop.f32.mrf.mxu0
  %v3936 = vadd.f32 0.0, %v3935
  %3937 = vmatmul.f32.gmra.mxu0 %v3826
  %v3938 = vpop.f32.mrf.mxu0
  %v3939 = vadd.f32 0.0, %v3938
  %3940 = vmatmul.f32.gmra.mxu0 %v3829
  %v3941 = vpop.f32.mrf.mxu0
  %v3942 = vadd.f32 0.0, %v3941
  %3943 = vmatmul.f32.gmra.mxu0 %v3832
  %v3944 = vpop.f32.mrf.mxu0
  %v3945 = vadd.f32 0.0, %v3944
  %3946 = vmatmul.f32.gmra.mxu0 %v3835
  %v3947 = vpop.f32.mrf.mxu0
  %v3948 = vadd.f32 0.0, %v3947
  %3949 = vmatmul.f32.gmra.mxu0 %v3838
  %v3950 = vpop.f32.mrf.mxu0
  %v3951 = vadd.f32 0.0, %v3950
  %3952 = vmatmul.f32.gmra.mxu0 %v3841
  %v3953 = vpop.f32.mrf.mxu0
  %v3954 = vadd.f32 0.0, %v3953
  %3955 = vdwg.mxu0
  %v3956 = vadd.f32 %v3678, %v3861
  %v3957 = vadd.f32 %v3679, %v3864
  %v3958 = vadd.f32 %v3680, %v3867
  %v3959 = vadd.f32 %v3681, %v3870
  %v3960 = vadd.f32 %v3682, %v3873
  %v3961 = vadd.f32 %v3683, %v3876
  %v3962 = vadd.f32 %v3684, %v3879
  %v3963 = vadd.f32 %v3685, %v3882
  %v3964 = vadd.f32 %v3686, %v3885
  %v3965 = vadd.f32 %v3687, %v3888
  %v3966 = vadd.f32 %v3688, %v3891
  %v3967 = vadd.f32 %v3689, %v3894
  %v3968 = vadd.f32 %v3690, %v3897
  %v3969 = vadd.f32 %v3691, %v3900
  %v3970 = vadd.f32 %v3692, %v3903
  %v3971 = vadd.f32 %v3693, %v3906
  %v3972 = vadd.f32 %v3694, %v3909
  %v3973 = vadd.f32 %v3695, %v3912
  %v3974 = vadd.f32 %v3696, %v3915
  %v3975 = vadd.f32 %v3697, %v3918
  %v3976 = vadd.f32 %v3698, %v3921
  %v3977 = vadd.f32 %v3699, %v3924
  %v3978 = vadd.f32 %v3700, %v3927
  %v3979 = vadd.f32 %v3701, %v3930
  %v3980 = vadd.f32 %v3702, %v3933
  %v3981 = vadd.f32 %v3703, %v3936
  %v3982 = vadd.f32 %v3704, %v3939
  %v3983 = vadd.f32 %v3705, %v3942
  %v3984 = vadd.f32 %v3706, %v3945
  %v3985 = vadd.f32 %v3707, %v3948
  %v3986 = vadd.f32 %v3708, %v3951
  %v3987 = vadd.f32 %v3709, %v3954
  %v3988 = vld [vmem:[%s2630 + $0x2] sm:$0xff]
  %v3989 = vld [vmem:[%s2630 + $0xa] sm:$0xff]
  %v3990 = vld [vmem:[%s2630 + $0x1a] sm:$0xff]
  %v3991 = vld [vmem:[%s2630 + $0x22] sm:$0xff]
  %v3992 = vld [vmem:[%s2630 + $0x32] sm:$0xff]
  %v3993 = vld [vmem:[%s2630 + $0x3a] sm:$0xff]
  %v3994 = vld [vmem:[%s2630 + $0x4a] sm:$0xff]
  %v3995 = vld [vmem:[%s2630 + $0x52] sm:$0xff]
  %v3996 = vld [vmem:[%s2630 + $0x62] sm:$0xff]
  %v3997 = vld [vmem:[%s2630 + $0x6a] sm:$0xff]
  %v3998 = vld [vmem:[%s2630 + $0x7a] sm:$0xff]
  %v3999 = vld [vmem:[%s2630 + $0x82] sm:$0xff]
  %v4000 = vld [vmem:[%s2630 + $0x92] sm:$0xff]
  %v4001 = vld [vmem:[%s2630 + $0x9a] sm:$0xff]
  %v4002 = vld [vmem:[%s2630 + $0xaa] sm:$0xff]
  %v4003 = vld [vmem:[%s2630 + $0xb2] sm:$0xff]
  %v4004 = vld [vmem:[%s2630 + $0xc2] sm:$0xff]
  %v4005 = vld [vmem:[%s2630 + $0xca] sm:$0xff]
  %v4006 = vld [vmem:[%s2630 + $0xda] sm:$0xff]
  %v4007 = vld [vmem:[%s2630 + $0xe2] sm:$0xff]
  %v4008 = vld [vmem:[%s2630 + $0xf2] sm:$0xff]
  %v4009 = vld [vmem:[%s2630 + $0xfa] sm:$0xff]
  %v4010 = vld [vmem:[%s2630 + $0x10a] sm:$0xff]
  %v4011 = vld [vmem:[%s2630 + $0x112] sm:$0xff]
  %v4012 = vld [vmem:[%s2630 + $0x122] sm:$0xff]
  %v4013 = vld [vmem:[%s2630 + $0x12a] sm:$0xff]
  %v4014 = vld [vmem:[%s2630 + $0x13a] sm:$0xff]
  %v4015 = vld [vmem:[%s2630 + $0x142] sm:$0xff]
  %v4016 = vld [vmem:[%s2630 + $0x152] sm:$0xff]
  %v4017 = vld [vmem:[%s2630 + $0x15a] sm:$0xff]
  %v4018 = vld [vmem:[%s2630 + $0x16a] sm:$0xff]
  %v4019 = vld [vmem:[%s2630 + $0x172] sm:$0xff]
  %s4020 = scalar_lea.vmem %s2, 160
  %v4021 = vld [vmem:[%s4020] sm:$0xff]
  %v4022 = vld [vmem:[%s4020 + $0x8] sm:$0xff]
  %v4023 = vld [vmem:[%s4020 + $0x10] sm:$0xff]
  %v4024 = vld [vmem:[%s4020 + $0x18] sm:$0xff]
  %v4026 = vsel %vm70, %v3988, 0
  %v4029 = vsel %vm70, %v3989, 0
  %v4032 = vsel %vm70, %v3990, 0
  %v4035 = vsel %vm70, %v3991, 0
  %v4038 = vsel %vm70, %v3992, 0
  %v4041 = vsel %vm70, %v3993, 0
  %v4044 = vsel %vm70, %v3994, 0
  %v4047 = vsel %vm70, %v3995, 0
  %v4050 = vsel %vm70, %v3996, 0
  %v4053 = vsel %vm70, %v3997, 0
  %v4056 = vsel %vm70, %v3998, 0
  %v4059 = vsel %vm70, %v3999, 0
  %v4062 = vsel %vm70, %v4000, 0
  %v4065 = vsel %vm70, %v4001, 0
  %v4068 = vsel %vm70, %v4002, 0
  %v4071 = vsel %vm70, %v4003, 0
  %v4074 = vsel %vm70, %v4004, 0
  %v4077 = vsel %vm70, %v4005, 0
  %v4080 = vsel %vm70, %v4006, 0
  %v4083 = vsel %vm70, %v4007, 0
  %v4086 = vsel %vm70, %v4008, 0
  %v4089 = vsel %vm70, %v4009, 0
  %v4092 = vsel %vm70, %v4010, 0
  %v4095 = vsel %vm70, %v4011, 0
  %v4098 = vsel %vm70, %v4012, 0
  %v4101 = vsel %vm70, %v4013, 0
  %v4104 = vsel %vm70, %v4014, 0
  %v4107 = vsel %vm70, %v4015, 0
  %v4110 = vsel %vm70, %v4016, 0
  %v4113 = vsel %vm70, %v4017, 0
  %v4116 = vsel %vm70, %v4018, 0
  %v4119 = vsel %vm70, %v4019, 0
  %4121 = vmatpush.msra.mxu0 0.0
  %4122 = vmatpush.msra.mxu0 0.0
  %4123 = vmatpush.msra.mxu0 0.0
  %4124 = vmatpush.msra.mxu0 0.0
  %4125 = vmatpush.msra.mxu0 0.0
  %4126 = vmatpush.msra.mxu0 0.0
  %4127 = vmatpush.msra.mxu0 0.0
  %4128 = vmatpush.msra.mxu0 0.0
  %4129 = vmatpush.msra.mxu0 0.0
  %4130 = vmatpush.msra.mxu0 0.0
  %4131 = vmatpush.msra.mxu0 0.0
  %4132 = vmatpush.msra.mxu0 0.0
  %4133 = vmatpush.msra.mxu0 %v4024
  %4134 = vmatpush.msra.mxu0 %v4023
  %4135 = vmatpush.msra.mxu0 %v4022
  %4136 = vmatpush.msra.mxu0 %v4021
  %4137 = vmatmul.f32.gmra.mxu0 %v4026
  %v4138 = vpop.f32.mrf.mxu0
  %v4139 = vadd.f32 0.0, %v4138
  %4140 = vmatmul.f32.gmra.mxu0 %v4029
  %v4141 = vpop.f32.mrf.mxu0
  %v4142 = vadd.f32 0.0, %v4141
  %4143 = vmatmul.f32.gmra.mxu0 %v4032
  %v4144 = vpop.f32.mrf.mxu0
  %v4145 = vadd.f32 0.0, %v4144
  %4146 = vmatmul.f32.gmra.mxu0 %v4035
  %v4147 = vpop.f32.mrf.mxu0
  %v4148 = vadd.f32 0.0, %v4147
  %4149 = vmatmul.f32.gmra.mxu0 %v4038
  %v4150 = vpop.f32.mrf.mxu0
  %v4151 = vadd.f32 0.0, %v4150
  %4152 = vmatmul.f32.gmra.mxu0 %v4041
  %v4153 = vpop.f32.mrf.mxu0
  %v4154 = vadd.f32 0.0, %v4153
  %4155 = vmatmul.f32.gmra.mxu0 %v4044
  %v4156 = vpop.f32.mrf.mxu0
  %v4157 = vadd.f32 0.0, %v4156
  %4158 = vmatmul.f32.gmra.mxu0 %v4047
  %v4159 = vpop.f32.mrf.mxu0
  %v4160 = vadd.f32 0.0, %v4159
  %4161 = vmatmul.f32.gmra.mxu0 %v4050
  %v4162 = vpop.f32.mrf.mxu0
  %v4163 = vadd.f32 0.0, %v4162
  %4164 = vmatmul.f32.gmra.mxu0 %v4053
  %v4165 = vpop.f32.mrf.mxu0
  %v4166 = vadd.f32 0.0, %v4165
  %4167 = vmatmul.f32.gmra.mxu0 %v4056
  %v4168 = vpop.f32.mrf.mxu0
  %v4169 = vadd.f32 0.0, %v4168
  %4170 = vmatmul.f32.gmra.mxu0 %v4059
  %v4171 = vpop.f32.mrf.mxu0
  %v4172 = vadd.f32 0.0, %v4171
  %4173 = vmatmul.f32.gmra.mxu0 %v4062
  %v4174 = vpop.f32.mrf.mxu0
  %v4175 = vadd.f32 0.0, %v4174
  %4176 = vmatmul.f32.gmra.mxu0 %v4065
  %v4177 = vpop.f32.mrf.mxu0
  %v4178 = vadd.f32 0.0, %v4177
  %4179 = vmatmul.f32.gmra.mxu0 %v4068
  %v4180 = vpop.f32.mrf.mxu0
  %v4181 = vadd.f32 0.0, %v4180
  %4182 = vmatmul.f32.gmra.mxu0 %v4071
  %v4183 = vpop.f32.mrf.mxu0
  %v4184 = vadd.f32 0.0, %v4183
  %4185 = vmatmul.f32.gmra.mxu0 %v4074
  %v4186 = vpop.f32.mrf.mxu0
  %v4187 = vadd.f32 0.0, %v4186
  %4188 = vmatmul.f32.gmra.mxu0 %v4077
  %v4189 = vpop.f32.mrf.mxu0
  %v4190 = vadd.f32 0.0, %v4189
  %4191 = vmatmul.f32.gmra.mxu0 %v4080
  %v4192 = vpop.f32.mrf.mxu0
  %v4193 = vadd.f32 0.0, %v4192
  %4194 = vmatmul.f32.gmra.mxu0 %v4083
  %v4195 = vpop.f32.mrf.mxu0
  %v4196 = vadd.f32 0.0, %v4195
  %4197 = vmatmul.f32.gmra.mxu0 %v4086
  %v4198 = vpop.f32.mrf.mxu0
  %v4199 = vadd.f32 0.0, %v4198
  %4200 = vmatmul.f32.gmra.mxu0 %v4089
  %v4201 = vpop.f32.mrf.mxu0
  %v4202 = vadd.f32 0.0, %v4201
  %4203 = vmatmul.f32.gmra.mxu0 %v4092
  %v4204 = vpop.f32.mrf.mxu0
  %v4205 = vadd.f32 0.0, %v4204
  %4206 = vmatmul.f32.gmra.mxu0 %v4095
  %v4207 = vpop.f32.mrf.mxu0
  %v4208 = vadd.f32 0.0, %v4207
  %4209 = vmatmul.f32.gmra.mxu0 %v4098
  %v4210 = vpop.f32.mrf.mxu0
  %v4211 = vadd.f32 0.0, %v4210
  %4212 = vmatmul.f32.gmra.mxu0 %v4101
  %v4213 = vpop.f32.mrf.mxu0
  %v4214 = vadd.f32 0.0, %v4213
  %4215 = vmatmul.f32.gmra.mxu0 %v4104
  %v4216 = vpop.f32.mrf.mxu0
  %v4217 = vadd.f32 0.0, %v4216
  %4218 = vmatmul.f32.gmra.mxu0 %v4107
  %v4219 = vpop.f32.mrf.mxu0
  %v4220 = vadd.f32 0.0, %v4219
  %4221 = vmatmul.f32.gmra.mxu0 %v4110
  %v4222 = vpop.f32.mrf.mxu0
  %v4223 = vadd.f32 0.0, %v4222
  %4224 = vmatmul.f32.gmra.mxu0 %v4113
  %v4225 = vpop.f32.mrf.mxu0
  %v4226 = vadd.f32 0.0, %v4225
  %4227 = vmatmul.f32.gmra.mxu0 %v4116
  %v4228 = vpop.f32.mrf.mxu0
  %v4229 = vadd.f32 0.0, %v4228
  %4230 = vmatmul.f32.gmra.mxu0 %v4119
  %v4231 = vpop.f32.mrf.mxu0
  %v4232 = vadd.f32 0.0, %v4231
  %4233 = vdwg.mxu0
  %v4234 = vadd.f32 %v3956, %v4139
  %v4235 = vadd.f32 %v3957, %v4142
  %v4236 = vadd.f32 %v3958, %v4145
  %v4237 = vadd.f32 %v3959, %v4148
  %v4238 = vadd.f32 %v3960, %v4151
  %v4239 = vadd.f32 %v3961, %v4154
  %v4240 = vadd.f32 %v3962, %v4157
  %v4241 = vadd.f32 %v3963, %v4160
  %v4242 = vadd.f32 %v3964, %v4163
  %v4243 = vadd.f32 %v3965, %v4166
  %v4244 = vadd.f32 %v3966, %v4169
  %v4245 = vadd.f32 %v3967, %v4172
  %v4246 = vadd.f32 %v3968, %v4175
  %v4247 = vadd.f32 %v3969, %v4178
  %v4248 = vadd.f32 %v3970, %v4181
  %v4249 = vadd.f32 %v3971, %v4184
  %v4250 = vadd.f32 %v3972, %v4187
  %v4251 = vadd.f32 %v3973, %v4190
  %v4252 = vadd.f32 %v3974, %v4193
  %v4253 = vadd.f32 %v3975, %v4196
  %v4254 = vadd.f32 %v3976, %v4199
  %v4255 = vadd.f32 %v3977, %v4202
  %v4256 = vadd.f32 %v3978, %v4205
  %v4257 = vadd.f32 %v3979, %v4208
  %v4258 = vadd.f32 %v3980, %v4211
  %v4259 = vadd.f32 %v3981, %v4214
  %v4260 = vadd.f32 %v3982, %v4217
  %v4261 = vadd.f32 %v3983, %v4220
  %v4262 = vadd.f32 %v3984, %v4223
  %v4263 = vadd.f32 %v3985, %v4226
  %v4264 = vadd.f32 %v3986, %v4229
  %v4265 = vadd.f32 %v3987, %v4232
  %s4266 = scalar_lea.vmem [#allocation3], 48
  %v4267 = vld [vmem:[%s4266] sm:$0xff]
  %v4268 = vld [vmem:[%s4266 + $0x8] sm:$0xff]
  %v4269 = vld [vmem:[%s4266 + $0x18] sm:$0xff]
  %v4270 = vld [vmem:[%s4266 + $0x20] sm:$0xff]
  %v4271 = vld [vmem:[%s4266 + $0x30] sm:$0xff]
  %v4272 = vld [vmem:[%s4266 + $0x38] sm:$0xff]
  %v4273 = vld [vmem:[%s4266 + $0x48] sm:$0xff]
  %v4274 = vld [vmem:[%s4266 + $0x50] sm:$0xff]
  %v4275 = vld [vmem:[%s4266 + $0x60] sm:$0xff]
  %v4276 = vld [vmem:[%s4266 + $0x68] sm:$0xff]
  %v4277 = vld [vmem:[%s4266 + $0x78] sm:$0xff]
  %v4278 = vld [vmem:[%s4266 + $0x80] sm:$0xff]
  %v4279 = vld [vmem:[%s4266 + $0x90] sm:$0xff]
  %v4280 = vld [vmem:[%s4266 + $0x98] sm:$0xff]
  %v4281 = vld [vmem:[%s4266 + $0xa8] sm:$0xff]
  %v4282 = vld [vmem:[%s4266 + $0xb0] sm:$0xff]
  %v4283 = vld [vmem:[%s4266 + $0xc0] sm:$0xff]
  %v4284 = vld [vmem:[%s4266 + $0xc8] sm:$0xff]
  %v4285 = vld [vmem:[%s4266 + $0xd8] sm:$0xff]
  %v4286 = vld [vmem:[%s4266 + $0xe0] sm:$0xff]
  %v4287 = vld [vmem:[%s4266 + $0xf0] sm:$0xff]
  %v4288 = vld [vmem:[%s4266 + $0xf8] sm:$0xff]
  %v4289 = vld [vmem:[%s4266 + $0x108] sm:$0xff]
  %v4290 = vld [vmem:[%s4266 + $0x110] sm:$0xff]
  %v4291 = vld [vmem:[%s4266 + $0x120] sm:$0xff]
  %v4292 = vld [vmem:[%s4266 + $0x128] sm:$0xff]
  %v4293 = vld [vmem:[%s4266 + $0x138] sm:$0xff]
  %v4294 = vld [vmem:[%s4266 + $0x140] sm:$0xff]
  %v4295 = vld [vmem:[%s4266 + $0x150] sm:$0xff]
  %v4296 = vld [vmem:[%s4266 + $0x158] sm:$0xff]
  %v4297 = vld [vmem:[%s4266 + $0x168] sm:$0xff]
  %v4298 = vld [vmem:[%s4266 + $0x170] sm:$0xff]
  %s4299 = scalar_lea.vmem %s2, 192
  %v4300 = vld [vmem:[%s4299] sm:$0xff]
  %v4301 = vld [vmem:[%s4299 + $0x8] sm:$0xff]
  %v4302 = vld [vmem:[%s4299 + $0x10] sm:$0xff]
  %v4303 = vld [vmem:[%s4299 + $0x18] sm:$0xff]
  %v4305 = vsel %vm70, %v4267, 0
  %v4308 = vsel %vm70, %v4268, 0
  %v4311 = vsel %vm70, %v4269, 0
  %v4314 = vsel %vm70, %v4270, 0
  %v4317 = vsel %vm70, %v4271, 0
  %v4320 = vsel %vm70, %v4272, 0
  %v4323 = vsel %vm70, %v4273, 0
  %v4326 = vsel %vm70, %v4274, 0
  %v4329 = vsel %vm70, %v4275, 0
  %v4332 = vsel %vm70, %v4276, 0
  %v4335 = vsel %vm70, %v4277, 0
  %v4338 = vsel %vm70, %v4278, 0
  %v4341 = vsel %vm70, %v4279, 0
  %v4344 = vsel %vm70, %v4280, 0
  %v4347 = vsel %vm70, %v4281, 0
  %v4350 = vsel %vm70, %v4282, 0
  %v4353 = vsel %vm70, %v4283, 0
  %v4356 = vsel %vm70, %v4284, 0
  %v4359 = vsel %vm70, %v4285, 0
  %v4362 = vsel %vm70, %v4286, 0
  %v4365 = vsel %vm70, %v4287, 0
  %v4368 = vsel %vm70, %v4288, 0
  %v4371 = vsel %vm70, %v4289, 0
  %v4374 = vsel %vm70, %v4290, 0
  %v4377 = vsel %vm70, %v4291, 0
  %v4380 = vsel %vm70, %v4292, 0
  %v4383 = vsel %vm70, %v4293, 0
  %v4386 = vsel %vm70, %v4294, 0
  %v4389 = vsel %vm70, %v4295, 0
  %v4392 = vsel %vm70, %v4296, 0
  %v4395 = vsel %vm70, %v4297, 0
  %v4398 = vsel %vm70, %v4298, 0
  %4400 = vmatpush.msra.mxu0 0.0
  %4401 = vmatpush.msra.mxu0 0.0
  %4402 = vmatpush.msra.mxu0 0.0
  %4403 = vmatpush.msra.mxu0 0.0
  %4404 = vmatpush.msra.mxu0 0.0
  %4405 = vmatpush.msra.mxu0 0.0
  %4406 = vmatpush.msra.mxu0 0.0
  %4407 = vmatpush.msra.mxu0 0.0
  %4408 = vmatpush.msra.mxu0 0.0
  %4409 = vmatpush.msra.mxu0 0.0
  %4410 = vmatpush.msra.mxu0 0.0
  %4411 = vmatpush.msra.mxu0 0.0
  %4412 = vmatpush.msra.mxu0 %v4303
  %4413 = vmatpush.msra.mxu0 %v4302
  %4414 = vmatpush.msra.mxu0 %v4301
  %4415 = vmatpush.msra.mxu0 %v4300
  %4416 = vmatmul.f32.gmra.mxu0 %v4305
  %v4417 = vpop.f32.mrf.mxu0
  %v4418 = vadd.f32 0.0, %v4417
  %4419 = vmatmul.f32.gmra.mxu0 %v4308
  %v4420 = vpop.f32.mrf.mxu0
  %v4421 = vadd.f32 0.0, %v4420
  %4422 = vmatmul.f32.gmra.mxu0 %v4311
  %v4423 = vpop.f32.mrf.mxu0
  %v4424 = vadd.f32 0.0, %v4423
  %4425 = vmatmul.f32.gmra.mxu0 %v4314
  %v4426 = vpop.f32.mrf.mxu0
  %v4427 = vadd.f32 0.0, %v4426
  %4428 = vmatmul.f32.gmra.mxu0 %v4317
  %v4429 = vpop.f32.mrf.mxu0
  %v4430 = vadd.f32 0.0, %v4429
  %4431 = vmatmul.f32.gmra.mxu0 %v4320
  %v4432 = vpop.f32.mrf.mxu0
  %v4433 = vadd.f32 0.0, %v4432
  %4434 = vmatmul.f32.gmra.mxu0 %v4323
  %v4435 = vpop.f32.mrf.mxu0
  %v4436 = vadd.f32 0.0, %v4435
  %4437 = vmatmul.f32.gmra.mxu0 %v4326
  %v4438 = vpop.f32.mrf.mxu0
  %v4439 = vadd.f32 0.0, %v4438
  %4440 = vmatmul.f32.gmra.mxu0 %v4329
  %v4441 = vpop.f32.mrf.mxu0
  %v4442 = vadd.f32 0.0, %v4441
  %4443 = vmatmul.f32.gmra.mxu0 %v4332
  %v4444 = vpop.f32.mrf.mxu0
  %v4445 = vadd.f32 0.0, %v4444
  %4446 = vmatmul.f32.gmra.mxu0 %v4335
  %v4447 = vpop.f32.mrf.mxu0
  %v4448 = vadd.f32 0.0, %v4447
  %4449 = vmatmul.f32.gmra.mxu0 %v4338
  %v4450 = vpop.f32.mrf.mxu0
  %v4451 = vadd.f32 0.0, %v4450
  %4452 = vmatmul.f32.gmra.mxu0 %v4341
  %v4453 = vpop.f32.mrf.mxu0
  %v4454 = vadd.f32 0.0, %v4453
  %4455 = vmatmul.f32.gmra.mxu0 %v4344
  %v4456 = vpop.f32.mrf.mxu0
  %v4457 = vadd.f32 0.0, %v4456
  %4458 = vmatmul.f32.gmra.mxu0 %v4347
  %v4459 = vpop.f32.mrf.mxu0
  %v4460 = vadd.f32 0.0, %v4459
  %4461 = vmatmul.f32.gmra.mxu0 %v4350
  %v4462 = vpop.f32.mrf.mxu0
  %v4463 = vadd.f32 0.0, %v4462
  %4464 = vmatmul.f32.gmra.mxu0 %v4353
  %v4465 = vpop.f32.mrf.mxu0
  %v4466 = vadd.f32 0.0, %v4465
  %4467 = vmatmul.f32.gmra.mxu0 %v4356
  %v4468 = vpop.f32.mrf.mxu0
  %v4469 = vadd.f32 0.0, %v4468
  %4470 = vmatmul.f32.gmra.mxu0 %v4359
  %v4471 = vpop.f32.mrf.mxu0
  %v4472 = vadd.f32 0.0, %v4471
  %4473 = vmatmul.f32.gmra.mxu0 %v4362
  %v4474 = vpop.f32.mrf.mxu0
  %v4475 = vadd.f32 0.0, %v4474
  %4476 = vmatmul.f32.gmra.mxu0 %v4365
  %v4477 = vpop.f32.mrf.mxu0
  %v4478 = vadd.f32 0.0, %v4477
  %4479 = vmatmul.f32.gmra.mxu0 %v4368
  %v4480 = vpop.f32.mrf.mxu0
  %v4481 = vadd.f32 0.0, %v4480
  %4482 = vmatmul.f32.gmra.mxu0 %v4371
  %v4483 = vpop.f32.mrf.mxu0
  %v4484 = vadd.f32 0.0, %v4483
  %4485 = vmatmul.f32.gmra.mxu0 %v4374
  %v4486 = vpop.f32.mrf.mxu0
  %v4487 = vadd.f32 0.0, %v4486
  %4488 = vmatmul.f32.gmra.mxu0 %v4377
  %v4489 = vpop.f32.mrf.mxu0
  %v4490 = vadd.f32 0.0, %v4489
  %4491 = vmatmul.f32.gmra.mxu0 %v4380
  %v4492 = vpop.f32.mrf.mxu0
  %v4493 = vadd.f32 0.0, %v4492
  %4494 = vmatmul.f32.gmra.mxu0 %v4383
  %v4495 = vpop.f32.mrf.mxu0
  %v4496 = vadd.f32 0.0, %v4495
  %4497 = vmatmul.f32.gmra.mxu0 %v4386
  %v4498 = vpop.f32.mrf.mxu0
  %v4499 = vadd.f32 0.0, %v4498
  %4500 = vmatmul.f32.gmra.mxu0 %v4389
  %v4501 = vpop.f32.mrf.mxu0
  %v4502 = vadd.f32 0.0, %v4501
  %4503 = vmatmul.f32.gmra.mxu0 %v4392
  %v4504 = vpop.f32.mrf.mxu0
  %v4505 = vadd.f32 0.0, %v4504
  %4506 = vmatmul.f32.gmra.mxu0 %v4395
  %v4507 = vpop.f32.mrf.mxu0
  %v4508 = vadd.f32 0.0, %v4507
  %4509 = vmatmul.f32.gmra.mxu0 %v4398
  %v4510 = vpop.f32.mrf.mxu0
  %v4511 = vadd.f32 0.0, %v4510
  %4512 = vdwg.mxu0
  %v4513 = vadd.f32 %v4234, %v4418
  %v4514 = vadd.f32 %v4235, %v4421
  %v4515 = vadd.f32 %v4236, %v4424
  %v4516 = vadd.f32 %v4237, %v4427
  %v4517 = vadd.f32 %v4238, %v4430
  %v4518 = vadd.f32 %v4239, %v4433
  %v4519 = vadd.f32 %v4240, %v4436
  %v4520 = vadd.f32 %v4241, %v4439
  %v4521 = vadd.f32 %v4242, %v4442
  %v4522 = vadd.f32 %v4243, %v4445
  %v4523 = vadd.f32 %v4244, %v4448
  %v4524 = vadd.f32 %v4245, %v4451
  %v4525 = vadd.f32 %v4246, %v4454
  %v4526 = vadd.f32 %v4247, %v4457
  %v4527 = vadd.f32 %v4248, %v4460
  %v4528 = vadd.f32 %v4249, %v4463
  %v4529 = vadd.f32 %v4250, %v4466
  %v4530 = vadd.f32 %v4251, %v4469
  %v4531 = vadd.f32 %v4252, %v4472
  %v4532 = vadd.f32 %v4253, %v4475
  %v4533 = vadd.f32 %v4254, %v4478
  %v4534 = vadd.f32 %v4255, %v4481
  %v4535 = vadd.f32 %v4256, %v4484
  %v4536 = vadd.f32 %v4257, %v4487
  %v4537 = vadd.f32 %v4258, %v4490
  %v4538 = vadd.f32 %v4259, %v4493
  %v4539 = vadd.f32 %v4260, %v4496
  %v4540 = vadd.f32 %v4261, %v4499
  %v4541 = vadd.f32 %v4262, %v4502
  %v4542 = vadd.f32 %v4263, %v4505
  %v4543 = vadd.f32 %v4264, %v4508
  %v4544 = vadd.f32 %v4265, %v4511
  %v4545 = vld [vmem:[%s4266 + $0x1] sm:$0xff]
  %v4546 = vld [vmem:[%s4266 + $0x9] sm:$0xff]
  %v4547 = vld [vmem:[%s4266 + $0x19] sm:$0xff]
  %v4548 = vld [vmem:[%s4266 + $0x21] sm:$0xff]
  %v4549 = vld [vmem:[%s4266 + $0x31] sm:$0xff]
  %v4550 = vld [vmem:[%s4266 + $0x39] sm:$0xff]
  %v4551 = vld [vmem:[%s4266 + $0x49] sm:$0xff]
  %v4552 = vld [vmem:[%s4266 + $0x51] sm:$0xff]
  %v4553 = vld [vmem:[%s4266 + $0x61] sm:$0xff]
  %v4554 = vld [vmem:[%s4266 + $0x69] sm:$0xff]
  %v4555 = vld [vmem:[%s4266 + $0x79] sm:$0xff]
  %v4556 = vld [vmem:[%s4266 + $0x81] sm:$0xff]
  %v4557 = vld [vmem:[%s4266 + $0x91] sm:$0xff]
  %v4558 = vld [vmem:[%s4266 + $0x99] sm:$0xff]
  %v4559 = vld [vmem:[%s4266 + $0xa9] sm:$0xff]
  %v4560 = vld [vmem:[%s4266 + $0xb1] sm:$0xff]
  %v4561 = vld [vmem:[%s4266 + $0xc1] sm:$0xff]
  %v4562 = vld [vmem:[%s4266 + $0xc9] sm:$0xff]
  %v4563 = vld [vmem:[%s4266 + $0xd9] sm:$0xff]
  %v4564 = vld [vmem:[%s4266 + $0xe1] sm:$0xff]
  %v4565 = vld [vmem:[%s4266 + $0xf1] sm:$0xff]
  %v4566 = vld [vmem:[%s4266 + $0xf9] sm:$0xff]
  %v4567 = vld [vmem:[%s4266 + $0x109] sm:$0xff]
  %v4568 = vld [vmem:[%s4266 + $0x111] sm:$0xff]
  %v4569 = vld [vmem:[%s4266 + $0x121] sm:$0xff]
  %v4570 = vld [vmem:[%s4266 + $0x129] sm:$0xff]
  %v4571 = vld [vmem:[%s4266 + $0x139] sm:$0xff]
  %v4572 = vld [vmem:[%s4266 + $0x141] sm:$0xff]
  %v4573 = vld [vmem:[%s4266 + $0x151] sm:$0xff]
  %v4574 = vld [vmem:[%s4266 + $0x159] sm:$0xff]
  %v4575 = vld [vmem:[%s4266 + $0x169] sm:$0xff]
  %v4576 = vld [vmem:[%s4266 + $0x171] sm:$0xff]
  %s4577 = scalar_lea.vmem %s2, 224
  %v4578 = vld [vmem:[%s4577] sm:$0xff]
  %v4579 = vld [vmem:[%s4577 + $0x8] sm:$0xff]
  %v4580 = vld [vmem:[%s4577 + $0x10] sm:$0xff]
  %v4581 = vld [vmem:[%s4577 + $0x18] sm:$0xff]
  %v4583 = vsel %vm70, %v4545, 0
  %v4586 = vsel %vm70, %v4546, 0
  %v4589 = vsel %vm70, %v4547, 0
  %v4592 = vsel %vm70, %v4548, 0
  %v4595 = vsel %vm70, %v4549, 0
  %v4598 = vsel %vm70, %v4550, 0
  %v4601 = vsel %vm70, %v4551, 0
  %v4604 = vsel %vm70, %v4552, 0
  %v4607 = vsel %vm70, %v4553, 0
  %v4610 = vsel %vm70, %v4554, 0
  %v4613 = vsel %vm70, %v4555, 0
  %v4616 = vsel %vm70, %v4556, 0
  %v4619 = vsel %vm70, %v4557, 0
  %v4622 = vsel %vm70, %v4558, 0
  %v4625 = vsel %vm70, %v4559, 0
  %v4628 = vsel %vm70, %v4560, 0
  %v4631 = vsel %vm70, %v4561, 0
  %v4634 = vsel %vm70, %v4562, 0
  %v4637 = vsel %vm70, %v4563, 0
  %v4640 = vsel %vm70, %v4564, 0
  %v4643 = vsel %vm70, %v4565, 0
  %v4646 = vsel %vm70, %v4566, 0
  %v4649 = vsel %vm70, %v4567, 0
  %v4652 = vsel %vm70, %v4568, 0
  %v4655 = vsel %vm70, %v4569, 0
  %v4658 = vsel %vm70, %v4570, 0
  %v4661 = vsel %vm70, %v4571, 0
  %v4664 = vsel %vm70, %v4572, 0
  %v4667 = vsel %vm70, %v4573, 0
  %v4670 = vsel %vm70, %v4574, 0
  %v4673 = vsel %vm70, %v4575, 0
  %v4676 = vsel %vm70, %v4576, 0
  %4678 = vmatpush.msra.mxu0 0.0
  %4679 = vmatpush.msra.mxu0 0.0
  %4680 = vmatpush.msra.mxu0 0.0
  %4681 = vmatpush.msra.mxu0 0.0
  %4682 = vmatpush.msra.mxu0 0.0
  %4683 = vmatpush.msra.mxu0 0.0
  %4684 = vmatpush.msra.mxu0 0.0
  %4685 = vmatpush.msra.mxu0 0.0
  %4686 = vmatpush.msra.mxu0 0.0
  %4687 = vmatpush.msra.mxu0 0.0
  %4688 = vmatpush.msra.mxu0 0.0
  %4689 = vmatpush.msra.mxu0 0.0
  %4690 = vmatpush.msra.mxu0 %v4581
  %4691 = vmatpush.msra.mxu0 %v4580
  %4692 = vmatpush.msra.mxu0 %v4579
  %4693 = vmatpush.msra.mxu0 %v4578
  %4694 = vmatmul.f32.gmra.mxu0 %v4583
  %v4695 = vpop.f32.mrf.mxu0
  %v4696 = vadd.f32 0.0, %v4695
  %4697 = vmatmul.f32.gmra.mxu0 %v4586
  %v4698 = vpop.f32.mrf.mxu0
  %v4699 = vadd.f32 0.0, %v4698
  %4700 = vmatmul.f32.gmra.mxu0 %v4589
  %v4701 = vpop.f32.mrf.mxu0
  %v4702 = vadd.f32 0.0, %v4701
  %4703 = vmatmul.f32.gmra.mxu0 %v4592
  %v4704 = vpop.f32.mrf.mxu0
  %v4705 = vadd.f32 0.0, %v4704
  %4706 = vmatmul.f32.gmra.mxu0 %v4595
  %v4707 = vpop.f32.mrf.mxu0
  %v4708 = vadd.f32 0.0, %v4707
  %4709 = vmatmul.f32.gmra.mxu0 %v4598
  %v4710 = vpop.f32.mrf.mxu0
  %v4711 = vadd.f32 0.0, %v4710
  %4712 = vmatmul.f32.gmra.mxu0 %v4601
  %v4713 = vpop.f32.mrf.mxu0
  %v4714 = vadd.f32 0.0, %v4713
  %4715 = vmatmul.f32.gmra.mxu0 %v4604
  %v4716 = vpop.f32.mrf.mxu0
  %v4717 = vadd.f32 0.0, %v4716
  %4718 = vmatmul.f32.gmra.mxu0 %v4607
  %v4719 = vpop.f32.mrf.mxu0
  %v4720 = vadd.f32 0.0, %v4719
  %4721 = vmatmul.f32.gmra.mxu0 %v4610
  %v4722 = vpop.f32.mrf.mxu0
  %v4723 = vadd.f32 0.0, %v4722
  %4724 = vmatmul.f32.gmra.mxu0 %v4613
  %v4725 = vpop.f32.mrf.mxu0
  %v4726 = vadd.f32 0.0, %v4725
  %4727 = vmatmul.f32.gmra.mxu0 %v4616
  %v4728 = vpop.f32.mrf.mxu0
  %v4729 = vadd.f32 0.0, %v4728
  %4730 = vmatmul.f32.gmra.mxu0 %v4619
  %v4731 = vpop.f32.mrf.mxu0
  %v4732 = vadd.f32 0.0, %v4731
  %4733 = vmatmul.f32.gmra.mxu0 %v4622
  %v4734 = vpop.f32.mrf.mxu0
  %v4735 = vadd.f32 0.0, %v4734
  %4736 = vmatmul.f32.gmra.mxu0 %v4625
  %v4737 = vpop.f32.mrf.mxu0
  %v4738 = vadd.f32 0.0, %v4737
  %4739 = vmatmul.f32.gmra.mxu0 %v4628
  %v4740 = vpop.f32.mrf.mxu0
  %v4741 = vadd.f32 0.0, %v4740
  %4742 = vmatmul.f32.gmra.mxu0 %v4631
  %v4743 = vpop.f32.mrf.mxu0
  %v4744 = vadd.f32 0.0, %v4743
  %4745 = vmatmul.f32.gmra.mxu0 %v4634
  %v4746 = vpop.f32.mrf.mxu0
  %v4747 = vadd.f32 0.0, %v4746
  %4748 = vmatmul.f32.gmra.mxu0 %v4637
  %v4749 = vpop.f32.mrf.mxu0
  %v4750 = vadd.f32 0.0, %v4749
  %4751 = vmatmul.f32.gmra.mxu0 %v4640
  %v4752 = vpop.f32.mrf.mxu0
  %v4753 = vadd.f32 0.0, %v4752
  %4754 = vmatmul.f32.gmra.mxu0 %v4643
  %v4755 = vpop.f32.mrf.mxu0
  %v4756 = vadd.f32 0.0, %v4755
  %4757 = vmatmul.f32.gmra.mxu0 %v4646
  %v4758 = vpop.f32.mrf.mxu0
  %v4759 = vadd.f32 0.0, %v4758
  %4760 = vmatmul.f32.gmra.mxu0 %v4649
  %v4761 = vpop.f32.mrf.mxu0
  %v4762 = vadd.f32 0.0, %v4761
  %4763 = vmatmul.f32.gmra.mxu0 %v4652
  %v4764 = vpop.f32.mrf.mxu0
  %v4765 = vadd.f32 0.0, %v4764
  %4766 = vmatmul.f32.gmra.mxu0 %v4655
  %v4767 = vpop.f32.mrf.mxu0
  %v4768 = vadd.f32 0.0, %v4767
  %4769 = vmatmul.f32.gmra.mxu0 %v4658
  %v4770 = vpop.f32.mrf.mxu0
  %v4771 = vadd.f32 0.0, %v4770
  %4772 = vmatmul.f32.gmra.mxu0 %v4661
  %v4773 = vpop.f32.mrf.mxu0
  %v4774 = vadd.f32 0.0, %v4773
  %4775 = vmatmul.f32.gmra.mxu0 %v4664
  %v4776 = vpop.f32.mrf.mxu0
  %v4777 = vadd.f32 0.0, %v4776
  %4778 = vmatmul.f32.gmra.mxu0 %v4667
  %v4779 = vpop.f32.mrf.mxu0
  %v4780 = vadd.f32 0.0, %v4779
  %4781 = vmatmul.f32.gmra.mxu0 %v4670
  %v4782 = vpop.f32.mrf.mxu0
  %v4783 = vadd.f32 0.0, %v4782
  %4784 = vmatmul.f32.gmra.mxu0 %v4673
  %v4785 = vpop.f32.mrf.mxu0
  %v4786 = vadd.f32 0.0, %v4785
  %4787 = vmatmul.f32.gmra.mxu0 %v4676
  %v4788 = vpop.f32.mrf.mxu0
  %v4789 = vadd.f32 0.0, %v4788
  %4790 = vdwg.mxu0
  %v4791 = vadd.f32 %v4513, %v4696
  %v4792 = vadd.f32 %v4514, %v4699
  %v4793 = vadd.f32 %v4515, %v4702
  %v4794 = vadd.f32 %v4516, %v4705
  %v4795 = vadd.f32 %v4517, %v4708
  %v4796 = vadd.f32 %v4518, %v4711
  %v4797 = vadd.f32 %v4519, %v4714
  %v4798 = vadd.f32 %v4520, %v4717
  %v4799 = vadd.f32 %v4521, %v4720
  %v4800 = vadd.f32 %v4522, %v4723
  %v4801 = vadd.f32 %v4523, %v4726
  %v4802 = vadd.f32 %v4524, %v4729
  %v4803 = vadd.f32 %v4525, %v4732
  %v4804 = vadd.f32 %v4526, %v4735
  %v4805 = vadd.f32 %v4527, %v4738
  %v4806 = vadd.f32 %v4528, %v4741
  %v4807 = vadd.f32 %v4529, %v4744
  %v4808 = vadd.f32 %v4530, %v4747
  %v4809 = vadd.f32 %v4531, %v4750
  %v4810 = vadd.f32 %v4532, %v4753
  %v4811 = vadd.f32 %v4533, %v4756
  %v4812 = vadd.f32 %v4534, %v4759
  %v4813 = vadd.f32 %v4535, %v4762
  %v4814 = vadd.f32 %v4536, %v4765
  %v4815 = vadd.f32 %v4537, %v4768
  %v4816 = vadd.f32 %v4538, %v4771
  %v4817 = vadd.f32 %v4539, %v4774
  %v4818 = vadd.f32 %v4540, %v4777
  %v4819 = vadd.f32 %v4541, %v4780
  %v4820 = vadd.f32 %v4542, %v4783
  %v4821 = vadd.f32 %v4543, %v4786
  %v4822 = vadd.f32 %v4544, %v4789
  %v4823 = vld [vmem:[%s4266 + $0x2] sm:$0xff]
  %v4824 = vld [vmem:[%s4266 + $0xa] sm:$0xff]
  %v4825 = vld [vmem:[%s4266 + $0x1a] sm:$0xff]
  %v4826 = vld [vmem:[%s4266 + $0x22] sm:$0xff]
  %v4827 = vld [vmem:[%s4266 + $0x32] sm:$0xff]
  %v4828 = vld [vmem:[%s4266 + $0x3a] sm:$0xff]
  %v4829 = vld [vmem:[%s4266 + $0x4a] sm:$0xff]
  %v4830 = vld [vmem:[%s4266 + $0x52] sm:$0xff]
  %v4831 = vld [vmem:[%s4266 + $0x62] sm:$0xff]
  %v4832 = vld [vmem:[%s4266 + $0x6a] sm:$0xff]
  %v4833 = vld [vmem:[%s4266 + $0x7a] sm:$0xff]
  %v4834 = vld [vmem:[%s4266 + $0x82] sm:$0xff]
  %v4835 = vld [vmem:[%s4266 + $0x92] sm:$0xff]
  %v4836 = vld [vmem:[%s4266 + $0x9a] sm:$0xff]
  %v4837 = vld [vmem:[%s4266 + $0xaa] sm:$0xff]
  %v4838 = vld [vmem:[%s4266 + $0xb2] sm:$0xff]
  %v4839 = vld [vmem:[%s4266 + $0xc2] sm:$0xff]
  %v4840 = vld [vmem:[%s4266 + $0xca] sm:$0xff]
  %v4841 = vld [vmem:[%s4266 + $0xda] sm:$0xff]
  %v4842 = vld [vmem:[%s4266 + $0xe2] sm:$0xff]
  %v4843 = vld [vmem:[%s4266 + $0xf2] sm:$0xff]
  %v4844 = vld [vmem:[%s4266 + $0xfa] sm:$0xff]
  %v4845 = vld [vmem:[%s4266 + $0x10a] sm:$0xff]
  %v4846 = vld [vmem:[%s4266 + $0x112] sm:$0xff]
  %v4847 = vld [vmem:[%s4266 + $0x122] sm:$0xff]
  %v4848 = vld [vmem:[%s4266 + $0x12a] sm:$0xff]
  %v4849 = vld [vmem:[%s4266 + $0x13a] sm:$0xff]
  %v4850 = vld [vmem:[%s4266 + $0x142] sm:$0xff]
  %v4851 = vld [vmem:[%s4266 + $0x152] sm:$0xff]
  %v4852 = vld [vmem:[%s4266 + $0x15a] sm:$0xff]
  %v4853 = vld [vmem:[%s4266 + $0x16a] sm:$0xff]
  %v4854 = vld [vmem:[%s4266 + $0x172] sm:$0xff]
  %s4855 = scalar_lea.vmem %s2, 256
  %v4856 = vld [vmem:[%s4855] sm:$0xff]
  %v4857 = vld [vmem:[%s4855 + $0x8] sm:$0xff]
  %v4858 = vld [vmem:[%s4855 + $0x10] sm:$0xff]
  %v4859 = vld [vmem:[%s4855 + $0x18] sm:$0xff]
  %v4861 = vsel %vm70, %v4823, 0
  %v4864 = vsel %vm70, %v4824, 0
  %v4867 = vsel %vm70, %v4825, 0
  %v4870 = vsel %vm70, %v4826, 0
  %v4873 = vsel %vm70, %v4827, 0
  %v4876 = vsel %vm70, %v4828, 0
  %v4879 = vsel %vm70, %v4829, 0
  %v4882 = vsel %vm70, %v4830, 0
  %v4885 = vsel %vm70, %v4831, 0
  %v4888 = vsel %vm70, %v4832, 0
  %v4891 = vsel %vm70, %v4833, 0
  %v4894 = vsel %vm70, %v4834, 0
  %v4897 = vsel %vm70, %v4835, 0
  %v4900 = vsel %vm70, %v4836, 0
  %v4903 = vsel %vm70, %v4837, 0
  %v4906 = vsel %vm70, %v4838, 0
  %v4909 = vsel %vm70, %v4839, 0
  %v4912 = vsel %vm70, %v4840, 0
  %v4915 = vsel %vm70, %v4841, 0
  %v4918 = vsel %vm70, %v4842, 0
  %v4921 = vsel %vm70, %v4843, 0
  %v4924 = vsel %vm70, %v4844, 0
  %v4927 = vsel %vm70, %v4845, 0
  %v4930 = vsel %vm70, %v4846, 0
  %v4933 = vsel %vm70, %v4847, 0
  %v4936 = vsel %vm70, %v4848, 0
  %v4939 = vsel %vm70, %v4849, 0
  %v4942 = vsel %vm70, %v4850, 0
  %v4945 = vsel %vm70, %v4851, 0
  %v4948 = vsel %vm70, %v4852, 0
  %v4951 = vsel %vm70, %v4853, 0
  %v4954 = vsel %vm70, %v4854, 0
  %4956 = vmatpush.msra.mxu0 0.0
  %4957 = vmatpush.msra.mxu0 0.0
  %4958 = vmatpush.msra.mxu0 0.0
  %4959 = vmatpush.msra.mxu0 0.0
  %4960 = vmatpush.msra.mxu0 0.0
  %4961 = vmatpush.msra.mxu0 0.0
  %4962 = vmatpush.msra.mxu0 0.0
  %4963 = vmatpush.msra.mxu0 0.0
  %4964 = vmatpush.msra.mxu0 0.0
  %4965 = vmatpush.msra.mxu0 0.0
  %4966 = vmatpush.msra.mxu0 0.0
  %4967 = vmatpush.msra.mxu0 0.0
  %4968 = vmatpush.msra.mxu0 %v4859
  %4969 = vmatpush.msra.mxu0 %v4858
  %4970 = vmatpush.msra.mxu0 %v4857
  %4971 = vmatpush.msra.mxu0 %v4856
  %4972 = vmatmul.f32.gmra.mxu0 %v4861
  %v4973 = vpop.f32.mrf.mxu0
  %v4974 = vadd.f32 0.0, %v4973
  %4975 = vmatmul.f32.gmra.mxu0 %v4864
  %v4976 = vpop.f32.mrf.mxu0
  %v4977 = vadd.f32 0.0, %v4976
  %4978 = vmatmul.f32.gmra.mxu0 %v4867
  %v4979 = vpop.f32.mrf.mxu0
  %v4980 = vadd.f32 0.0, %v4979
  %4981 = vmatmul.f32.gmra.mxu0 %v4870
  %v4982 = vpop.f32.mrf.mxu0
  %v4983 = vadd.f32 0.0, %v4982
  %4984 = vmatmul.f32.gmra.mxu0 %v4873
  %v4985 = vpop.f32.mrf.mxu0
  %v4986 = vadd.f32 0.0, %v4985
  %4987 = vmatmul.f32.gmra.mxu0 %v4876
  %v4988 = vpop.f32.mrf.mxu0
  %v4989 = vadd.f32 0.0, %v4988
  %4990 = vmatmul.f32.gmra.mxu0 %v4879
  %v4991 = vpop.f32.mrf.mxu0
  %v4992 = vadd.f32 0.0, %v4991
  %4993 = vmatmul.f32.gmra.mxu0 %v4882
  %v4994 = vpop.f32.mrf.mxu0
  %v4995 = vadd.f32 0.0, %v4994
  %4996 = vmatmul.f32.gmra.mxu0 %v4885
  %v4997 = vpop.f32.mrf.mxu0
  %v4998 = vadd.f32 0.0, %v4997
  %4999 = vmatmul.f32.gmra.mxu0 %v4888
  %v5000 = vpop.f32.mrf.mxu0
  %v5001 = vadd.f32 0.0, %v5000
  %5002 = vmatmul.f32.gmra.mxu0 %v4891
  %v5003 = vpop.f32.mrf.mxu0
  %v5004 = vadd.f32 0.0, %v5003
  %5005 = vmatmul.f32.gmra.mxu0 %v4894
  %v5006 = vpop.f32.mrf.mxu0
  %v5007 = vadd.f32 0.0, %v5006
  %5008 = vmatmul.f32.gmra.mxu0 %v4897
  %v5009 = vpop.f32.mrf.mxu0
  %v5010 = vadd.f32 0.0, %v5009
  %5011 = vmatmul.f32.gmra.mxu0 %v4900
  %v5012 = vpop.f32.mrf.mxu0
  %v5013 = vadd.f32 0.0, %v5012
  %5014 = vmatmul.f32.gmra.mxu0 %v4903
  %v5015 = vpop.f32.mrf.mxu0
  %v5016 = vadd.f32 0.0, %v5015
  %5017 = vmatmul.f32.gmra.mxu0 %v4906
  %v5018 = vpop.f32.mrf.mxu0
  %v5019 = vadd.f32 0.0, %v5018
  %5020 = vmatmul.f32.gmra.mxu0 %v4909
  %v5021 = vpop.f32.mrf.mxu0
  %v5022 = vadd.f32 0.0, %v5021
  %5023 = vmatmul.f32.gmra.mxu0 %v4912
  %v5024 = vpop.f32.mrf.mxu0
  %v5025 = vadd.f32 0.0, %v5024
  %5026 = vmatmul.f32.gmra.mxu0 %v4915
  %v5027 = vpop.f32.mrf.mxu0
  %v5028 = vadd.f32 0.0, %v5027
  %5029 = vmatmul.f32.gmra.mxu0 %v4918
  %v5030 = vpop.f32.mrf.mxu0
  %v5031 = vadd.f32 0.0, %v5030
  %5032 = vmatmul.f32.gmra.mxu0 %v4921
  %v5033 = vpop.f32.mrf.mxu0
  %v5034 = vadd.f32 0.0, %v5033
  %5035 = vmatmul.f32.gmra.mxu0 %v4924
  %v5036 = vpop.f32.mrf.mxu0
  %v5037 = vadd.f32 0.0, %v5036
  %5038 = vmatmul.f32.gmra.mxu0 %v4927
  %v5039 = vpop.f32.mrf.mxu0
  %v5040 = vadd.f32 0.0, %v5039
  %5041 = vmatmul.f32.gmra.mxu0 %v4930
  %v5042 = vpop.f32.mrf.mxu0
  %v5043 = vadd.f32 0.0, %v5042
  %5044 = vmatmul.f32.gmra.mxu0 %v4933
  %v5045 = vpop.f32.mrf.mxu0
  %v5046 = vadd.f32 0.0, %v5045
  %5047 = vmatmul.f32.gmra.mxu0 %v4936
  %v5048 = vpop.f32.mrf.mxu0
  %v5049 = vadd.f32 0.0, %v5048
  %5050 = vmatmul.f32.gmra.mxu0 %v4939
  %v5051 = vpop.f32.mrf.mxu0
  %v5052 = vadd.f32 0.0, %v5051
  %5053 = vmatmul.f32.gmra.mxu0 %v4942
  %v5054 = vpop.f32.mrf.mxu0
  %v5055 = vadd.f32 0.0, %v5054
  %5056 = vmatmul.f32.gmra.mxu0 %v4945
  %v5057 = vpop.f32.mrf.mxu0
  %v5058 = vadd.f32 0.0, %v5057
  %5059 = vmatmul.f32.gmra.mxu0 %v4948
  %v5060 = vpop.f32.mrf.mxu0
  %v5061 = vadd.f32 0.0, %v5060
  %5062 = vmatmul.f32.gmra.mxu0 %v4951
  %v5063 = vpop.f32.mrf.mxu0
  %v5064 = vadd.f32 0.0, %v5063
  %5065 = vmatmul.f32.gmra.mxu0 %v4954
  %v5066 = vpop.f32.mrf.mxu0
  %v5067 = vadd.f32 0.0, %v5066
  %5068 = vdwg.mxu0
  %v5069 = vadd.f32 %v4791, %v4974
  %v5070 = vadd.f32 %v4792, %v4977
  %v5071 = vadd.f32 %v4793, %v4980
  %v5072 = vadd.f32 %v4794, %v4983
  %v5073 = vadd.f32 %v4795, %v4986
  %v5074 = vadd.f32 %v4796, %v4989
  %v5075 = vadd.f32 %v4797, %v4992
  %v5076 = vadd.f32 %v4798, %v4995
  %v5077 = vadd.f32 %v4799, %v4998
  %v5078 = vadd.f32 %v4800, %v5001
  %v5079 = vadd.f32 %v4801, %v5004
  %v5080 = vadd.f32 %v4802, %v5007
  %v5081 = vadd.f32 %v4803, %v5010
  %v5082 = vadd.f32 %v4804, %v5013
  %v5083 = vadd.f32 %v4805, %v5016
  %v5084 = vadd.f32 %v4806, %v5019
  %v5085 = vadd.f32 %v4807, %v5022
  %v5086 = vadd.f32 %v4808, %v5025
  %v5087 = vadd.f32 %v4809, %v5028
  %v5088 = vadd.f32 %v4810, %v5031
  %v5089 = vadd.f32 %v4811, %v5034
  %v5090 = vadd.f32 %v4812, %v5037
  %v5091 = vadd.f32 %v4813, %v5040
  %v5092 = vadd.f32 %v4814, %v5043
  %v5093 = vadd.f32 %v4815, %v5046
  %v5094 = vadd.f32 %v4816, %v5049
  %v5095 = vadd.f32 %v4817, %v5052
  %v5096 = vadd.f32 %v4818, %v5055
  %v5097 = vadd.f32 %v4819, %v5058
  %v5098 = vadd.f32 %v4820, %v5061
  %v5099 = vadd.f32 %v4821, %v5064
  %v5100 = vadd.f32 %v4822, %v5067
  %5101 = vst.msk [vmem:[%s3] sm:$0xff] %vm14, %v5069
  %5102 = vst.msk [vmem:[%s3 + $0x8] sm:$0xff] %vm14, %v5070
  %5103 = vst.msk [vmem:[%s3 + $0x10] sm:$0xff] %vm14, %v5071
  %5104 = vst.msk [vmem:[%s3 + $0x18] sm:$0xff] %vm14, %v5072
  %5105 = vst.msk [vmem:[%s3 + $0x20] sm:$0xff] %vm14, %v5073
  %5106 = vst.msk [vmem:[%s3 + $0x28] sm:$0xff] %vm14, %v5074
  %5107 = vst.msk [vmem:[%s3 + $0x30] sm:$0xff] %vm14, %v5075
  %5108 = vst.msk [vmem:[%s3 + $0x38] sm:$0xff] %vm14, %v5076
  %5109 = vst.msk [vmem:[%s3 + $0x40] sm:$0xff] %vm14, %v5077
  %5110 = vst.msk [vmem:[%s3 + $0x48] sm:$0xff] %vm14, %v5078
  %5111 = vst.msk [vmem:[%s3 + $0x50] sm:$0xff] %vm14, %v5079
  %5112 = vst.msk [vmem:[%s3 + $0x58] sm:$0xff] %vm14, %v5080
  %5113 = vst.msk [vmem:[%s3 + $0x60] sm:$0xff] %vm14, %v5081
  %5114 = vst.msk [vmem:[%s3 + $0x68] sm:$0xff] %vm14, %v5082
  %5115 = vst.msk [vmem:[%s3 + $0x70] sm:$0xff] %vm14, %v5083
  %5116 = vst.msk [vmem:[%s3 + $0x78] sm:$0xff] %vm14, %v5084
  %5117 = vst.msk [vmem:[%s3 + $0x80] sm:$0xff] %vm14, %v5085
  %5118 = vst.msk [vmem:[%s3 + $0x88] sm:$0xff] %vm14, %v5086
  %5119 = vst.msk [vmem:[%s3 + $0x90] sm:$0xff] %vm14, %v5087
  %5120 = vst.msk [vmem:[%s3 + $0x98] sm:$0xff] %vm14, %v5088
  %5121 = vst.msk [vmem:[%s3 + $0xa0] sm:$0xff] %vm14, %v5089
  %5122 = vst.msk [vmem:[%s3 + $0xa8] sm:$0xff] %vm14, %v5090
  %5123 = vst.msk [vmem:[%s3 + $0xb0] sm:$0xff] %vm14, %v5091
  %5124 = vst.msk [vmem:[%s3 + $0xb8] sm:$0xff] %vm14, %v5092
  %5125 = vst.msk [vmem:[%s3 + $0xc0] sm:$0xff] %vm14, %v5093
  %5126 = vst.msk [vmem:[%s3 + $0xc8] sm:$0xff] %vm14, %v5094
  %5127 = vst.msk [vmem:[%s3 + $0xd0] sm:$0xff] %vm14, %v5095
  %5128 = vst.msk [vmem:[%s3 + $0xd8] sm:$0xff] %vm14, %v5096
  %5129 = vst.msk [vmem:[%s3 + $0xe0] sm:$0xff] %vm14, %v5097
  %5130 = vst.msk [vmem:[%s3 + $0xe8] sm:$0xff] %vm14, %v5098
  %5131 = vst.msk [vmem:[%s3 + $0xf0] sm:$0xff] %vm14, %v5099
  %5132 = vst.msk [vmem:[%s3 + $0xf8] sm:$0xff] %vm14, %v5100
  // Predicated region
  $region14: #{_normal_op.1} parent=0 // pred_check
    _
  $region15: #{_normal_op.1} parent=0 // pred_check_branch
    %5134 = sbr.rel (0) target = $region17
  $region16: #{_normal_op.1} parent=0 // pred_region
    _
  $region17: #{_normal_op.1} parent=0 // pred_fallthru
    _
  // Predicated region
  $region18: #{_normal_op.1} parent=0 // pred_check
    _
  $region19: #{_normal_op.1} parent=0 // pred_check_branch
    %5136 = sbr.rel (0) target = $region21
  $region20: #{_normal_op.1} parent=0 // pred_region
    _
  $region21: #{_normal_op.1} parent=0 // pred_fallthru
    _

</llo_original>
